<compile_context>
chip_gen: v5e
topology: v5e:2x2
jax: 0.10.0
libtpu: 0.0.40
codegen_flags: <defaults>
</compile_context>

<pallas_src>
import jax
import jax.numpy as jnp
from jax.experimental import pallas as pl
from jax.experimental.pallas import tpu as pltpu

# ----------------------------- configuration ------------------------------- #
B = 2            # batch
T = 8            # time frames (seq_len)
CIN = 6          # encoder input channels (e.g. 2*M for M = 3 mics, real/imag)
C = 8            # c
C_FINAL = 64     # c_final
K1 = (2, 3)
KT = K1[0]       # causal time kernel (pad k_t-1 at the front of time)
FFT_NUM = 128
F0 = FFT_NUM // 2 + 1           # 65 input frequency bins

KFS = [5, K1[1], K1[1], K1[1], K1[1]]        # freq kernel per layer (first is 5)
C_INS = [CIN, C, C, C, C]
C_OUTS = [C, C, C, C, C_FINAL]

F_INS, F_OUTS = [], []
_f = F0
for _kf in KFS:                               # F_out = (F_in - kf)//2 + 1 (stride 2)
    F_INS.append(_f)
    _f = (_f - _kf) // 2 + 1
    F_OUTS.append(_f)                         # [31, 15, 7, 3, 1]

CF_INS = [C_INS[i] * F_INS[i] for i in range(5)]     # [390, 248, 120, 56, 24]
CF_OUTS = [C_OUTS[i] * F_OUTS[i] for i in range(5)]  # [248, 120, 56, 24, 64]
N_OUTS = [2 * cf for cf in CF_OUTS]                  # [496, 240, 112, 48, 128]
CF_MAX = max(CF_INS)                                 # 390
K_COL = KT * CF_MAX                                  # 780  (matmul K upper bound)
NP = 5   # params per layer: wmat, bias_vec, scale_vec, shift_vec, alpha_vec


# ------------------------------ Pallas kernel ------------------------------- #
def _encoder_kernel(*refs):
    """refs = (x, 5*(wmat, bias, scale, shift, alpha), 5 outputs, act, col)."""
    x_ref = refs[0]
    prm = refs[1:1 + 5 * NP]
    outs = refs[1 + 5 * NP:1 + 5 * NP + 5]
    act, col = refs[-2:]

    # (feedback #5) one unmasked full-ref zero: only the t = -1 causal-pad row
    # strictly needs it, everything else is overwritten below.
    act[...] = jnp.zeros_like(act)

    # Stage the NCHW input as (B, T+1, ci*F0): causal pad row at time index 0,
    # channel-major (ci, fi) along the lane dim.  CIN small contiguous stores.
    for ci in range(CIN):
        act[:, 1:T + 1, ci * F0:(ci + 1) * F0] = x_ref[:, ci, :, :]

    for li in range(5):
        wmat, bvec, svec, hvec, avec = prm[li * NP:(li + 1) * NP]
        cf_in, cf_out = CF_INS[li], CF_OUTS[li]

        # "im2col" = two lane-dense time-slab copies per batch (freq taps and the
        # stride-2 subsampling live inside the structured weight).  (feedback #1)
        for b in range(B):
            col[b * T:(b + 1) * T, 0:cf_in] = \
                act[b, 0:T, 0:cf_in].astype(jnp.bfloat16)          # taps at t-1
            col[b * T:(b + 1) * T, cf_in:2 * cf_in] = \
                act[b, 1:T + 1, 0:cf_in].astype(jnp.bfloat16)      # taps at t

        # ONE bf16 MXU matmul per layer, both batches folded in, f32 accumulation.
        # (feedback #2, #3)
        acc = jnp.dot(col[:, 0:2 * cf_in], wmat[...],
                      preferred_element_type=jnp.float32)          # (B*T, 2*c_out*f_out)
        acc = acc + bvec[...]                                      # conv bias

        # f32 epilogue (v5e: no bf16 VPU/EUP).  Lanes ordered (c_out, f_out).
        y = acc[:, 0:cf_out] * jax.nn.sigmoid(acc[:, cf_out:])     # GLU gate
        y = y * svec[...] + hvec[...]                              # BN (eval) affine
        y = jnp.where(y >= 0.0, y, avec[...] * y)                  # PReLU

        for b in range(B):
            yb = y[b * T:(b + 1) * T, :]                           # (T, cf_out)
            outs[li][b, :, :] = yb                                 # lane-dense output
            if li < 4:
                act[b, 1:T + 1, 0:cf_out] = yb                     # feeds next layer
                # act row 0 (t = -1) stays zero from the initial full-ref zero.


# --------------------------- parameter preparation -------------------------- #
def prepare_params(params):
    """One-time preprocessing (feedback #4: out of the per-call jit path).

    Per layer builds:
      * structured bf16 weight matrix (KT*c_in*F_in, 2*c_out*f_out) folding the
        frequency taps + stride-2 subsampling of GateConv2d, K ordered (dt,ci,fi),
        N ordered (out/gate, c_out, f_out);
      * f32 lane vectors for conv bias, BN scale/shift and PReLU alpha, repeated
        over f_out so they broadcast along the (c_out*f_out) lane dim.
    """
    flat = []
    for i in range(5):
        w = jnp.asarray(params["w"][i], jnp.float32)      # (2*c_out, c_in, KT, kf)
        two_co, c_in, kt, kf = w.shape
        f_in, f_out = F_INS[i], F_OUTS[i]
        fi = jnp.arange(f_in)
        fo = jnp.arange(f_out)
        df = jnp.arange(kf)
        sel = (fi[None, :, None] == 2 * fo[None, None, :] + df[:, None, None])
        sel = sel.astype(jnp.float32)                     # (kf, F_in, f_out)
        wmat = jnp.einsum("ocdk,kif->dciof", w, sel,
                          precision=jax.lax.Precision.HIGHEST)
        wmat = wmat.reshape(kt * c_in * f_in, two_co * f_out).astype(jnp.bfloat16)
        flat += [
            wmat,
            jnp.repeat(params["b"][i].astype(jnp.float32), f_out).reshape(1, -1),
            jnp.repeat(params["scale"][i].astype(jnp.float32), f_out).reshape(1, -1),
            jnp.repeat(params["shift"][i].astype(jnp.float32), f_out).reshape(1, -1),
            jnp.repeat(params["alpha"][i].astype(jnp.float32), f_out).reshape(1, -1),
        ]
    return flat


# ------------------------------ forward wrapper ----------------------------- #
@jax.jit
def unet_encoder_forward(x_nchw, flat_params):
    """Mirrors UNet_Encoder.forward.  x_nchw: (B, CIN, T, F0) NCHW float32.

    Returns (x, en_list) where every entry is in the kernel-native lane-dense
    layout (B, T, c_out, f_out)  [PyTorch NCHW with the C and T axes swapped;
    apply jnp.transpose(o, (0, 2, 1, 3)) if strict NCHW is required]."""
    out_shapes = tuple(
        jax.ShapeDtypeStruct((B, T, CF_OUTS[i]), jnp.float32) for i in range(5))
    scratch = [
        pltpu.VMEM((B, T + 1, CF_MAX), jnp.float32),   # shared time-padded activation
        pltpu.VMEM((B * T, K_COL), jnp.bfloat16),      # matmul LHS staging buffer
    ]
    # (v7x note) single-core, no grid: ~1.2 MiB of VMEM and ~17 MFLOP total; add a
    # "parallel" batch grid axis only if B / T ever grow enough to feed 2 TCs.
    outs = pl.pallas_call(
        _encoder_kernel,
        out_shape=out_shapes,
        scratch_shapes=scratch,
    )(x_nchw.astype(jnp.float32), *flat_params)

    # free minor-dim split, no transpose (feedback #4)
    en_list = [o.reshape(B, T, C_OUTS[i], F_OUTS[i]) for i, o in enumerate(outs)]
    return en_list[-1], en_list


# ------------------------- pure-JAX reference model ------------------------- #
def ref_forward(x_nchw, params):
    x = x_nchw.astype(jnp.float32)
    en = []
    for i in range(5):
        xp = jnp.pad(x, ((0, 0), (0, 0), (KT - 1, 0), (0, 0)))          # causal T pad
        y = jax.lax.conv_general_dilated(
            xp, params["w"][i], window_strides=(1, 2), padding="VALID",
            dimension_numbers=("NCHW", "OIHW", "NCHW"),
            precision=jax.lax.Precision.HIGHEST)
        y = y + params["b"][i][None, :, None, None]
        co = y.shape[1] // 2
        y = y[:, :co] * jax.nn.sigmoid(y[:, co:])                       # GLU
        y = (y * params["scale"][i][None, :, None, None]
             + params["shift"][i][None, :, None, None])                 # BN affine
        y = jnp.where(y >= 0.0, y, params["alpha"][i][None, :, None, None] * y)
        x = y
        en.append(y)
    return en[-1], en


# ------------------------------- parameters --------------------------------- #
def make_params(key):
    keys = iter(jax.random.split(key, 64))
    eps = 1e-5
    p = {"w": [], "b": [], "scale": [], "shift": [], "alpha": []}
    for i in range(5):
        c_in, c_out, kf = C_INS[i], C_OUTS[i], KFS[i]
        p["w"].append(0.1 * jax.random.normal(next(keys),
                                              (2 * c_out, c_in, KT, kf), jnp.float32))
        p["b"].append(0.1 * jax.random.normal(next(keys), (2 * c_out,), jnp.float32))
        gamma = 1.0 + 0.1 * jax.random.normal(next(keys), (c_out,), jnp.float32)
        beta = 0.1 * jax.random.normal(next(keys), (c_out,), jnp.float32)
        p["scale"].append(gamma / jnp.sqrt(1.0 + eps))   # eval BN, running stats 0/1
        p["shift"].append(beta)
        p["alpha"].append(0.25 + 0.05 * jax.random.normal(next(keys), (c_out,),
                                                          jnp.float32))
    return p


# ---------------------------------- main ------------------------------------ #
if __name__ == "__main__":
    key = jax.random.PRNGKey(0)
    kp, kx = jax.random.split(key)
    params = make_params(kp)
    x = jax.random.normal(kx, (B, CIN, T, F0), jnp.float32)

    flat = prepare_params(params)          # one-time, outside the jitted forward
    out, en_list = jax.block_until_ready(unet_encoder_forward(x, flat))

    expected = [(B, T, C_OUTS[i], F_OUTS[i]) for i in range(5)]
    assert [tuple(e.shape) for e in en_list] == expected, \
        [tuple(e.shape) for e in en_list]
    assert tuple(out.shape) == expected[-1], out.shape

    ref_out, ref_en = ref_forward(x, params)
    max_err = 0.0
    for a, r in zip(en_list, ref_en):
        r_btcf = jnp.transpose(r, (0, 2, 1, 3))        # NCHW -> (B, T, C, F)
        max_err = max(max_err, float(jnp.max(jnp.abs(a - r_btcf))))

    # bf16 MXU operands (f32 accumulation, f32 epilogue) across 5 layers.
    if max_err < 5e-2:
        print("KERNEL_OK")
    else:
        print(f"MISMATCH max_abs_err={max_err}")
</pallas_src>

<mosaic_0001>
module attributes {stable_mosaic.version = 11 : i64} {
  func.func @_encoder_kernel(%arg0: memref<2x6x8x65xf32, #tpu.memory_space<vmem>>, %arg1: memref<780x496xbf16, #tpu.memory_space<vmem>>, %arg2: memref<1x496xf32, #tpu.memory_space<vmem>>, %arg3: memref<1x248xf32, #tpu.memory_space<vmem>>, %arg4: memref<1x248xf32, #tpu.memory_space<vmem>>, %arg5: memref<1x248xf32, #tpu.memory_space<vmem>>, %arg6: memref<496x240xbf16, #tpu.memory_space<vmem>>, %arg7: memref<1x240xf32, #tpu.memory_space<vmem>>, %arg8: memref<1x120xf32, #tpu.memory_space<vmem>>, %arg9: memref<1x120xf32, #tpu.memory_space<vmem>>, %arg10: memref<1x120xf32, #tpu.memory_space<vmem>>, %arg11: memref<240x112xbf16, #tpu.memory_space<vmem>>, %arg12: memref<1x112xf32, #tpu.memory_space<vmem>>, %arg13: memref<1x56xf32, #tpu.memory_space<vmem>>, %arg14: memref<1x56xf32, #tpu.memory_space<vmem>>, %arg15: memref<1x56xf32, #tpu.memory_space<vmem>>, %arg16: memref<112x48xbf16, #tpu.memory_space<vmem>>, %arg17: memref<1x48xf32, #tpu.memory_space<vmem>>, %arg18: memref<1x24xf32, #tpu.memory_space<vmem>>, %arg19: memref<1x24xf32, #tpu.memory_space<vmem>>, %arg20: memref<1x24xf32, #tpu.memory_space<vmem>>, %arg21: memref<48x128xbf16, #tpu.memory_space<vmem>>, %arg22: memref<1x128xf32, #tpu.memory_space<vmem>>, %arg23: memref<1x64xf32, #tpu.memory_space<vmem>>, %arg24: memref<1x64xf32, #tpu.memory_space<vmem>>, %arg25: memref<1x64xf32, #tpu.memory_space<vmem>>, %arg26: memref<2x8x248xf32, #tpu.memory_space<vmem>>, %arg27: memref<2x8x120xf32, #tpu.memory_space<vmem>>, %arg28: memref<2x8x56xf32, #tpu.memory_space<vmem>>, %arg29: memref<2x8x24xf32, #tpu.memory_space<vmem>>, %arg30: memref<2x8x64xf32, #tpu.memory_space<vmem>>, %arg31: memref<2x9x390xf32, #tpu.memory_space<vmem>>, %arg32: memref<16x780xbf16, #tpu.memory_space<vmem>>) attributes {dimension_semantics = [], scalar_prefetch = 0 : i64, scratch_operands = 2 : i64, tpu.core_type = #tpu.core_type<tc>} {
    %cst = arith.constant 0.000000e+00 : f32
    %0 = vector.broadcast %cst : f32 to vector<2x9x390xf32>
    %c0 = arith.constant 0 : index
    %c0_0 = arith.constant 0 : index
    %c0_1 = arith.constant 0 : index
    %1 = vector.load %arg31[%c0, %c0_0, %c0_1] : memref<2x9x390xf32, #tpu.memory_space<vmem>>, vector<2x9x390xf32>
    tpu.vector_store %arg31[%c0, %c0_0, %c0_1], %0 {strides = array<i32>} : memref<2x9x390xf32, #tpu.memory_space<vmem>>, vector<2x9x390xf32>,
    %c0_2 = arith.constant 0 : index
    %c0_3 = arith.constant 0 : index
    %c0_4 = arith.constant 0 : index
    %c0_5 = arith.constant 0 : index
    %2 = vector.load %arg0[%c0_2, %c0_3, %c0_4, %c0_5] : memref<2x6x8x65xf32, #tpu.memory_space<vmem>>, vector<2x1x8x65xf32>
    %3 = vector.shape_cast %2 : vector<2x1x8x65xf32> to vector<2x8x65xf32>
    %c0_6 = arith.constant 0 : index
    %c1 = arith.constant 1 : index
    %c0_7 = arith.constant 0 : index
    %4 = vector.load %arg31[%c0_6, %c1, %c0_7] : memref<2x9x390xf32, #tpu.memory_space<vmem>>, vector<2x8x65xf32>
    tpu.vector_store %arg31[%c0_6, %c1, %c0_7], %3 {strides = array<i32>} : memref<2x9x390xf32, #tpu.memory_space<vmem>>, vector<2x8x65xf32>,
    %c0_8 = arith.constant 0 : index
    %c1_9 = arith.constant 1 : index
    %c0_10 = arith.constant 0 : index
    %c0_11 = arith.constant 0 : index
    %5 = vector.load %arg0[%c0_8, %c1_9, %c0_10, %c0_11] : memref<2x6x8x65xf32, #tpu.memory_space<vmem>>, vector<2x1x8x65xf32>
    %6 = vector.shape_cast %5 : vector<2x1x8x65xf32> to vector<2x8x65xf32>
    %c0_12 = arith.constant 0 : index
    %c1_13 = arith.constant 1 : index
    %c65 = arith.constant 65 : index
    %7 = vector.load %arg31[%c0_12, %c1_13, %c65] : memref<2x9x390xf32, #tpu.memory_space<vmem>>, vector<2x8x65xf32>
    tpu.vector_store %arg31[%c0_12, %c1_13, %c65], %6 {strides = array<i32>} : memref<2x9x390xf32, #tpu.memory_space<vmem>>, vector<2x8x65xf32>,
    %c0_14 = arith.constant 0 : index
    %c2 = arith.constant 2 : index
    %c0_15 = arith.constant 0 : index
    %c0_16 = arith.constant 0 : index
    %8 = vector.load %arg0[%c0_14, %c2, %c0_15, %c0_16] : memref<2x6x8x65xf32, #tpu.memory_space<vmem>>, vector<2x1x8x65xf32>
    %9 = vector.shape_cast %8 : vector<2x1x8x65xf32> to vector<2x8x65xf32>
    %c0_17 = arith.constant 0 : index
    %c1_18 = arith.constant 1 : index
    %c130 = arith.constant 130 : index
    %10 = vector.load %arg31[%c0_17, %c1_18, %c130] : memref<2x9x390xf32, #tpu.memory_space<vmem>>, vector<2x8x65xf32>
    tpu.vector_store %arg31[%c0_17, %c1_18, %c130], %9 {strides = array<i32>} : memref<2x9x390xf32, #tpu.memory_space<vmem>>, vector<2x8x65xf32>,
    %c0_19 = arith.constant 0 : index
    %c3 = arith.constant 3 : index
    %c0_20 = arith.constant 0 : index
    %c0_21 = arith.constant 0 : index
    %11 = vector.load %arg0[%c0_19, %c3, %c0_20, %c0_21] : memref<2x6x8x65xf32, #tpu.memory_space<vmem>>, vector<2x1x8x65xf32>
    %12 = vector.shape_cast %11 : vector<2x1x8x65xf32> to vector<2x8x65xf32>
    %c0_22 = arith.constant 0 : index
    %c1_23 = arith.constant 1 : index
    %c195 = arith.constant 195 : index
    %13 = vector.load %arg31[%c0_22, %c1_23, %c195] : memref<2x9x390xf32, #tpu.memory_space<vmem>>, vector<2x8x65xf32>
    tpu.vector_store %arg31[%c0_22, %c1_23, %c195], %12 {strides = array<i32>} : memref<2x9x390xf32, #tpu.memory_space<vmem>>, vector<2x8x65xf32>,
    %c0_24 = arith.constant 0 : index
    %c4 = arith.constant 4 : index
    %c0_25 = arith.constant 0 : index
    %c0_26 = arith.constant 0 : index
    %14 = vector.load %arg0[%c0_24, %c4, %c0_25, %c0_26] : memref<2x6x8x65xf32, #tpu.memory_space<vmem>>, vector<2x1x8x65xf32>
    %15 = vector.shape_cast %14 : vector<2x1x8x65xf32> to vector<2x8x65xf32>
    %c0_27 = arith.constant 0 : index
    %c1_28 = arith.constant 1 : index
    %c260 = arith.constant 260 : index
    %16 = vector.load %arg31[%c0_27, %c1_28, %c260] : memref<2x9x390xf32, #tpu.memory_space<vmem>>, vector<2x8x65xf32>
    tpu.vector_store %arg31[%c0_27, %c1_28, %c260], %15 {strides = array<i32>} : memref<2x9x390xf32, #tpu.memory_space<vmem>>, vector<2x8x65xf32>,
    %c0_29 = arith.constant 0 : index
    %c5 = arith.constant 5 : index
    %c0_30 = arith.constant 0 : index
    %c0_31 = arith.constant 0 : index
    %17 = vector.load %arg0[%c0_29, %c5, %c0_30, %c0_31] : memref<2x6x8x65xf32, #tpu.memory_space<vmem>>, vector<2x1x8x65xf32>
    %18 = vector.shape_cast %17 : vector<2x1x8x65xf32> to vector<2x8x65xf32>
    %c0_32 = arith.constant 0 : index
    %c1_33 = arith.constant 1 : index
    %c325 = arith.constant 325 : index
    %19 = vector.load %arg31[%c0_32, %c1_33, %c325] : memref<2x9x390xf32, #tpu.memory_space<vmem>>, vector<2x8x65xf32>
    tpu.vector_store %arg31[%c0_32, %c1_33, %c325], %18 {strides = array<i32>} : memref<2x9x390xf32, #tpu.memory_space<vmem>>, vector<2x8x65xf32>,
    %c0_34 = arith.constant 0 : index
    %c0_35 = arith.constant 0 : index
    %c0_36 = arith.constant 0 : index
    %20 = vector.load %arg31[%c0_34, %c0_35, %c0_36] : memref<2x9x390xf32, #tpu.memory_space<vmem>>, vector<1x8x390xf32>
    %21 = vector.shape_cast %20 : vector<1x8x390xf32> to vector<8x390xf32>
    %22 = arith.truncf %21 : vector<8x390xf32> to vector<8x390xbf16>
    %c0_37 = arith.constant 0 : index
    %c0_38 = arith.constant 0 : index
    %23 = vector.load %arg32[%c0_37, %c0_38] : memref<16x780xbf16, #tpu.memory_space<vmem>>, vector<8x390xbf16>
    tpu.vector_store %arg32[%c0_37, %c0_38], %22 {strides = array<i32>} : memref<16x780xbf16, #tpu.memory_space<vmem>>, vector<8x390xbf16>,
    %c0_39 = arith.constant 0 : index
    %c1_40 = arith.constant 1 : index
    %c0_41 = arith.constant 0 : index
    %24 = vector.load %arg31[%c0_39, %c1_40, %c0_41] : memref<2x9x390xf32, #tpu.memory_space<vmem>>, vector<1x8x390xf32>
    %25 = vector.shape_cast %24 : vector<1x8x390xf32> to vector<8x390xf32>
    %26 = arith.truncf %25 : vector<8x390xf32> to vector<8x390xbf16>
    %c0_42 = arith.constant 0 : index
    %c390 = arith.constant 390 : index
    %27 = vector.load %arg32[%c0_42, %c390] : memref<16x780xbf16, #tpu.memory_space<vmem>>, vector<8x390xbf16>
    tpu.vector_store %arg32[%c0_42, %c390], %26 {strides = array<i32>} : memref<16x780xbf16, #tpu.memory_space<vmem>>, vector<8x390xbf16>,
    %c1_43 = arith.constant 1 : index
    %c0_44 = arith.constant 0 : index
    %c0_45 = arith.constant 0 : index
    %28 = vector.load %arg31[%c1_43, %c0_44, %c0_45] : memref<2x9x390xf32, #tpu.memory_space<vmem>>, vector<1x8x390xf32>
    %29 = vector.shape_cast %28 : vector<1x8x390xf32> to vector<8x390xf32>
    %30 = arith.truncf %29 : vector<8x390xf32> to vector<8x390xbf16>
    %c8 = arith.constant 8 : index
    %c0_46 = arith.constant 0 : index
    %31 = vector.load %arg32[%c8, %c0_46] : memref<16x780xbf16, #tpu.memory_space<vmem>>, vector<8x390xbf16>
    tpu.vector_store %arg32[%c8, %c0_46], %30 {strides = array<i32>} : memref<16x780xbf16, #tpu.memory_space<vmem>>, vector<8x390xbf16>,
    %c1_47 = arith.constant 1 : index
    %c1_48 = arith.constant 1 : index
    %c0_49 = arith.constant 0 : index
    %32 = vector.load %arg31[%c1_47, %c1_48, %c0_49] : memref<2x9x390xf32, #tpu.memory_space<vmem>>, vector<1x8x390xf32>
    %33 = vector.shape_cast %32 : vector<1x8x390xf32> to vector<8x390xf32>
    %34 = arith.truncf %33 : vector<8x390xf32> to vector<8x390xbf16>
    %c8_50 = arith.constant 8 : index
    %c390_51 = arith.constant 390 : index
    %35 = vector.load %arg32[%c8_50, %c390_51] : memref<16x780xbf16, #tpu.memory_space<vmem>>, vector<8x390xbf16>
    tpu.vector_store %arg32[%c8_50, %c390_51], %34 {strides = array<i32>} : memref<16x780xbf16, #tpu.memory_space<vmem>>, vector<8x390xbf16>,
    %c0_52 = arith.constant 0 : index
    %c0_53 = arith.constant 0 : index
    %36 = vector.load %arg32[%c0_52, %c0_53] : memref<16x780xbf16, #tpu.memory_space<vmem>>, vector<16x780xbf16>
    %c0_54 = arith.constant 0 : index
    %c0_55 = arith.constant 0 : index
    %37 = vector.load %arg1[%c0_54, %c0_55] : memref<780x496xbf16, #tpu.memory_space<vmem>>, vector<780x496xbf16>
    %cst_56 = arith.constant dense<0.000000e+00> : vector<16x496xf32>
    %38 = tpu.matmul %36, %37, %cst_56 {dimension_numbers = #tpu.dot_dimension_numbers<[1], [0], [0], [1], [0, 0, 1, 1], [], []>} : vector<16x780xbf16>, vector<780x496xbf16>, vector<16x496xf32> -> vector<16x496xf32>
    %c0_57 = arith.constant 0 : index
    %c0_58 = arith.constant 0 : index
    %39 = vector.load %arg2[%c0_57, %c0_58] : memref<1x496xf32, #tpu.memory_space<vmem>>, vector<1x496xf32>
    %40 = vector.broadcast %39 : vector<1x496xf32> to vector<16x496xf32>
    %41 = arith.addf %38, %40 : vector<16x496xf32>
    %42 = vector.extract_strided_slice %41 {offsets = [0, 0], sizes = [16, 248], strides = [1, 1]} : vector<16x496xf32> to vector<16x248xf32>
    %43 = vector.extract_strided_slice %41 {offsets = [0, 248], sizes = [16, 248], strides = [1, 1]} : vector<16x496xf32> to vector<16x248xf32>
    %44 = arith.negf %43 : vector<16x248xf32>
    %45 = math.exp %44 : vector<16x248xf32>
    %cst_59 = arith.constant 1.000000e+00 : f32
    %46 = vector.broadcast %cst_59 : f32 to vector<16x248xf32>
    %47 = arith.addf %46, %45 : vector<16x248xf32>
    %48 = arith.divf %46, %47 : vector<16x248xf32>
    %49 = arith.mulf %42, %48 : vector<16x248xf32>
    %c0_60 = arith.constant 0 : index
    %c0_61 = arith.constant 0 : index
    %50 = vector.load %arg3[%c0_60, %c0_61] : memref<1x248xf32, #tpu.memory_space<vmem>>, vector<1x248xf32>
    %51 = vector.broadcast %50 : vector<1x248xf32> to vector<16x248xf32>
    %52 = arith.mulf %49, %51 : vector<16x248xf32>
    %c0_62 = arith.constant 0 : index
    %c0_63 = arith.constant 0 : index
    %53 = vector.load %arg4[%c0_62, %c0_63] : memref<1x248xf32, #tpu.memory_space<vmem>>, vector<1x248xf32>
    %54 = vector.broadcast %53 : vector<1x248xf32> to vector<16x248xf32>
    %55 = arith.addf %52, %54 : vector<16x248xf32>
    %cst_64 = arith.constant 0.000000e+00 : f32
    %56 = vector.broadcast %cst_64 : f32 to vector<16x248xf32>
    %57 = arith.cmpf oge, %55, %56 : vector<16x248xf32>
    %c0_65 = arith.constant 0 : index
    %c0_66 = arith.constant 0 : index
    %58 = vector.load %arg5[%c0_65, %c0_66] : memref<1x248xf32, #tpu.memory_space<vmem>>, vector<1x248xf32>
    %59 = vector.broadcast %58 : vector<1x248xf32> to vector<16x248xf32>
    %60 = arith.mulf %59, %55 : vector<16x248xf32>
    %61 = arith.select %57, %55, %60 : vector<16x248xi1>, vector<16x248xf32>
    %62 = vector.extract_strided_slice %61 {offsets = [0, 0], sizes = [8, 248], strides = [1, 1]} : vector<16x248xf32> to vector<8x248xf32>
    %c0_67 = arith.constant 0 : index
    %c0_68 = arith.constant 0 : index
    %c0_69 = arith.constant 0 : index
    %63 = vector.load %arg26[%c0_67, %c0_68, %c0_69] : memref<2x8x248xf32, #tpu.memory_space<vmem>>, vector<1x8x248xf32>
    %64 = vector.shape_cast %63 : vector<1x8x248xf32> to vector<8x248xf32>
    %65 = vector.shape_cast %62 : vector<8x248xf32> to vector<1x8x248xf32>
    tpu.vector_store %arg26[%c0_67, %c0_68, %c0_69], %65 {strides = array<i32>} : memref<2x8x248xf32, #tpu.memory_space<vmem>>, vector<1x8x248xf32>,
    %c0_70 = arith.constant 0 : index
    %c1_71 = arith.constant 1 : index
    %c0_72 = arith.constant 0 : index
    %66 = vector.load %arg31[%c0_70, %c1_71, %c0_72] : memref<2x9x390xf32, #tpu.memory_space<vmem>>, vector<1x8x248xf32>
    %67 = vector.shape_cast %66 : vector<1x8x248xf32> to vector<8x248xf32>
    %68 = vector.shape_cast %62 : vector<8x248xf32> to vector<1x8x248xf32>
    tpu.vector_store %arg31[%c0_70, %c1_71, %c0_72], %68 {strides = array<i32>} : memref<2x9x390xf32, #tpu.memory_space<vmem>>, vector<1x8x248xf32>,
    %69 = vector.extract_strided_slice %61 {offsets = [8, 0], sizes = [8, 248], strides = [1, 1]} : vector<16x248xf32> to vector<8x248xf32>
    %c1_73 = arith.constant 1 : index
    %c0_74 = arith.constant 0 : index
    %c0_75 = arith.constant 0 : index
    %70 = vector.load %arg26[%c1_73, %c0_74, %c0_75] : memref<2x8x248xf32, #tpu.memory_space<vmem>>, vector<1x8x248xf32>
    %71 = vector.shape_cast %70 : vector<1x8x248xf32> to vector<8x248xf32>
    %72 = vector.shape_cast %69 : vector<8x248xf32> to vector<1x8x248xf32>
    tpu.vector_store %arg26[%c1_73, %c0_74, %c0_75], %72 {strides = array<i32>} : memref<2x8x248xf32, #tpu.memory_space<vmem>>, vector<1x8x248xf32>,
    %c1_76 = arith.constant 1 : index
    %c1_77 = arith.constant 1 : index
    %c0_78 = arith.constant 0 : index
    %73 = vector.load %arg31[%c1_76, %c1_77, %c0_78] : memref<2x9x390xf32, #tpu.memory_space<vmem>>, vector<1x8x248xf32>
    %74 = vector.shape_cast %73 : vector<1x8x248xf32> to vector<8x248xf32>
    %75 = vector.shape_cast %69 : vector<8x248xf32> to vector<1x8x248xf32>
    tpu.vector_store %arg31[%c1_76, %c1_77, %c0_78], %75 {strides = array<i32>} : memref<2x9x390xf32, #tpu.memory_space<vmem>>, vector<1x8x248xf32>,
    %c0_79 = arith.constant 0 : index
    %c0_80 = arith.constant 0 : index
    %c0_81 = arith.constant 0 : index
    %76 = vector.load %arg31[%c0_79, %c0_80, %c0_81] : memref<2x9x390xf32, #tpu.memory_space<vmem>>, vector<1x8x248xf32>
    %77 = vector.shape_cast %76 : vector<1x8x248xf32> to vector<8x248xf32>
    %78 = arith.truncf %77 : vector<8x248xf32> to vector<8x248xbf16>
    %c0_82 = arith.constant 0 : index
    %c0_83 = arith.constant 0 : index
    %79 = vector.load %arg32[%c0_82, %c0_83] : memref<16x780xbf16, #tpu.memory_space<vmem>>, vector<8x248xbf16>
    tpu.vector_store %arg32[%c0_82, %c0_83], %78 {strides = array<i32>} : memref<16x780xbf16, #tpu.memory_space<vmem>>, vector<8x248xbf16>,
    %c0_84 = arith.constant 0 : index
    %c1_85 = arith.constant 1 : index
    %c0_86 = arith.constant 0 : index
    %80 = vector.load %arg31[%c0_84, %c1_85, %c0_86] : memref<2x9x390xf32, #tpu.memory_space<vmem>>, vector<1x8x248xf32>
    %81 = vector.shape_cast %80 : vector<1x8x248xf32> to vector<8x248xf32>
    %82 = arith.truncf %81 : vector<8x248xf32> to vector<8x248xbf16>
    %c0_87 = arith.constant 0 : index
    %c248 = arith.constant 248 : index
    %83 = vector.load %arg32[%c0_87, %c248] : memref<16x780xbf16, #tpu.memory_space<vmem>>, vector<8x248xbf16>
    tpu.vector_store %arg32[%c0_87, %c248], %82 {strides = array<i32>} : memref<16x780xbf16, #tpu.memory_space<vmem>>, vector<8x248xbf16>,
    %c1_88 = arith.constant 1 : index
    %c0_89 = arith.constant 0 : index
    %c0_90 = arith.constant 0 : index
    %84 = vector.load %arg31[%c1_88, %c0_89, %c0_90] : memref<2x9x390xf32, #tpu.memory_space<vmem>>, vector<1x8x248xf32>
    %85 = vector.shape_cast %84 : vector<1x8x248xf32> to vector<8x248xf32>
    %86 = arith.truncf %85 : vector<8x248xf32> to vector<8x248xbf16>
    %c8_91 = arith.constant 8 : index
    %c0_92 = arith.constant 0 : index
    %87 = vector.load %arg32[%c8_91, %c0_92] : memref<16x780xbf16, #tpu.memory_space<vmem>>, vector<8x248xbf16>
    tpu.vector_store %arg32[%c8_91, %c0_92], %86 {strides = array<i32>} : memref<16x780xbf16, #tpu.memory_space<vmem>>, vector<8x248xbf16>,
    %c1_93 = arith.constant 1 : index
    %c1_94 = arith.constant 1 : index
    %c0_95 = arith.constant 0 : index
    %88 = vector.load %arg31[%c1_93, %c1_94, %c0_95] : memref<2x9x390xf32, #tpu.memory_space<vmem>>, vector<1x8x248xf32>
    %89 = vector.shape_cast %88 : vector<1x8x248xf32> to vector<8x248xf32>
    %90 = arith.truncf %89 : vector<8x248xf32> to vector<8x248xbf16>
    %c8_96 = arith.constant 8 : index
    %c248_97 = arith.constant 248 : index
    %91 = vector.load %arg32[%c8_96, %c248_97] : memref<16x780xbf16, #tpu.memory_space<vmem>>, vector<8x248xbf16>
    tpu.vector_store %arg32[%c8_96, %c248_97], %90 {strides = array<i32>} : memref<16x780xbf16, #tpu.memory_space<vmem>>, vector<8x248xbf16>,
    %c0_98 = arith.constant 0 : index
    %c0_99 = arith.constant 0 : index
    %92 = vector.load %arg32[%c0_98, %c0_99] : memref<16x780xbf16, #tpu.memory_space<vmem>>, vector<16x496xbf16>
    %c0_100 = arith.constant 0 : index
    %c0_101 = arith.constant 0 : index
    %93 = vector.load %arg6[%c0_100, %c0_101] : memref<496x240xbf16, #tpu.memory_space<vmem>>, vector<496x240xbf16>
    %cst_102 = arith.constant dense<0.000000e+00> : vector<16x240xf32>
    %94 = tpu.matmul %92, %93, %cst_102 {dimension_numbers = #tpu.dot_dimension_numbers<[1], [0], [0], [1], [0, 0, 1, 1], [], []>} : vector<16x496xbf16>, vector<496x240xbf16>, vector<16x240xf32> -> vector<16x240xf32>
    %c0_103 = arith.constant 0 : index
    %c0_104 = arith.constant 0 : index
    %95 = vector.load %arg7[%c0_103, %c0_104] : memref<1x240xf32, #tpu.memory_space<vmem>>, vector<1x240xf32>
    %96 = vector.broadcast %95 : vector<1x240xf32> to vector<16x240xf32>
    %97 = arith.addf %94, %96 : vector<16x240xf32>
    %98 = vector.extract_strided_slice %97 {offsets = [0, 0], sizes = [16, 120], strides = [1, 1]} : vector<16x240xf32> to vector<16x120xf32>
    %99 = vector.extract_strided_slice %97 {offsets = [0, 120], sizes = [16, 120], strides = [1, 1]} : vector<16x240xf32> to vector<16x120xf32>
    %100 = arith.negf %99 : vector<16x120xf32>
    %101 = math.exp %100 : vector<16x120xf32>
    %cst_105 = arith.constant 1.000000e+00 : f32
    %102 = vector.broadcast %cst_105 : f32 to vector<16x120xf32>
    %103 = arith.addf %102, %101 : vector<16x120xf32>
    %104 = arith.divf %102, %103 : vector<16x120xf32>
    %105 = arith.mulf %98, %104 : vector<16x120xf32>
    %c0_106 = arith.constant 0 : index
    %c0_107 = arith.constant 0 : index
    %106 = vector.load %arg8[%c0_106, %c0_107] : memref<1x120xf32, #tpu.memory_space<vmem>>, vector<1x120xf32>
    %107 = vector.broadcast %106 : vector<1x120xf32> to vector<16x120xf32>
    %108 = arith.mulf %105, %107 : vector<16x120xf32>
    %c0_108 = arith.constant 0 : index
    %c0_109 = arith.constant 0 : index
    %109 = vector.load %arg9[%c0_108, %c0_109] : memref<1x120xf32, #tpu.memory_space<vmem>>, vector<1x120xf32>
    %110 = vector.broadcast %109 : vector<1x120xf32> to vector<16x120xf32>
    %111 = arith.addf %108, %110 : vector<16x120xf32>
    %cst_110 = arith.constant 0.000000e+00 : f32
    %112 = vector.broadcast %cst_110 : f32 to vector<16x120xf32>
    %113 = arith.cmpf oge, %111, %112 : vector<16x120xf32>
    %c0_111 = arith.constant 0 : index
    %c0_112 = arith.constant 0 : index
    %114 = vector.load %arg10[%c0_111, %c0_112] : memref<1x120xf32, #tpu.memory_space<vmem>>, vector<1x120xf32>
    %115 = vector.broadcast %114 : vector<1x120xf32> to vector<16x120xf32>
    %116 = arith.mulf %115, %111 : vector<16x120xf32>
    %117 = arith.select %113, %111, %116 : vector<16x120xi1>, vector<16x120xf32>
    %118 = vector.extract_strided_slice %117 {offsets = [0, 0], sizes = [8, 120], strides = [1, 1]} : vector<16x120xf32> to vector<8x120xf32>
    %c0_113 = arith.constant 0 : index
    %c0_114 = arith.constant 0 : index
    %c0_115 = arith.constant 0 : index
    %119 = vector.load %arg27[%c0_113, %c0_114, %c0_115] : memref<2x8x120xf32, #tpu.memory_space<vmem>>, vector<1x8x120xf32>
    %120 = vector.shape_cast %119 : vector<1x8x120xf32> to vector<8x120xf32>
    %121 = vector.shape_cast %118 : vector<8x120xf32> to vector<1x8x120xf32>
    tpu.vector_store %arg27[%c0_113, %c0_114, %c0_115], %121 {strides = array<i32>} : memref<2x8x120xf32, #tpu.memory_space<vmem>>, vector<1x8x120xf32>,
    %c0_116 = arith.constant 0 : index
    %c1_117 = arith.constant 1 : index
    %c0_118 = arith.constant 0 : index
    %122 = vector.load %arg31[%c0_116, %c1_117, %c0_118] : memref<2x9x390xf32, #tpu.memory_space<vmem>>, vector<1x8x120xf32>
    %123 = vector.shape_cast %122 : vector<1x8x120xf32> to vector<8x120xf32>
    %124 = vector.shape_cast %118 : vector<8x120xf32> to vector<1x8x120xf32>
    tpu.vector_store %arg31[%c0_116, %c1_117, %c0_118], %124 {strides = array<i32>} : memref<2x9x390xf32, #tpu.memory_space<vmem>>, vector<1x8x120xf32>,
    %125 = vector.extract_strided_slice %117 {offsets = [8, 0], sizes = [8, 120], strides = [1, 1]} : vector<16x120xf32> to vector<8x120xf32>
    %c1_119 = arith.constant 1 : index
    %c0_120 = arith.constant 0 : index
    %c0_121 = arith.constant 0 : index
    %126 = vector.load %arg27[%c1_119, %c0_120, %c0_121] : memref<2x8x120xf32, #tpu.memory_space<vmem>>, vector<1x8x120xf32>
    %127 = vector.shape_cast %126 : vector<1x8x120xf32> to vector<8x120xf32>
    %128 = vector.shape_cast %125 : vector<8x120xf32> to vector<1x8x120xf32>
    tpu.vector_store %arg27[%c1_119, %c0_120, %c0_121], %128 {strides = array<i32>} : memref<2x8x120xf32, #tpu.memory_space<vmem>>, vector<1x8x120xf32>,
    %c1_122 = arith.constant 1 : index
    %c1_123 = arith.constant 1 : index
    %c0_124 = arith.constant 0 : index
    %129 = vector.load %arg31[%c1_122, %c1_123, %c0_124] : memref<2x9x390xf32, #tpu.memory_space<vmem>>, vector<1x8x120xf32>
    %130 = vector.shape_cast %129 : vector<1x8x120xf32> to vector<8x120xf32>
    %131 = vector.shape_cast %125 : vector<8x120xf32> to vector<1x8x120xf32>
    tpu.vector_store %arg31[%c1_122, %c1_123, %c0_124], %131 {strides = array<i32>} : memref<2x9x390xf32, #tpu.memory_space<vmem>>, vector<1x8x120xf32>,
    %c0_125 = arith.constant 0 : index
    %c0_126 = arith.constant 0 : index
    %c0_127 = arith.constant 0 : index
    %132 = vector.load %arg31[%c0_125, %c0_126, %c0_127] : memref<2x9x390xf32, #tpu.memory_space<vmem>>, vector<1x8x120xf32>
    %133 = vector.shape_cast %132 : vector<1x8x120xf32> to vector<8x120xf32>
    %134 = arith.truncf %133 : vector<8x120xf32> to vector<8x120xbf16>
    %c0_128 = arith.constant 0 : index
    %c0_129 = arith.constant 0 : index
    %135 = vector.load %arg32[%c0_128, %c0_129] : memref<16x780xbf16, #tpu.memory_space<vmem>>, vector<8x120xbf16>
    tpu.vector_store %arg32[%c0_128, %c0_129], %134 {strides = array<i32>} : memref<16x780xbf16, #tpu.memory_space<vmem>>, vector<8x120xbf16>,
    %c0_130 = arith.constant 0 : index
    %c1_131 = arith.constant 1 : index
    %c0_132 = arith.constant 0 : index
    %136 = vector.load %arg31[%c0_130, %c1_131, %c0_132] : memref<2x9x390xf32, #tpu.memory_space<vmem>>, vector<1x8x120xf32>
    %137 = vector.shape_cast %136 : vector<1x8x120xf32> to vector<8x120xf32>
    %138 = arith.truncf %137 : vector<8x120xf32> to vector<8x120xbf16>
    %c0_133 = arith.constant 0 : index
    %c120 = arith.constant 120 : index
    %139 = vector.load %arg32[%c0_133, %c120] : memref<16x780xbf16, #tpu.memory_space<vmem>>, vector<8x120xbf16>
    tpu.vector_store %arg32[%c0_133, %c120], %138 {strides = array<i32>} : memref<16x780xbf16, #tpu.memory_space<vmem>>, vector<8x120xbf16>,
    %c1_134 = arith.constant 1 : index
    %c0_135 = arith.constant 0 : index
    %c0_136 = arith.constant 0 : index
    %140 = vector.load %arg31[%c1_134, %c0_135, %c0_136] : memref<2x9x390xf32, #tpu.memory_space<vmem>>, vector<1x8x120xf32>
    %141 = vector.shape_cast %140 : vector<1x8x120xf32> to vector<8x120xf32>
    %142 = arith.truncf %141 : vector<8x120xf32> to vector<8x120xbf16>
    %c8_137 = arith.constant 8 : index
    %c0_138 = arith.constant 0 : index
    %143 = vector.load %arg32[%c8_137, %c0_138] : memref<16x780xbf16, #tpu.memory_space<vmem>>, vector<8x120xbf16>
    tpu.vector_store %arg32[%c8_137, %c0_138], %142 {strides = array<i32>} : memref<16x780xbf16, #tpu.memory_space<vmem>>, vector<8x120xbf16>,
    %c1_139 = arith.constant 1 : index
    %c1_140 = arith.constant 1 : index
    %c0_141 = arith.constant 0 : index
    %144 = vector.load %arg31[%c1_139, %c1_140, %c0_141] : memref<2x9x390xf32, #tpu.memory_space<vmem>>, vector<1x8x120xf32>
    %145 = vector.shape_cast %144 : vector<1x8x120xf32> to vector<8x120xf32>
    %146 = arith.truncf %145 : vector<8x120xf32> to vector<8x120xbf16>
    %c8_142 = arith.constant 8 : index
    %c120_143 = arith.constant 120 : index
    %147 = vector.load %arg32[%c8_142, %c120_143] : memref<16x780xbf16, #tpu.memory_space<vmem>>, vector<8x120xbf16>
    tpu.vector_store %arg32[%c8_142, %c120_143], %146 {strides = array<i32>} : memref<16x780xbf16, #tpu.memory_space<vmem>>, vector<8x120xbf16>,
    %c0_144 = arith.constant 0 : index
    %c0_145 = arith.constant 0 : index
    %148 = vector.load %arg32[%c0_144, %c0_145] : memref<16x780xbf16, #tpu.memory_space<vmem>>, vector<16x240xbf16>
    %c0_146 = arith.constant 0 : index
    %c0_147 = arith.constant 0 : index
    %149 = vector.load %arg11[%c0_146, %c0_147] : memref<240x112xbf16, #tpu.memory_space<vmem>>, vector<240x112xbf16>
    %cst_148 = arith.constant dense<0.000000e+00> : vector<16x112xf32>
    %150 = tpu.matmul %148, %149, %cst_148 {dimension_numbers = #tpu.dot_dimension_numbers<[1], [0], [0], [1], [0, 0, 1, 1], [], []>} : vector<16x240xbf16>, vector<240x112xbf16>, vector<16x112xf32> -> vector<16x112xf32>
    %c0_149 = arith.constant 0 : index
    %c0_150 = arith.constant 0 : index
    %151 = vector.load %arg12[%c0_149, %c0_150] : memref<1x112xf32, #tpu.memory_space<vmem>>, vector<1x112xf32>
    %152 = vector.broadcast %151 : vector<1x112xf32> to vector<16x112xf32>
    %153 = arith.addf %150, %152 : vector<16x112xf32>
    %154 = vector.extract_strided_slice %153 {offsets = [0, 0], sizes = [16, 56], strides = [1, 1]} : vector<16x112xf32> to vector<16x56xf32>
    %155 = vector.extract_strided_slice %153 {offsets = [0, 56], sizes = [16, 56], strides = [1, 1]} : vector<16x112xf32> to vector<16x56xf32>
    %156 = arith.negf %155 : vector<16x56xf32>
    %157 = math.exp %156 : vector<16x56xf32>
    %cst_151 = arith.constant 1.000000e+00 : f32
    %158 = vector.broadcast %cst_151 : f32 to vector<16x56xf32>
    %159 = arith.addf %158, %157 : vector<16x56xf32>
    %160 = arith.divf %158, %159 : vector<16x56xf32>
    %161 = arith.mulf %154, %160 : vector<16x56xf32>
    %c0_152 = arith.constant 0 : index
    %c0_153 = arith.constant 0 : index
    %162 = vector.load %arg13[%c0_152, %c0_153] : memref<1x56xf32, #tpu.memory_space<vmem>>, vector<1x56xf32>
    %163 = vector.broadcast %162 : vector<1x56xf32> to vector<16x56xf32>
    %164 = arith.mulf %161, %163 : vector<16x56xf32>
    %c0_154 = arith.constant 0 : index
    %c0_155 = arith.constant 0 : index
    %165 = vector.load %arg14[%c0_154, %c0_155] : memref<1x56xf32, #tpu.memory_space<vmem>>, vector<1x56xf32>
    %166 = vector.broadcast %165 : vector<1x56xf32> to vector<16x56xf32>
    %167 = arith.addf %164, %166 : vector<16x56xf32>
    %cst_156 = arith.constant 0.000000e+00 : f32
    %168 = vector.broadcast %cst_156 : f32 to vector<16x56xf32>
    %169 = arith.cmpf oge, %167, %168 : vector<16x56xf32>
    %c0_157 = arith.constant 0 : index
    %c0_158 = arith.constant 0 : index
    %170 = vector.load %arg15[%c0_157, %c0_158] : memref<1x56xf32, #tpu.memory_space<vmem>>, vector<1x56xf32>
    %171 = vector.broadcast %170 : vector<1x56xf32> to vector<16x56xf32>
    %172 = arith.mulf %171, %167 : vector<16x56xf32>
    %173 = arith.select %169, %167, %172 : vector<16x56xi1>, vector<16x56xf32>
    %174 = vector.extract_strided_slice %173 {offsets = [0, 0], sizes = [8, 56], strides = [1, 1]} : vector<16x56xf32> to vector<8x56xf32>
    %c0_159 = arith.constant 0 : index
    %c0_160 = arith.constant 0 : index
    %c0_161 = arith.constant 0 : index
    %175 = vector.load %arg28[%c0_159, %c0_160, %c0_161] : memref<2x8x56xf32, #tpu.memory_space<vmem>>, vector<1x8x56xf32>
    %176 = vector.shape_cast %175 : vector<1x8x56xf32> to vector<8x56xf32>
    %177 = vector.shape_cast %174 : vector<8x56xf32> to vector<1x8x56xf32>
    tpu.vector_store %arg28[%c0_159, %c0_160, %c0_161], %177 {strides = array<i32>} : memref<2x8x56xf32, #tpu.memory_space<vmem>>, vector<1x8x56xf32>,
    %c0_162 = arith.constant 0 : index
    %c1_163 = arith.constant 1 : index
    %c0_164 = arith.constant 0 : index
    %178 = vector.load %arg31[%c0_162, %c1_163, %c0_164] : memref<2x9x390xf32, #tpu.memory_space<vmem>>, vector<1x8x56xf32>
    %179 = vector.shape_cast %178 : vector<1x8x56xf32> to vector<8x56xf32>
    %180 = vector.shape_cast %174 : vector<8x56xf32> to vector<1x8x56xf32>
    tpu.vector_store %arg31[%c0_162, %c1_163, %c0_164], %180 {strides = array<i32>} : memref<2x9x390xf32, #tpu.memory_space<vmem>>, vector<1x8x56xf32>,
    %181 = vector.extract_strided_slice %173 {offsets = [8, 0], sizes = [8, 56], strides = [1, 1]} : vector<16x56xf32> to vector<8x56xf32>
    %c1_165 = arith.constant 1 : index
    %c0_166 = arith.constant 0 : index
    %c0_167 = arith.constant 0 : index
    %182 = vector.load %arg28[%c1_165, %c0_166, %c0_167] : memref<2x8x56xf32, #tpu.memory_space<vmem>>, vector<1x8x56xf32>
    %183 = vector.shape_cast %182 : vector<1x8x56xf32> to vector<8x56xf32>
    %184 = vector.shape_cast %181 : vector<8x56xf32> to vector<1x8x56xf32>
    tpu.vector_store %arg28[%c1_165, %c0_166, %c0_167], %184 {strides = array<i32>} : memref<2x8x56xf32, #tpu.memory_space<vmem>>, vector<1x8x56xf32>,
    %c1_168 = arith.constant 1 : index
    %c1_169 = arith.constant 1 : index
    %c0_170 = arith.constant 0 : index
    %185 = vector.load %arg31[%c1_168, %c1_169, %c0_170] : memref<2x9x390xf32, #tpu.memory_space<vmem>>, vector<1x8x56xf32>
    %186 = vector.shape_cast %185 : vector<1x8x56xf32> to vector<8x56xf32>
    %187 = vector.shape_cast %181 : vector<8x56xf32> to vector<1x8x56xf32>
    tpu.vector_store %arg31[%c1_168, %c1_169, %c0_170], %187 {strides = array<i32>} : memref<2x9x390xf32, #tpu.memory_space<vmem>>, vector<1x8x56xf32>,
    %c0_171 = arith.constant 0 : index
    %c0_172 = arith.constant 0 : index
    %c0_173 = arith.constant 0 : index
    %188 = vector.load %arg31[%c0_171, %c0_172, %c0_173] : memref<2x9x390xf32, #tpu.memory_space<vmem>>, vector<1x8x56xf32>
    %189 = vector.shape_cast %188 : vector<1x8x56xf32> to vector<8x56xf32>
    %190 = arith.truncf %189 : vector<8x56xf32> to vector<8x56xbf16>
    %c0_174 = arith.constant 0 : index
    %c0_175 = arith.constant 0 : index
    %191 = vector.load %arg32[%c0_174, %c0_175] : memref<16x780xbf16, #tpu.memory_space<vmem>>, vector<8x56xbf16>
    tpu.vector_store %arg32[%c0_174, %c0_175], %190 {strides = array<i32>} : memref<16x780xbf16, #tpu.memory_space<vmem>>, vector<8x56xbf16>,
    %c0_176 = arith.constant 0 : index
    %c1_177 = arith.constant 1 : index
    %c0_178 = arith.constant 0 : index
    %192 = vector.load %arg31[%c0_176, %c1_177, %c0_178] : memref<2x9x390xf32, #tpu.memory_space<vmem>>, vector<1x8x56xf32>
    %193 = vector.shape_cast %192 : vector<1x8x56xf32> to vector<8x56xf32>
    %194 = arith.truncf %193 : vector<8x56xf32> to vector<8x56xbf16>
    %c0_179 = arith.constant 0 : index
    %c56 = arith.constant 56 : index
    %195 = vector.load %arg32[%c0_179, %c56] : memref<16x780xbf16, #tpu.memory_space<vmem>>, vector<8x56xbf16>
    tpu.vector_store %arg32[%c0_179, %c56], %194 {strides = array<i32>} : memref<16x780xbf16, #tpu.memory_space<vmem>>, vector<8x56xbf16>,
    %c1_180 = arith.constant 1 : index
    %c0_181 = arith.constant 0 : index
    %c0_182 = arith.constant 0 : index
    %196 = vector.load %arg31[%c1_180, %c0_181, %c0_182] : memref<2x9x390xf32, #tpu.memory_space<vmem>>, vector<1x8x56xf32>
    %197 = vector.shape_cast %196 : vector<1x8x56xf32> to vector<8x56xf32>
    %198 = arith.truncf %197 : vector<8x56xf32> to vector<8x56xbf16>
    %c8_183 = arith.constant 8 : index
    %c0_184 = arith.constant 0 : index
    %199 = vector.load %arg32[%c8_183, %c0_184] : memref<16x780xbf16, #tpu.memory_space<vmem>>, vector<8x56xbf16>
    tpu.vector_store %arg32[%c8_183, %c0_184], %198 {strides = array<i32>} : memref<16x780xbf16, #tpu.memory_space<vmem>>, vector<8x56xbf16>,
    %c1_185 = arith.constant 1 : index
    %c1_186 = arith.constant 1 : index
    %c0_187 = arith.constant 0 : index
    %200 = vector.load %arg31[%c1_185, %c1_186, %c0_187] : memref<2x9x390xf32, #tpu.memory_space<vmem>>, vector<1x8x56xf32>
    %201 = vector.shape_cast %200 : vector<1x8x56xf32> to vector<8x56xf32>
    %202 = arith.truncf %201 : vector<8x56xf32> to vector<8x56xbf16>
    %c8_188 = arith.constant 8 : index
    %c56_189 = arith.constant 56 : index
    %203 = vector.load %arg32[%c8_188, %c56_189] : memref<16x780xbf16, #tpu.memory_space<vmem>>, vector<8x56xbf16>
    tpu.vector_store %arg32[%c8_188, %c56_189], %202 {strides = array<i32>} : memref<16x780xbf16, #tpu.memory_space<vmem>>, vector<8x56xbf16>,
    %c0_190 = arith.constant 0 : index
    %c0_191 = arith.constant 0 : index
    %204 = vector.load %arg32[%c0_190, %c0_191] : memref<16x780xbf16, #tpu.memory_space<vmem>>, vector<16x112xbf16>
    %c0_192 = arith.constant 0 : index
    %c0_193 = arith.constant 0 : index
    %205 = vector.load %arg16[%c0_192, %c0_193] : memref<112x48xbf16, #tpu.memory_space<vmem>>, vector<112x48xbf16>
    %cst_194 = arith.constant dense<0.000000e+00> : vector<16x48xf32>
    %206 = tpu.matmul %204, %205, %cst_194 {dimension_numbers = #tpu.dot_dimension_numbers<[1], [0], [0], [1], [0, 0, 1, 1], [], []>} : vector<16x112xbf16>, vector<112x48xbf16>, vector<16x48xf32> -> vector<16x48xf32>
    %c0_195 = arith.constant 0 : index
    %c0_196 = arith.constant 0 : index
    %207 = vector.load %arg17[%c0_195, %c0_196] : memref<1x48xf32, #tpu.memory_space<vmem>>, vector<1x48xf32>
    %208 = vector.broadcast %207 : vector<1x48xf32> to vector<16x48xf32>
    %209 = arith.addf %206, %208 : vector<16x48xf32>
    %210 = vector.extract_strided_slice %209 {offsets = [0, 0], sizes = [16, 24], strides = [1, 1]} : vector<16x48xf32> to vector<16x24xf32>
    %211 = vector.extract_strided_slice %209 {offsets = [0, 24], sizes = [16, 24], strides = [1, 1]} : vector<16x48xf32> to vector<16x24xf32>
    %212 = arith.negf %211 : vector<16x24xf32>
    %213 = math.exp %212 : vector<16x24xf32>
    %cst_197 = arith.constant 1.000000e+00 : f32
    %214 = vector.broadcast %cst_197 : f32 to vector<16x24xf32>
    %215 = arith.addf %214, %213 : vector<16x24xf32>
    %216 = arith.divf %214, %215 : vector<16x24xf32>
    %217 = arith.mulf %210, %216 : vector<16x24xf32>
    %c0_198 = arith.constant 0 : index
    %c0_199 = arith.constant 0 : index
    %218 = vector.load %arg18[%c0_198, %c0_199] : memref<1x24xf32, #tpu.memory_space<vmem>>, vector<1x24xf32>
    %219 = vector.broadcast %218 : vector<1x24xf32> to vector<16x24xf32>
    %220 = arith.mulf %217, %219 : vector<16x24xf32>
    %c0_200 = arith.constant 0 : index
    %c0_201 = arith.constant 0 : index
    %221 = vector.load %arg19[%c0_200, %c0_201] : memref<1x24xf32, #tpu.memory_space<vmem>>, vector<1x24xf32>
    %222 = vector.broadcast %221 : vector<1x24xf32> to vector<16x24xf32>
    %223 = arith.addf %220, %222 : vector<16x24xf32>
    %cst_202 = arith.constant 0.000000e+00 : f32
    %224 = vector.broadcast %cst_202 : f32 to vector<16x24xf32>
    %225 = arith.cmpf oge, %223, %224 : vector<16x24xf32>
    %c0_203 = arith.constant 0 : index
    %c0_204 = arith.constant 0 : index
    %226 = vector.load %arg20[%c0_203, %c0_204] : memref<1x24xf32, #tpu.memory_space<vmem>>, vector<1x24xf32>
    %227 = vector.broadcast %226 : vector<1x24xf32> to vector<16x24xf32>
    %228 = arith.mulf %227, %223 : vector<16x24xf32>
    %229 = arith.select %225, %223, %228 : vector<16x24xi1>, vector<16x24xf32>
    %230 = vector.extract_strided_slice %229 {offsets = [0, 0], sizes = [8, 24], strides = [1, 1]} : vector<16x24xf32> to vector<8x24xf32>
    %c0_205 = arith.constant 0 : index
    %c0_206 = arith.constant 0 : index
    %c0_207 = arith.constant 0 : index
    %231 = vector.load %arg29[%c0_205, %c0_206, %c0_207] : memref<2x8x24xf32, #tpu.memory_space<vmem>>, vector<1x8x24xf32>
    %232 = vector.shape_cast %231 : vector<1x8x24xf32> to vector<8x24xf32>
    %233 = vector.shape_cast %230 : vector<8x24xf32> to vector<1x8x24xf32>
    tpu.vector_store %arg29[%c0_205, %c0_206, %c0_207], %233 {strides = array<i32>} : memref<2x8x24xf32, #tpu.memory_space<vmem>>, vector<1x8x24xf32>,
    %c0_208 = arith.constant 0 : index
    %c1_209 = arith.constant 1 : index
    %c0_210 = arith.constant 0 : index
    %234 = vector.load %arg31[%c0_208, %c1_209, %c0_210] : memref<2x9x390xf32, #tpu.memory_space<vmem>>, vector<1x8x24xf32>
    %235 = vector.shape_cast %234 : vector<1x8x24xf32> to vector<8x24xf32>
    %236 = vector.shape_cast %230 : vector<8x24xf32> to vector<1x8x24xf32>
    tpu.vector_store %arg31[%c0_208, %c1_209, %c0_210], %236 {strides = array<i32>} : memref<2x9x390xf32, #tpu.memory_space<vmem>>, vector<1x8x24xf32>,
    %237 = vector.extract_strided_slice %229 {offsets = [8, 0], sizes = [8, 24], strides = [1, 1]} : vector<16x24xf32> to vector<8x24xf32>
    %c1_211 = arith.constant 1 : index
    %c0_212 = arith.constant 0 : index
    %c0_213 = arith.constant 0 : index
    %238 = vector.load %arg29[%c1_211, %c0_212, %c0_213] : memref<2x8x24xf32, #tpu.memory_space<vmem>>, vector<1x8x24xf32>
    %239 = vector.shape_cast %238 : vector<1x8x24xf32> to vector<8x24xf32>
    %240 = vector.shape_cast %237 : vector<8x24xf32> to vector<1x8x24xf32>
    tpu.vector_store %arg29[%c1_211, %c0_212, %c0_213], %240 {strides = array<i32>} : memref<2x8x24xf32, #tpu.memory_space<vmem>>, vector<1x8x24xf32>,
    %c1_214 = arith.constant 1 : index
    %c1_215 = arith.constant 1 : index
    %c0_216 = arith.constant 0 : index
    %241 = vector.load %arg31[%c1_214, %c1_215, %c0_216] : memref<2x9x390xf32, #tpu.memory_space<vmem>>, vector<1x8x24xf32>
    %242 = vector.shape_cast %241 : vector<1x8x24xf32> to vector<8x24xf32>
    %243 = vector.shape_cast %237 : vector<8x24xf32> to vector<1x8x24xf32>
    tpu.vector_store %arg31[%c1_214, %c1_215, %c0_216], %243 {strides = array<i32>} : memref<2x9x390xf32, #tpu.memory_space<vmem>>, vector<1x8x24xf32>,
    %c0_217 = arith.constant 0 : index
    %c0_218 = arith.constant 0 : index
    %c0_219 = arith.constant 0 : index
    %244 = vector.load %arg31[%c0_217, %c0_218, %c0_219] : memref<2x9x390xf32, #tpu.memory_space<vmem>>, vector<1x8x24xf32>
    %245 = vector.shape_cast %244 : vector<1x8x24xf32> to vector<8x24xf32>
    %246 = arith.truncf %245 : vector<8x24xf32> to vector<8x24xbf16>
    %c0_220 = arith.constant 0 : index
    %c0_221 = arith.constant 0 : index
    %247 = vector.load %arg32[%c0_220, %c0_221] : memref<16x780xbf16, #tpu.memory_space<vmem>>, vector<8x24xbf16>
    tpu.vector_store %arg32[%c0_220, %c0_221], %246 {strides = array<i32>} : memref<16x780xbf16, #tpu.memory_space<vmem>>, vector<8x24xbf16>,
    %c0_222 = arith.constant 0 : index
    %c1_223 = arith.constant 1 : index
    %c0_224 = arith.constant 0 : index
    %248 = vector.load %arg31[%c0_222, %c1_223, %c0_224] : memref<2x9x390xf32, #tpu.memory_space<vmem>>, vector<1x8x24xf32>
    %249 = vector.shape_cast %248 : vector<1x8x24xf32> to vector<8x24xf32>
    %250 = arith.truncf %249 : vector<8x24xf32> to vector<8x24xbf16>
    %c0_225 = arith.constant 0 : index
    %c24 = arith.constant 24 : index
    %251 = vector.load %arg32[%c0_225, %c24] : memref<16x780xbf16, #tpu.memory_space<vmem>>, vector<8x24xbf16>
    tpu.vector_store %arg32[%c0_225, %c24], %250 {strides = array<i32>} : memref<16x780xbf16, #tpu.memory_space<vmem>>, vector<8x24xbf16>,
    %c1_226 = arith.constant 1 : index
    %c0_227 = arith.constant 0 : index
    %c0_228 = arith.constant 0 : index
    %252 = vector.load %arg31[%c1_226, %c0_227, %c0_228] : memref<2x9x390xf32, #tpu.memory_space<vmem>>, vector<1x8x24xf32>
    %253 = vector.shape_cast %252 : vector<1x8x24xf32> to vector<8x24xf32>
    %254 = arith.truncf %253 : vector<8x24xf32> to vector<8x24xbf16>
    %c8_229 = arith.constant 8 : index
    %c0_230 = arith.constant 0 : index
    %255 = vector.load %arg32[%c8_229, %c0_230] : memref<16x780xbf16, #tpu.memory_space<vmem>>, vector<8x24xbf16>
    tpu.vector_store %arg32[%c8_229, %c0_230], %254 {strides = array<i32>} : memref<16x780xbf16, #tpu.memory_space<vmem>>, vector<8x24xbf16>,
    %c1_231 = arith.constant 1 : index
    %c1_232 = arith.constant 1 : index
    %c0_233 = arith.constant 0 : index
    %256 = vector.load %arg31[%c1_231, %c1_232, %c0_233] : memref<2x9x390xf32, #tpu.memory_space<vmem>>, vector<1x8x24xf32>
    %257 = vector.shape_cast %256 : vector<1x8x24xf32> to vector<8x24xf32>
    %258 = arith.truncf %257 : vector<8x24xf32> to vector<8x24xbf16>
    %c8_234 = arith.constant 8 : index
    %c24_235 = arith.constant 24 : index
    %259 = vector.load %arg32[%c8_234, %c24_235] : memref<16x780xbf16, #tpu.memory_space<vmem>>, vector<8x24xbf16>
    tpu.vector_store %arg32[%c8_234, %c24_235], %258 {strides = array<i32>} : memref<16x780xbf16, #tpu.memory_space<vmem>>, vector<8x24xbf16>,
    %c0_236 = arith.constant 0 : index
    %c0_237 = arith.constant 0 : index
    %260 = vector.load %arg32[%c0_236, %c0_237] : memref<16x780xbf16, #tpu.memory_space<vmem>>, vector<16x48xbf16>
    %c0_238 = arith.constant 0 : index
    %c0_239 = arith.constant 0 : index
    %261 = vector.load %arg21[%c0_238, %c0_239] : memref<48x128xbf16, #tpu.memory_space<vmem>>, vector<48x128xbf16>
    %cst_240 = arith.constant dense<0.000000e+00> : vector<16x128xf32>
    %262 = tpu.matmul %260, %261, %cst_240 {dimension_numbers = #tpu.dot_dimension_numbers<[1], [0], [0], [1], [0, 0, 1, 1], [], []>} : vector<16x48xbf16>, vector<48x128xbf16>, vector<16x128xf32> -> vector<16x128xf32>
    %c0_241 = arith.constant 0 : index
    %c0_242 = arith.constant 0 : index
    %263 = vector.load %arg22[%c0_241, %c0_242] : memref<1x128xf32, #tpu.memory_space<vmem>>, vector<1x128xf32>
    %264 = vector.broadcast %263 : vector<1x128xf32> to vector<16x128xf32>
    %265 = arith.addf %262, %264 : vector<16x128xf32>
    %266 = vector.extract_strided_slice %265 {offsets = [0, 0], sizes = [16, 64], strides = [1, 1]} : vector<16x128xf32> to vector<16x64xf32>
    %267 = vector.extract_strided_slice %265 {offsets = [0, 64], sizes = [16, 64], strides = [1, 1]} : vector<16x128xf32> to vector<16x64xf32>
    %268 = arith.negf %267 : vector<16x64xf32>
    %269 = math.exp %268 : vector<16x64xf32>
    %cst_243 = arith.constant 1.000000e+00 : f32
    %270 = vector.broadcast %cst_243 : f32 to vector<16x64xf32>
    %271 = arith.addf %270, %269 : vector<16x64xf32>
    %272 = arith.divf %270, %271 : vector<16x64xf32>
    %273 = arith.mulf %266, %272 : vector<16x64xf32>
    %c0_244 = arith.constant 0 : index
    %c0_245 = arith.constant 0 : index
    %274 = vector.load %arg23[%c0_244, %c0_245] : memref<1x64xf32, #tpu.memory_space<vmem>>, vector<1x64xf32>
    %275 = vector.broadcast %274 : vector<1x64xf32> to vector<16x64xf32>
    %276 = arith.mulf %273, %275 : vector<16x64xf32>
    %c0_246 = arith.constant 0 : index
    %c0_247 = arith.constant 0 : index
    %277 = vector.load %arg24[%c0_246, %c0_247] : memref<1x64xf32, #tpu.memory_space<vmem>>, vector<1x64xf32>
    %278 = vector.broadcast %277 : vector<1x64xf32> to vector<16x64xf32>
    %279 = arith.addf %276, %278 : vector<16x64xf32>
    %cst_248 = arith.constant 0.000000e+00 : f32
    %280 = vector.broadcast %cst_248 : f32 to vector<16x64xf32>
    %281 = arith.cmpf oge, %279, %280 : vector<16x64xf32>
    %c0_249 = arith.constant 0 : index
    %c0_250 = arith.constant 0 : index
    %282 = vector.load %arg25[%c0_249, %c0_250] : memref<1x64xf32, #tpu.memory_space<vmem>>, vector<1x64xf32>
    %283 = vector.broadcast %282 : vector<1x64xf32> to vector<16x64xf32>
    %284 = arith.mulf %283, %279 : vector<16x64xf32>
    %285 = arith.select %281, %279, %284 : vector<16x64xi1>, vector<16x64xf32>
    %286 = vector.extract_strided_slice %285 {offsets = [0, 0], sizes = [8, 64], strides = [1, 1]} : vector<16x64xf32> to vector<8x64xf32>
    %c0_251 = arith.constant 0 : index
    %c0_252 = arith.constant 0 : index
    %c0_253 = arith.constant 0 : index
    %287 = vector.load %arg30[%c0_251, %c0_252, %c0_253] : memref<2x8x64xf32, #tpu.memory_space<vmem>>, vector<1x8x64xf32>
    %288 = vector.shape_cast %287 : vector<1x8x64xf32> to vector<8x64xf32>
    %289 = vector.shape_cast %286 : vector<8x64xf32> to vector<1x8x64xf32>
    tpu.vector_store %arg30[%c0_251, %c0_252, %c0_253], %289 {strides = array<i32>} : memref<2x8x64xf32, #tpu.memory_space<vmem>>, vector<1x8x64xf32>,
    %290 = vector.extract_strided_slice %285 {offsets = [8, 0], sizes = [8, 64], strides = [1, 1]} : vector<16x64xf32> to vector<8x64xf32>
    %c1_254 = arith.constant 1 : index
    %c0_255 = arith.constant 0 : index
    %c0_256 = arith.constant 0 : index
    %291 = vector.load %arg30[%c1_254, %c0_255, %c0_256] : memref<2x8x64xf32, #tpu.memory_space<vmem>>, vector<1x8x64xf32>
    %292 = vector.shape_cast %291 : vector<1x8x64xf32> to vector<8x64xf32>
    %293 = vector.shape_cast %290 : vector<8x64xf32> to vector<1x8x64xf32>
    tpu.vector_store %arg30[%c1_254, %c0_255, %c0_256], %293 {strides = array<i32>} : memref<2x8x64xf32, #tpu.memory_space<vmem>>, vector<1x8x64xf32>,
    return
  }
}

</mosaic_0001>

<llo_original>
// kernel: unet_encoder_forward.1
$region0: #{unet_encoder_forward.1}
  #allocation0 [shape = 'u32[]', space=smem, size = 0x4, offset = 0x4, fixed_abs, tag = 'smem constant byte address 0x4 - core index']
  #allocation1 [shape = 'u32[72,128]{1,0:T(1,128)}', space=vmem, size = 0x9000, scoped, tag = 'internal scratch']
  #allocation2 [shape = 'f32[2,9,390]{2,1,0:T(8,128)}', space=vmem, size = 0x10000, scoped, tag = 'scratch operand']
  #allocation3 [shape = 'bf16[16,780]{1,0:T(8,128)(2,1)}', space=vmem, size = 0x7000, scoped, tag = 'scratch operand']
  %s0 = inlined_call_operand.smem [shape: u32[31], index: -1, kind: input, shape index: {}]
  %s1 = sld [smem:[%s0]]
  %s2 = scalar_lea.smem %s0, 1
  %s3 = sld [smem:[%s2]]
  %s4 = scalar_lea.smem %s0, 2
  %s5 = sld [smem:[%s4]]
  %s6 = scalar_lea.smem %s0, 3
  %s7 = sld [smem:[%s6]]
  %s8 = scalar_lea.smem %s0, 4
  %s9 = sld [smem:[%s8]]
  %s10 = scalar_lea.smem %s0, 5
  %s11 = sld [smem:[%s10]]
  %s12 = scalar_lea.smem %s0, 6
  %s13 = sld [smem:[%s12]]
  %s14 = scalar_lea.smem %s0, 7
  %s15 = sld [smem:[%s14]]
  %s16 = scalar_lea.smem %s0, 8
  %s17 = sld [smem:[%s16]]
  %s18 = scalar_lea.smem %s0, 9
  %s19 = sld [smem:[%s18]]
  %s20 = scalar_lea.smem %s0, 10
  %s21 = sld [smem:[%s20]]
  %s22 = scalar_lea.smem %s0, 11
  %s23 = sld [smem:[%s22]]
  %s24 = scalar_lea.smem %s0, 12
  %s25 = sld [smem:[%s24]]
  %s26 = scalar_lea.smem %s0, 13
  %s27 = sld [smem:[%s26]]
  %s28 = scalar_lea.smem %s0, 14
  %s29 = sld [smem:[%s28]]
  %s30 = scalar_lea.smem %s0, 15
  %s31 = sld [smem:[%s30]]
  %s32 = scalar_lea.smem %s0, 16
  %s33 = sld [smem:[%s32]]
  %s34 = scalar_lea.smem %s0, 17
  %s35 = sld [smem:[%s34]]
  %s36 = scalar_lea.smem %s0, 18
  %s37 = sld [smem:[%s36]]
  %s38 = scalar_lea.smem %s0, 19
  %s39 = sld [smem:[%s38]]
  %s40 = scalar_lea.smem %s0, 20
  %s41 = sld [smem:[%s40]]
  %s42 = scalar_lea.smem %s0, 21
  %s43 = sld [smem:[%s42]]
  %s44 = scalar_lea.smem %s0, 22
  %s45 = sld [smem:[%s44]]
  %s46 = scalar_lea.smem %s0, 23
  %s47 = sld [smem:[%s46]]
  %s48 = scalar_lea.smem %s0, 24
  %s49 = sld [smem:[%s48]]
  %s50 = scalar_lea.smem %s0, 25
  %s51 = sld [smem:[%s50]]
  %s52 = scalar_lea.smem %s0, 26
  %s53 = sld [smem:[%s52]]
  %s54 = scalar_lea.smem %s0, 27
  %s55 = sld [smem:[%s54]]
  %s56 = scalar_lea.smem %s0, 28
  %s57 = sld [smem:[%s56]]
  %s58 = scalar_lea.smem %s0, 29
  %s59 = sld [smem:[%s58]]
  %s60 = scalar_lea.smem %s0, 30
  %s61 = sld [smem:[%s60]]
  %62 = xla_tuple %s53, %s55, %s57, %s59, %s61
  %s63 = sld [smem:[#allocation0]]
  $region150: #{unet_encoder_forward.1} parent=0
    _
  %s65 = ssub.s32 1, %s63
  %s66 = scalar_select 0, %s65, %s63
  $region1: #{unet_encoder_forward.1} parent=0
    #allocation4 [shape = 'u8[802816]{0}', space=vmem, size = 0xc4000, scoped, tag = 'input window, operand 1, single buffered']
    #allocation5 [shape = 's32[1]{0}', space=sflag, size = 0x4, scoped, tag = 'scoped memory for unet_encoder_forward.1']
    %67 = vsyncpa [#allocation5], 0
    // Predicated region
    $region2: #{unet_encoder_forward.1} parent=1 // pred_check
      _
    $region3: #{unet_encoder_forward.1} parent=1 // pred_check_branch
      %69 = sbr.rel (0) target = $region5
    $region4: #{unet_encoder_forward.1} parent=1 // pred_region
      _
    $region5: #{unet_encoder_forward.1} parent=1 // pred_fallthru
      _
    // Predicated region
    $region6: #{unet_encoder_forward.1} parent=1 // pred_check
      _
    $region7: #{unet_encoder_forward.1} parent=1 // pred_check_branch
      %71 = sbr.rel (0) target = $region9
    $region8: #{unet_encoder_forward.1} parent=1 // pred_region
      %73 = vsyncadd [#allocation5], 0
      %s74 = sshll.u32 %s3, 4
      %s75 = int_to_ptr.hbm [resolvable:$true] %s74
      %s76 = sshll.u32 [#allocation4], 4
      %s77 = int_to_ptr.vmem [resolvable:$true] %s76
      %82 = dma.hbm_to_vmem [thread:$0]  %s75, 25088, %s77, [#allocation5], 256, 256, 16
    $region9: #{unet_encoder_forward.1} parent=1 // pred_fallthru
      _
    // Predicated region
    $region10: #{unet_encoder_forward.1} parent=1 // pred_check
      _
    $region11: #{unet_encoder_forward.1} parent=1 // pred_check_branch
      %84 = sbr.rel (0) target = $region13
    $region12: #{unet_encoder_forward.1} parent=1 // pred_region
      _
    $region13: #{unet_encoder_forward.1} parent=1 // pred_fallthru
      _
    // Predicated region
    $region14: #{unet_encoder_forward.1} parent=1 // pred_check
      _
    $region15: #{unet_encoder_forward.1} parent=1 // pred_check_branch
      %86 = sbr.rel (0) target = $region17
    $region16: #{unet_encoder_forward.1} parent=1 // pred_region
      _
    $region17: #{unet_encoder_forward.1} parent=1 // pred_fallthru
      _
    // Predicated region
    $region18: #{unet_encoder_forward.1} parent=1 // pred_check
      _
    $region19: #{unet_encoder_forward.1} parent=1 // pred_check_branch
      %88 = sbr.rel (0) target = $region21
    $region20: #{unet_encoder_forward.1} parent=1 // pred_region
      _
    $region21: #{unet_encoder_forward.1} parent=1 // pred_fallthru
      _
    // Predicated region
    $region22: #{unet_encoder_forward.1} parent=1 // pred_check
      _
    $region23: #{unet_encoder_forward.1} parent=1 // pred_check_branch
      %90 = sbr.rel (0) target = $region25
    $region24: #{unet_encoder_forward.1} parent=1 // pred_region
      _
    $region25: #{unet_encoder_forward.1} parent=1 // pred_fallthru
      _
    // Predicated region
    $region26: #{unet_encoder_forward.1} parent=1 // pred_check
      _
    $region27: #{unet_encoder_forward.1} parent=1 // pred_check_branch
      %92 = sbr.rel (0) target = $region29
    $region28: #{unet_encoder_forward.1} parent=1 // pred_region
      _
    $region29: #{unet_encoder_forward.1} parent=1 // pred_fallthru
      _
    // Predicated region
    $region30: #{unet_encoder_forward.1} parent=1 // pred_check
      _
    $region31: #{unet_encoder_forward.1} parent=1 // pred_check_branch
      %94 = sbr.rel (0) target = $region33
    $region32: #{unet_encoder_forward.1} parent=1 // pred_region
      _
    $region33: #{unet_encoder_forward.1} parent=1 // pred_fallthru
      _
    // Predicated region
    $region34: #{unet_encoder_forward.1} parent=1 // pred_check
      _
    $region35: #{unet_encoder_forward.1} parent=1 // pred_check_branch
      %96 = sbr.rel (0) target = $region37
    $region36: #{unet_encoder_forward.1} parent=1 // pred_region
      _
    $region37: #{unet_encoder_forward.1} parent=1 // pred_fallthru
      _
    // Predicated region
    $region38: #{unet_encoder_forward.1} parent=1 // pred_check
      _
    $region39: #{unet_encoder_forward.1} parent=1 // pred_check_branch
      %98 = sbr.rel (0) target = $region41
    $region40: #{unet_encoder_forward.1} parent=1 // pred_region
      _
    $region41: #{unet_encoder_forward.1} parent=1 // pred_fallthru
      _
    // Predicated region
    $region42: #{unet_encoder_forward.1} parent=1 // pred_check
      _
    $region43: #{unet_encoder_forward.1} parent=1 // pred_check_branch
      %100 = sbr.rel (0) target = $region45
    $region44: #{unet_encoder_forward.1} parent=1 // pred_region
      _
    $region45: #{unet_encoder_forward.1} parent=1 // pred_fallthru
      _
    // Predicated region
    $region46: #{unet_encoder_forward.1} parent=1 // pred_check
      _
    $region47: #{unet_encoder_forward.1} parent=1 // pred_check_branch
      %102 = sbr.rel (0) target = $region49
    $region48: #{unet_encoder_forward.1} parent=1 // pred_region
      _
    $region49: #{unet_encoder_forward.1} parent=1 // pred_fallthru
      _
    // Predicated region
    $region50: #{unet_encoder_forward.1} parent=1 // pred_check
      _
    $region51: #{unet_encoder_forward.1} parent=1 // pred_check_branch
      %104 = sbr.rel (0) target = $region53
    $region52: #{unet_encoder_forward.1} parent=1 // pred_region
      _
    $region53: #{unet_encoder_forward.1} parent=1 // pred_fallthru
      _
    // Predicated region
    $region54: #{unet_encoder_forward.1} parent=1 // pred_check
      _
    $region55: #{unet_encoder_forward.1} parent=1 // pred_check_branch
      %106 = sbr.rel (0) target = $region57
    $region56: #{unet_encoder_forward.1} parent=1 // pred_region
      _
    $region57: #{unet_encoder_forward.1} parent=1 // pred_fallthru
      _
    // Predicated region
    $region58: #{unet_encoder_forward.1} parent=1 // pred_check
      _
    $region59: #{unet_encoder_forward.1} parent=1 // pred_check_branch
      %108 = sbr.rel (0) target = $region61
    $region60: #{unet_encoder_forward.1} parent=1 // pred_region
      _
    $region61: #{unet_encoder_forward.1} parent=1 // pred_fallthru
      _
    // Predicated region
    $region62: #{unet_encoder_forward.1} parent=1 // pred_check
      _
    $region63: #{unet_encoder_forward.1} parent=1 // pred_check_branch
      %110 = sbr.rel (0) target = $region65
    $region64: #{unet_encoder_forward.1} parent=1 // pred_region
      _
    $region65: #{unet_encoder_forward.1} parent=1 // pred_fallthru
      _
    // Predicated region
    $region66: #{unet_encoder_forward.1} parent=1 // pred_check
      _
    $region67: #{unet_encoder_forward.1} parent=1 // pred_check_branch
      %112 = sbr.rel (0) target = $region69
    $region68: #{unet_encoder_forward.1} parent=1 // pred_region
      _
    $region69: #{unet_encoder_forward.1} parent=1 // pred_fallthru
      _
    // Predicated region
    $region70: #{unet_encoder_forward.1} parent=1 // pred_check
      _
    $region71: #{unet_encoder_forward.1} parent=1 // pred_check_branch
      %114 = sbr.rel (0) target = $region73
    $region72: #{unet_encoder_forward.1} parent=1 // pred_region
      _
    $region73: #{unet_encoder_forward.1} parent=1 // pred_fallthru
      _
    // Predicated region
    $region74: #{unet_encoder_forward.1} parent=1 // pred_check
      _
    $region75: #{unet_encoder_forward.1} parent=1 // pred_check_branch
      %116 = sbr.rel (0) target = $region77
    $region76: #{unet_encoder_forward.1} parent=1 // pred_region
      _
    $region77: #{unet_encoder_forward.1} parent=1 // pred_fallthru
      _
    // Predicated region
    $region78: #{unet_encoder_forward.1} parent=1 // pred_check
      _
    $region79: #{unet_encoder_forward.1} parent=1 // pred_check_branch
      %118 = sbr.rel (0) target = $region81
    $region80: #{unet_encoder_forward.1} parent=1 // pred_region
      _
    $region81: #{unet_encoder_forward.1} parent=1 // pred_fallthru
      _
    // Predicated region
    $region82: #{unet_encoder_forward.1} parent=1 // pred_check
      _
    $region83: #{unet_encoder_forward.1} parent=1 // pred_check_branch
      %120 = sbr.rel (0) target = $region85
    $region84: #{unet_encoder_forward.1} parent=1 // pred_region
      _
    $region85: #{unet_encoder_forward.1} parent=1 // pred_fallthru
      _
    // Predicated region
    $region86: #{unet_encoder_forward.1} parent=1 // pred_check
      _
    $region87: #{unet_encoder_forward.1} parent=1 // pred_check_branch
      %122 = sbr.rel (0) target = $region89
    $region88: #{unet_encoder_forward.1} parent=1 // pred_region
      _
    $region89: #{unet_encoder_forward.1} parent=1 // pred_fallthru
      _
    // Predicated region
    $region90: #{unet_encoder_forward.1} parent=1 // pred_check
      _
    $region91: #{unet_encoder_forward.1} parent=1 // pred_check_branch
      %124 = sbr.rel (0) target = $region93
    $region92: #{unet_encoder_forward.1} parent=1 // pred_region
      _
    $region93: #{unet_encoder_forward.1} parent=1 // pred_fallthru
      _
    // Predicated region
    $region94: #{unet_encoder_forward.1} parent=1 // pred_check
      _
    $region95: #{unet_encoder_forward.1} parent=1 // pred_check_branch
      %126 = sbr.rel (0) target = $region97
    $region96: #{unet_encoder_forward.1} parent=1 // pred_region
      _
    $region97: #{unet_encoder_forward.1} parent=1 // pred_fallthru
      _
    // Predicated region
    $region98: #{unet_encoder_forward.1} parent=1 // pred_check
      _
    $region99: #{unet_encoder_forward.1} parent=1 // pred_check_branch
      %128 = sbr.rel (0) target = $region101
    $region100: #{unet_encoder_forward.1} parent=1 // pred_region
      _
    $region101: #{unet_encoder_forward.1} parent=1 // pred_fallthru
      _
    // Predicated region
    $region102: #{unet_encoder_forward.1} parent=1 // pred_check
      _
    $region103: #{unet_encoder_forward.1} parent=1 // pred_check_branch
      %130 = sbr.rel (0) target = $region105
    $region104: #{unet_encoder_forward.1} parent=1 // pred_region
      _
    $region105: #{unet_encoder_forward.1} parent=1 // pred_fallthru
      _
    // Predicated region
    $region106: #{unet_encoder_forward.1} parent=1 // pred_check
      _
    $region107: #{unet_encoder_forward.1} parent=1 // pred_check_branch
      %132 = sbr.rel (0) target = $region109
    $region108: #{unet_encoder_forward.1} parent=1 // pred_region
      %134 = dma.done [#allocation5], 25088
    $region109: #{unet_encoder_forward.1} parent=1 // pred_fallthru
      _
    %136 = vst [vmem:[#allocation2] sm:$0xff] 0.0
    %137 = vst [vmem:[#allocation2 + $0x8] sm:$0xff] 0.0
    %138 = vst [vmem:[#allocation2 + $0x10] sm:$0xff] 0.0
    %vm139 = vcmask 48128
    %140 = vst.msk [vmem:[#allocation2 + $0x18] sm:$0xff] %vm139, 0.0
    %141 = vst [vmem:[#allocation2 + $0x20] sm:$0x1] 0.0
    %142 = vst [vmem:[#allocation2 + $0x28] sm:$0x1] 0.0
    %143 = vst [vmem:[#allocation2 + $0x30] sm:$0x1] 0.0
    %vm144 = vcmask 40960
    %145 = vst.msk [vmem:[#allocation2 + $0x38] sm:$0x1] %vm144, 0.0
    %146 = vst [vmem:[#allocation2 + $0x40] sm:$0xff] 0.0
    %147 = vst [vmem:[#allocation2 + $0x48] sm:$0xff] 0.0
    %148 = vst [vmem:[#allocation2 + $0x50] sm:$0xff] 0.0
    %149 = vst.msk [vmem:[#allocation2 + $0x58] sm:$0xff] %vm139, 0.0
    %150 = vst [vmem:[#allocation2 + $0x60] sm:$0x1] 0.0
    %151 = vst [vmem:[#allocation2 + $0x68] sm:$0x1] 0.0
    %152 = vst [vmem:[#allocation2 + $0x70] sm:$0x1] 0.0
    %153 = vst.msk [vmem:[#allocation2 + $0x78] sm:$0x1] %vm144, 0.0
    %v154 = vld [vmem:[%s1] sm:$0xff]
    %v155 = vld [vmem:[%s1 + $0x30] sm:$0xff]
    %v158 = vrot.slane %v154, 7
    %v159 = vrot.slane %v155, 7
    %vm162 = vcmask 531457
    %163 = vst.msk [vmem:[#allocation2] sm:$0xfe] %vm162, %v158
    %vm164 = vcmask 524288
    %165 = vst.msk [vmem:[#allocation2 + $0x20] sm:$0x1] %vm164, %v158
    %166 = vst.msk [vmem:[#allocation2 + $0x40] sm:$0xfe] %vm162, %v159
    %167 = vst.msk [vmem:[#allocation2 + $0x60] sm:$0x1] %vm164, %v159
    %s168 = scalar_lea.vmem %s1, 8
    %v169 = vld [vmem:[%s168] sm:$0xff]
    %v170 = vld [vmem:[%s168 + $0x30] sm:$0xff]
    %v173 = vrot.slane %v169, 7
    %v174 = vrot.slane %v170, 7
    %175 = vrot.lane.b32.xlu0 %v173, 65
    %v176 = vpop.permute.xlu0 %175
    %177 = vrot.lane.b32.xlu0 %v174, 65
    %v178 = vpop.permute.xlu0 %177
    %vm181 = vcmask 1048073
    %182 = vst.msk [vmem:[#allocation2] sm:$0xfe] %vm181, %v176
    %vm183 = vcmask 15361
    %184 = vst.msk [vmem:[#allocation2 + $0x8] sm:$0xfe] %vm183, %v176
    %vm185 = vcmask 1040904
    %186 = vst.msk [vmem:[#allocation2 + $0x20] sm:$0x1] %vm185, %v176
    %vm187 = vcmask 8192
    %188 = vst.msk [vmem:[#allocation2 + $0x28] sm:$0x1] %vm187, %v176
    %189 = vst.msk [vmem:[#allocation2 + $0x40] sm:$0xfe] %vm181, %v178
    %190 = vst.msk [vmem:[#allocation2 + $0x48] sm:$0xfe] %vm183, %v178
    %191 = vst.msk [vmem:[#allocation2 + $0x60] sm:$0x1] %vm185, %v178
    %192 = vst.msk [vmem:[#allocation2 + $0x68] sm:$0x1] %vm187, %v178
    %s193 = scalar_lea.vmem %s1, 16
    %v194 = vld [vmem:[%s193] sm:$0xff]
    %v195 = vld [vmem:[%s193 + $0x30] sm:$0xff]
    %v198 = vrot.slane %v194, 7
    %v199 = vrot.slane %v195, 7
    %200 = vrot.lane.b32.xlu0 %v198, 2
    %v201 = vpop.permute.xlu0 %200
    %202 = vrot.lane.b32.xlu0 %v199, 2
    %v203 = vpop.permute.xlu0 %202
    %vm206 = vcmask 547857
    %207 = vst.msk [vmem:[#allocation2 + $0x8] sm:$0xfe] %vm206, %v201
    %vm208 = vcmask 540688
    %209 = vst.msk [vmem:[#allocation2 + $0x28] sm:$0x1] %vm208, %v201
    %210 = vst.msk [vmem:[#allocation2 + $0x48] sm:$0xfe] %vm206, %v203
    %211 = vst.msk [vmem:[#allocation2 + $0x68] sm:$0x1] %vm208, %v203
    %s212 = scalar_lea.vmem %s1, 24
    %v213 = vld [vmem:[%s212] sm:$0xff]
    %v214 = vld [vmem:[%s212 + $0x30] sm:$0xff]
    %v217 = vrot.slane %v213, 7
    %v218 = vrot.slane %v214, 7
    %219 = vrot.lane.b32.xlu0 %v217, 67
    %v220 = vpop.permute.xlu0 %219
    %221 = vrot.lane.b32.xlu0 %v218, 67
    %v222 = vpop.permute.xlu0 %221
    %vm225 = vcmask 1048089
    %226 = vst.msk [vmem:[#allocation2 + $0x8] sm:$0xfe] %vm225, %v220
    %vm227 = vcmask 31745
    %228 = vst.msk [vmem:[#allocation2 + $0x10] sm:$0xfe] %vm227, %v220
    %vm229 = vcmask 1040920
    %230 = vst.msk [vmem:[#allocation2 + $0x28] sm:$0x1] %vm229, %v220
    %vm231 = vcmask 24576
    %232 = vst.msk [vmem:[#allocation2 + $0x30] sm:$0x1] %vm231, %v220
    %233 = vst.msk [vmem:[#allocation2 + $0x48] sm:$0xfe] %vm225, %v222
    %234 = vst.msk [vmem:[#allocation2 + $0x50] sm:$0xfe] %vm227, %v222
    %235 = vst.msk [vmem:[#allocation2 + $0x68] sm:$0x1] %vm229, %v222
    %236 = vst.msk [vmem:[#allocation2 + $0x70] sm:$0x1] %vm231, %v222
    %s237 = scalar_lea.vmem %s1, 32
    %v238 = vld [vmem:[%s237] sm:$0xff]
    %v239 = vld [vmem:[%s237 + $0x30] sm:$0xff]
    %v242 = vrot.slane %v238, 7
    %v243 = vrot.slane %v239, 7
    %244 = vrot.lane.b32.xlu0 %v242, 4
    %v245 = vpop.permute.xlu0 %244
    %246 = vrot.lane.b32.xlu0 %v243, 4
    %v247 = vpop.permute.xlu0 %246
    %vm250 = vcmask 564257
    %251 = vst.msk [vmem:[#allocation2 + $0x10] sm:$0xfe] %vm250, %v245
    %vm252 = vcmask 557088
    %253 = vst.msk [vmem:[#allocation2 + $0x30] sm:$0x1] %vm252, %v245
    %254 = vst.msk [vmem:[#allocation2 + $0x50] sm:$0xfe] %vm250, %v247
    %255 = vst.msk [vmem:[#allocation2 + $0x70] sm:$0x1] %vm252, %v247
    %s256 = scalar_lea.vmem %s1, 40
    %v257 = vld [vmem:[%s256] sm:$0xff]
    %v258 = vld [vmem:[%s256 + $0x30] sm:$0xff]
    %v261 = vrot.slane %v257, 7
    %v262 = vrot.slane %v258, 7
    %263 = vrot.lane.b32.xlu0 %v261, 69
    %v264 = vpop.permute.xlu0 %263
    %265 = vrot.lane.b32.xlu0 %v262, 69
    %v266 = vpop.permute.xlu0 %265
    %vm269 = vcmask 1048105
    %270 = vst.msk [vmem:[#allocation2 + $0x10] sm:$0xfe] %vm269, %v264
    %vm271 = vcmask 48129
    %272 = vst.msk [vmem:[#allocation2 + $0x18] sm:$0xfe] %vm271, %v264
    %vm273 = vcmask 1040936
    %274 = vst.msk [vmem:[#allocation2 + $0x30] sm:$0x1] %vm273, %v264
    %275 = vst.msk [vmem:[#allocation2 + $0x38] sm:$0x1] %vm144, %v264
    %276 = vst.msk [vmem:[#allocation2 + $0x50] sm:$0xfe] %vm269, %v266
    %277 = vst.msk [vmem:[#allocation2 + $0x58] sm:$0xfe] %vm271, %v266
    %278 = vst.msk [vmem:[#allocation2 + $0x70] sm:$0x1] %vm273, %v266
    %279 = vst.msk [vmem:[#allocation2 + $0x78] sm:$0x1] %vm144, %v266
    %v280 = vld [vmem:[#allocation2] sm:$0xff]
    %v281 = vld [vmem:[#allocation2 + $0x8] sm:$0xff]
    %v282 = vld [vmem:[#allocation2 + $0x10] sm:$0xff]
    %v283 = vld [vmem:[#allocation2 + $0x18] sm:$0xff]
    %v284 = vpack.c.bf16 %v281, %v280
    %v285 = vpack.c.bf16 %v283, %v282
    %286 = vst [vmem:[#allocation3] sm:$0xff] %v284
    %vm287 = vcmask 1043456
    %vm288 = vcmask 48132
    %vm289 = vmor %vm288, %vm287
    %290 = vst.msk [vmem:[#allocation3 + $0x8] sm:$0xff] %vm289, %v285
    %v291 = vld [vmem:[#allocation2] sm:$0xfe]
    %v292 = vld [vmem:[#allocation2 + $0x8] sm:$0xfe]
    %v293 = vld [vmem:[#allocation2 + $0x10] sm:$0xfe]
    %v294 = vld [vmem:[#allocation2 + $0x18] sm:$0xfe]
    %v295 = vld [vmem:[#allocation2 + $0x20] sm:$0x1]
    %v296 = vld [vmem:[#allocation2 + $0x28] sm:$0x1]
    %v297 = vld [vmem:[#allocation2 + $0x30] sm:$0x1]
    %v298 = vld [vmem:[#allocation2 + $0x38] sm:$0x1]
    %v299 = vpack.c.bf16 %v292, %v291
    %v300 = vpack.c.bf16 %v294, %v293
    %v301 = vpack.c.bf16 %v296, %v295
    %v302 = vpack.c.bf16 %v298, %v297
    %vm303 = vsmask.f32 3328
    %vm304 = vsmask.f32 7440
    %vm305 = vmor %vm303, %vm304
    %v307 = vshrl.u32 %v299, 16
    %v309 = vrot.slane %v307, 4
    %v310 = vshll.u32 %v299, 16
    %v312 = vrot.slane %v310, 5
    %v313 = vor.u32 %v309, %v312
    %v314 = vrot.slane %v313, 4
    %v316 = vshll.u32 %v301, 16
    %v318 = vrot.slane %v316, 5
    %v319 = vsel %vm305, %v314, %v318
    %v321 = vshrl.u32 %v300, 16
    %v323 = vrot.slane %v321, 4
    %v324 = vshll.u32 %v300, 16
    %v326 = vrot.slane %v324, 5
    %v327 = vor.u32 %v323, %v326
    %v328 = vrot.slane %v327, 4
    %v330 = vshll.u32 %v302, 16
    %v332 = vrot.slane %v330, 5
    %v333 = vsel %vm305, %v328, %v332
    %334 = vrot.lane.b32.xlu0 %v319, 6
    %v335 = vpop.permute.xlu0 %334
    %336 = vrot.lane.b32.xlu0 %v333, 6
    %v337 = vpop.permute.xlu0 %336
    %v338 = vrot.slane %v335, 4
    %v339 = vrot.slane %v337, 4
    %vm340 = vcmask 48128
    %v341 = vsel %vm340, %v338, %v335
    %vm342 = vcmask 1043456
    %v343 = vsel %vm342, %v338, %v339
    %v344 = vsel %vm340, %v343, %v337
    %vm347 = vcmask 1043504
    %vm348 = vcmask 1047556
    %vm349 = vmor %vm348, %vm347
    %350 = vst.msk [vmem:[#allocation3 + $0xc] sm:$0xff] %vm349, %v341
    %vm351 = vcmask 97284
    %vm352 = vmor %vm351, %vm287
    %353 = vst.msk [vmem:[#allocation3 + $0x14] sm:$0xff] %vm352, %v344
    %s354 = scalar_lea.vmem [#allocation2], 64
    %v355 = vld [vmem:[%s354] sm:$0xff]
    %v356 = vld [vmem:[%s354 + $0x8] sm:$0xff]
    %v357 = vld [vmem:[%s354 + $0x10] sm:$0xff]
    %v358 = vld [vmem:[%s354 + $0x18] sm:$0xff]
    %v359 = vpack.c.bf16 %v356, %v355
    %v360 = vpack.c.bf16 %v358, %v357
    %361 = vst [vmem:[#allocation3 + $0x1c] sm:$0xff] %v359
    %362 = vst.msk [vmem:[#allocation3 + $0x24] sm:$0xff] %vm289, %v360
    %v363 = vld [vmem:[%s354] sm:$0xfe]
    %v364 = vld [vmem:[%s354 + $0x8] sm:$0xfe]
    %v365 = vld [vmem:[%s354 + $0x10] sm:$0xfe]
    %v366 = vld [vmem:[%s354 + $0x18] sm:$0xfe]
    %v367 = vld [vmem:[%s354 + $0x20] sm:$0x1]
    %v368 = vld [vmem:[%s354 + $0x28] sm:$0x1]
    %v369 = vld [vmem:[%s354 + $0x30] sm:$0x1]
    %v370 = vld [vmem:[%s354 + $0x38] sm:$0x1]
    %v371 = vpack.c.bf16 %v364, %v363
    %v372 = vpack.c.bf16 %v366, %v365
    %v373 = vpack.c.bf16 %v368, %v367
    %v374 = vpack.c.bf16 %v370, %v369
    %v376 = vshrl.u32 %v371, 16
    %v378 = vrot.slane %v376, 4
    %v379 = vshll.u32 %v371, 16
    %v381 = vrot.slane %v379, 5
    %v382 = vor.u32 %v378, %v381
    %v383 = vrot.slane %v382, 4
    %v385 = vshll.u32 %v373, 16
    %v387 = vrot.slane %v385, 5
    %v388 = vsel %vm305, %v383, %v387
    %v390 = vshrl.u32 %v372, 16
    %v392 = vrot.slane %v390, 4
    %v393 = vshll.u32 %v372, 16
    %v395 = vrot.slane %v393, 5
    %v396 = vor.u32 %v392, %v395
    %v397 = vrot.slane %v396, 4
    %v399 = vshll.u32 %v374, 16
    %v401 = vrot.slane %v399, 5
    %v402 = vsel %vm305, %v397, %v401
    %403 = vrot.lane.b32.xlu0 %v388, 6
    %v404 = vpop.permute.xlu0 %403
    %405 = vrot.lane.b32.xlu0 %v402, 6
    %v406 = vpop.permute.xlu0 %405
    %v407 = vrot.slane %v404, 4
    %v408 = vrot.slane %v406, 4
    %v409 = vsel %vm340, %v407, %v404
    %v410 = vsel %vm342, %v407, %v408
    %v411 = vsel %vm340, %v410, %v406
    %414 = vst.msk [vmem:[#allocation3 + $0x28] sm:$0xff] %vm349, %v409
    %415 = vst.msk [vmem:[#allocation3 + $0x30] sm:$0xff] %vm352, %v411
    %v416 = vld [vmem:[#allocation3] sm:$0xff]
    %v417 = vld [vmem:[#allocation3 + $0x8] sm:$0xff]
    %v418 = vld [vmem:[#allocation3 + $0x10] sm:$0xff]
    %v419 = vld [vmem:[#allocation3 + $0x18] sm:$0xf]
    %v420 = vld [vmem:[#allocation3 + $0x1c] sm:$0xff]
    %v421 = vld [vmem:[#allocation3 + $0x24] sm:$0xff]
    %v422 = vld [vmem:[#allocation3 + $0x2c] sm:$0xff]
    %v423 = vld [vmem:[#allocation3 + $0x34] sm:$0xf]
    %v424 = vld [vmem:[#allocation4] sm:$0xff]
    %v425 = vld [vmem:[#allocation4 + $0x8] sm:$0xff]
    %v426 = vld [vmem:[#allocation4 + $0x10] sm:$0xff]
    %v427 = vld [vmem:[#allocation4 + $0x18] sm:$0xff]
    %v428 = vld [vmem:[#allocation4 + $0x20] sm:$0xff]
    %v429 = vld [vmem:[#allocation4 + $0x28] sm:$0xff]
    %v430 = vld [vmem:[#allocation4 + $0x30] sm:$0xff]
    %v431 = vld [vmem:[#allocation4 + $0x38] sm:$0xff]
    %v432 = vld [vmem:[#allocation4 + $0x40] sm:$0xff]
    %v433 = vld [vmem:[#allocation4 + $0x48] sm:$0xff]
    %v434 = vld [vmem:[#allocation4 + $0x50] sm:$0xff]
    %v435 = vld [vmem:[#allocation4 + $0x58] sm:$0xff]
    %v436 = vld [vmem:[#allocation4 + $0x60] sm:$0xff]
    %v437 = vld [vmem:[#allocation4 + $0x68] sm:$0xff]
    %v438 = vld [vmem:[#allocation4 + $0x70] sm:$0xff]
    %v439 = vld [vmem:[#allocation4 + $0x78] sm:$0xff]
    %v440 = vld [vmem:[#allocation4 + $0x80] sm:$0xff]
    %v441 = vld [vmem:[#allocation4 + $0x88] sm:$0xff]
    %v442 = vld [vmem:[#allocation4 + $0x90] sm:$0xff]
    %v443 = vld [vmem:[#allocation4 + $0x98] sm:$0xff]
    %v444 = vld [vmem:[#allocation4 + $0xa0] sm:$0xff]
    %v445 = vld [vmem:[#allocation4 + $0xa8] sm:$0xff]
    %v446 = vld [vmem:[#allocation4 + $0xb0] sm:$0xff]
    %v447 = vld [vmem:[#allocation4 + $0xb8] sm:$0xff]
    %v448 = vld [vmem:[#allocation4 + $0xc0] sm:$0xff]
    %v449 = vld [vmem:[#allocation4 + $0xc8] sm:$0xff]
    %v450 = vld [vmem:[#allocation4 + $0xd0] sm:$0xff]
    %v451 = vld [vmem:[#allocation4 + $0xd8] sm:$0xff]
    %v452 = vld [vmem:[#allocation4 + $0xe0] sm:$0xff]
    %v453 = vld [vmem:[#allocation4 + $0xe8] sm:$0xff]
    %v454 = vld [vmem:[#allocation4 + $0xf0] sm:$0xff]
    %v455 = vld [vmem:[#allocation4 + $0xf8] sm:$0xff]
    %v456 = vld [vmem:[#allocation4 + $0x100] sm:$0xff]
    %v457 = vld [vmem:[#allocation4 + $0x108] sm:$0xff]
    %v458 = vld [vmem:[#allocation4 + $0x110] sm:$0xff]
    %v459 = vld [vmem:[#allocation4 + $0x118] sm:$0xff]
    %v460 = vld [vmem:[#allocation4 + $0x120] sm:$0xff]
    %v461 = vld [vmem:[#allocation4 + $0x128] sm:$0xff]
    %v462 = vld [vmem:[#allocation4 + $0x130] sm:$0xff]
    %v463 = vld [vmem:[#allocation4 + $0x138] sm:$0xff]
    %v464 = vld [vmem:[#allocation4 + $0x140] sm:$0xff]
    %v465 = vld [vmem:[#allocation4 + $0x148] sm:$0xff]
    %v466 = vld [vmem:[#allocation4 + $0x150] sm:$0xff]
    %v467 = vld [vmem:[#allocation4 + $0x158] sm:$0xff]
    %v468 = vld [vmem:[#allocation4 + $0x160] sm:$0xff]
    %v469 = vld [vmem:[#allocation4 + $0x168] sm:$0xff]
    %v470 = vld [vmem:[#allocation4 + $0x170] sm:$0xff]
    %v471 = vld [vmem:[#allocation4 + $0x178] sm:$0xff]
    %v472 = vld [vmem:[#allocation4 + $0x180] sm:$0xff]
    %v473 = vld [vmem:[#allocation4 + $0x188] sm:$0xff]
    %v474 = vld [vmem:[#allocation4 + $0x190] sm:$0xff]
    %v475 = vld [vmem:[#allocation4 + $0x198] sm:$0xff]
    %v476 = vld [vmem:[#allocation4 + $0x1a0] sm:$0xff]
    %v477 = vld [vmem:[#allocation4 + $0x1a8] sm:$0xff]
    %v478 = vld [vmem:[#allocation4 + $0x1b0] sm:$0xff]
    %v479 = vld [vmem:[#allocation4 + $0x1b8] sm:$0xff]
    %v480 = vld [vmem:[#allocation4 + $0x1c0] sm:$0xff]
    %v481 = vld [vmem:[#allocation4 + $0x1c8] sm:$0xff]
    %v482 = vld [vmem:[#allocation4 + $0x1d0] sm:$0xff]
    %v483 = vld [vmem:[#allocation4 + $0x1d8] sm:$0xff]
    %v484 = vld [vmem:[#allocation4 + $0x1e0] sm:$0xff]
    %v485 = vld [vmem:[#allocation4 + $0x1e8] sm:$0xff]
    %v486 = vld [vmem:[#allocation4 + $0x1f0] sm:$0xff]
    %v487 = vld [vmem:[#allocation4 + $0x1f8] sm:$0xff]
    %v488 = vld [vmem:[#allocation4 + $0x200] sm:$0xff]
    %v489 = vld [vmem:[#allocation4 + $0x208] sm:$0xff]
    %v490 = vld [vmem:[#allocation4 + $0x210] sm:$0xff]
    %v491 = vld [vmem:[#allocation4 + $0x218] sm:$0xff]
    %v492 = vld [vmem:[#allocation4 + $0x220] sm:$0xff]
    %v493 = vld [vmem:[#allocation4 + $0x228] sm:$0xff]
    %v494 = vld [vmem:[#allocation4 + $0x230] sm:$0xff]
    %v495 = vld [vmem:[#allocation4 + $0x238] sm:$0xff]
    %v496 = vld [vmem:[#allocation4 + $0x240] sm:$0xff]
    %v497 = vld [vmem:[#allocation4 + $0x248] sm:$0xff]
    %v498 = vld [vmem:[#allocation4 + $0x250] sm:$0xff]
    %v499 = vld [vmem:[#allocation4 + $0x258] sm:$0xff]
    %v500 = vld [vmem:[#allocation4 + $0x260] sm:$0xff]
    %v501 = vld [vmem:[#allocation4 + $0x268] sm:$0xff]
    %v502 = vld [vmem:[#allocation4 + $0x270] sm:$0xff]
    %v503 = vld [vmem:[#allocation4 + $0x278] sm:$0xff]
    %v504 = vld [vmem:[#allocation4 + $0x280] sm:$0xff]
    %v505 = vld [vmem:[#allocation4 + $0x288] sm:$0xff]
    %v506 = vld [vmem:[#allocation4 + $0x290] sm:$0xff]
    %v507 = vld [vmem:[#allocation4 + $0x298] sm:$0xff]
    %v508 = vld [vmem:[#allocation4 + $0x2a0] sm:$0xff]
    %v509 = vld [vmem:[#allocation4 + $0x2a8] sm:$0xff]
    %v510 = vld [vmem:[#allocation4 + $0x2b0] sm:$0xff]
    %v511 = vld [vmem:[#allocation4 + $0x2b8] sm:$0xff]
    %v512 = vld [vmem:[#allocation4 + $0x2c0] sm:$0xff]
    %v513 = vld [vmem:[#allocation4 + $0x2c8] sm:$0xff]
    %v514 = vld [vmem:[#allocation4 + $0x2d0] sm:$0xff]
    %v515 = vld [vmem:[#allocation4 + $0x2d8] sm:$0xff]
    %v516 = vld [vmem:[#allocation4 + $0x2e0] sm:$0xff]
    %v517 = vld [vmem:[#allocation4 + $0x2e8] sm:$0xff]
    %v518 = vld [vmem:[#allocation4 + $0x2f0] sm:$0xff]
    %v519 = vld [vmem:[#allocation4 + $0x2f8] sm:$0xff]
    %v520 = vld [vmem:[#allocation4 + $0x300] sm:$0xff]
    %v521 = vld [vmem:[#allocation4 + $0x308] sm:$0xff]
    %v522 = vld [vmem:[#allocation4 + $0x310] sm:$0xff]
    %v523 = vld [vmem:[#allocation4 + $0x318] sm:$0xff]
    %v524 = vld [vmem:[#allocation4 + $0x320] sm:$0xff]
    %v525 = vld [vmem:[#allocation4 + $0x328] sm:$0xff]
    %v526 = vld [vmem:[#allocation4 + $0x330] sm:$0xff]
    %v527 = vld [vmem:[#allocation4 + $0x338] sm:$0xff]
    %v528 = vld [vmem:[#allocation4 + $0x340] sm:$0xff]
    %v529 = vld [vmem:[#allocation4 + $0x348] sm:$0xff]
    %v530 = vld [vmem:[#allocation4 + $0x350] sm:$0xff]
    %v531 = vld [vmem:[#allocation4 + $0x358] sm:$0xff]
    %v532 = vld [vmem:[#allocation4 + $0x360] sm:$0xff]
    %v533 = vld [vmem:[#allocation4 + $0x368] sm:$0xff]
    %v534 = vld [vmem:[#allocation4 + $0x370] sm:$0xff]
    %v535 = vld [vmem:[#allocation4 + $0x378] sm:$0xff]
    %v536 = vld [vmem:[#allocation4 + $0x380] sm:$0xff]
    %v537 = vld [vmem:[#allocation4 + $0x388] sm:$0xff]
    %v538 = vld [vmem:[#allocation4 + $0x390] sm:$0xff]
    %v539 = vld [vmem:[#allocation4 + $0x398] sm:$0xff]
    %v540 = vld [vmem:[#allocation4 + $0x3a0] sm:$0xff]
    %v541 = vld [vmem:[#allocation4 + $0x3a8] sm:$0xff]
    %v542 = vld [vmem:[#allocation4 + $0x3b0] sm:$0xff]
    %v543 = vld [vmem:[#allocation4 + $0x3b8] sm:$0xff]
    %v544 = vld [vmem:[#allocation4 + $0x3c0] sm:$0xff]
    %v545 = vld [vmem:[#allocation4 + $0x3c8] sm:$0xff]
    %v546 = vld [vmem:[#allocation4 + $0x3d0] sm:$0xff]
    %v547 = vld [vmem:[#allocation4 + $0x3d8] sm:$0xff]
    %v548 = vld [vmem:[#allocation4 + $0x3e0] sm:$0xff]
    %v549 = vld [vmem:[#allocation4 + $0x3e8] sm:$0xff]
    %v550 = vld [vmem:[#allocation4 + $0x3f0] sm:$0xff]
    %v551 = vld [vmem:[#allocation4 + $0x3f8] sm:$0xff]
    %v552 = vld [vmem:[#allocation4 + $0x400] sm:$0xff]
    %v553 = vld [vmem:[#allocation4 + $0x408] sm:$0xff]
    %v554 = vld [vmem:[#allocation4 + $0x410] sm:$0xff]
    %v555 = vld [vmem:[#allocation4 + $0x418] sm:$0xff]
    %v556 = vld [vmem:[#allocation4 + $0x420] sm:$0xff]
    %v557 = vld [vmem:[#allocation4 + $0x428] sm:$0xff]
    %v558 = vld [vmem:[#allocation4 + $0x430] sm:$0xff]
    %v559 = vld [vmem:[#allocation4 + $0x438] sm:$0xff]
    %v560 = vld [vmem:[#allocation4 + $0x440] sm:$0xff]
    %v561 = vld [vmem:[#allocation4 + $0x448] sm:$0xff]
    %v562 = vld [vmem:[#allocation4 + $0x450] sm:$0xff]
    %v563 = vld [vmem:[#allocation4 + $0x458] sm:$0xff]
    %v564 = vld [vmem:[#allocation4 + $0x460] sm:$0xff]
    %v565 = vld [vmem:[#allocation4 + $0x468] sm:$0xff]
    %v566 = vld [vmem:[#allocation4 + $0x470] sm:$0xff]
    %v567 = vld [vmem:[#allocation4 + $0x478] sm:$0xff]
    %v568 = vld [vmem:[#allocation4 + $0x480] sm:$0xff]
    %v569 = vld [vmem:[#allocation4 + $0x488] sm:$0xff]
    %v570 = vld [vmem:[#allocation4 + $0x490] sm:$0xff]
    %v571 = vld [vmem:[#allocation4 + $0x498] sm:$0xff]
    %v572 = vld [vmem:[#allocation4 + $0x4a0] sm:$0xff]
    %v573 = vld [vmem:[#allocation4 + $0x4a8] sm:$0xff]
    %v574 = vld [vmem:[#allocation4 + $0x4b0] sm:$0xff]
    %v575 = vld [vmem:[#allocation4 + $0x4b8] sm:$0xff]
    %v576 = vld [vmem:[#allocation4 + $0x4c0] sm:$0xff]
    %v577 = vld [vmem:[#allocation4 + $0x4c8] sm:$0xff]
    %v578 = vld [vmem:[#allocation4 + $0x4d0] sm:$0xff]
    %v579 = vld [vmem:[#allocation4 + $0x4d8] sm:$0xff]
    %v580 = vld [vmem:[#allocation4 + $0x4e0] sm:$0xff]
    %v581 = vld [vmem:[#allocation4 + $0x4e8] sm:$0xff]
    %v582 = vld [vmem:[#allocation4 + $0x4f0] sm:$0xff]
    %v583 = vld [vmem:[#allocation4 + $0x4f8] sm:$0xff]
    %v584 = vld [vmem:[#allocation4 + $0x500] sm:$0xff]
    %v585 = vld [vmem:[#allocation4 + $0x508] sm:$0xff]
    %v586 = vld [vmem:[#allocation4 + $0x510] sm:$0xff]
    %v587 = vld [vmem:[#allocation4 + $0x518] sm:$0xff]
    %v588 = vld [vmem:[#allocation4 + $0x520] sm:$0xff]
    %v589 = vld [vmem:[#allocation4 + $0x528] sm:$0xff]
    %v590 = vld [vmem:[#allocation4 + $0x530] sm:$0xff]
    %v591 = vld [vmem:[#allocation4 + $0x538] sm:$0xff]
    %v592 = vld [vmem:[#allocation4 + $0x540] sm:$0xff]
    %v593 = vld [vmem:[#allocation4 + $0x548] sm:$0xff]
    %v594 = vld [vmem:[#allocation4 + $0x550] sm:$0xff]
    %v595 = vld [vmem:[#allocation4 + $0x558] sm:$0xff]
    %v596 = vld [vmem:[#allocation4 + $0x560] sm:$0xff]
    %v597 = vld [vmem:[#allocation4 + $0x568] sm:$0xff]
    %v598 = vld [vmem:[#allocation4 + $0x570] sm:$0xff]
    %v599 = vld [vmem:[#allocation4 + $0x578] sm:$0xff]
    %v600 = vld [vmem:[#allocation4 + $0x580] sm:$0xff]
    %v601 = vld [vmem:[#allocation4 + $0x588] sm:$0xff]
    %v602 = vld [vmem:[#allocation4 + $0x590] sm:$0xff]
    %v603 = vld [vmem:[#allocation4 + $0x598] sm:$0xff]
    %v604 = vld [vmem:[#allocation4 + $0x5a0] sm:$0xff]
    %v605 = vld [vmem:[#allocation4 + $0x5a8] sm:$0xff]
    %v606 = vld [vmem:[#allocation4 + $0x5b0] sm:$0xff]
    %v607 = vld [vmem:[#allocation4 + $0x5b8] sm:$0xff]
    %v608 = vld [vmem:[#allocation4 + $0x5c0] sm:$0xff]
    %v609 = vld [vmem:[#allocation4 + $0x5c8] sm:$0xff]
    %v610 = vld [vmem:[#allocation4 + $0x5d0] sm:$0xff]
    %v611 = vld [vmem:[#allocation4 + $0x5d8] sm:$0xff]
    %v612 = vld [vmem:[#allocation4 + $0x5e0] sm:$0xff]
    %v613 = vld [vmem:[#allocation4 + $0x5e8] sm:$0xff]
    %v614 = vld [vmem:[#allocation4 + $0x5f0] sm:$0xff]
    %v615 = vld [vmem:[#allocation4 + $0x5f8] sm:$0xff]
    %v616 = vld [vmem:[#allocation4 + $0x600] sm:$0xff]
    %v617 = vld [vmem:[#allocation4 + $0x608] sm:$0xff]
    %v618 = vld [vmem:[#allocation4 + $0x610] sm:$0x33]
    %v619 = vld [vmem:[#allocation4 + $0x618] sm:$0x33]
    %v620 = vld [vmem:[%s5] sm:$0xf]
    %v622 = vperm.slane %v620, 0
    %v623 = vperm.slane %v620, 1
    %v624 = vperm.slane %v620, 2
    %v625 = vperm.slane %v620, 3
    %v638 = vunpack.c.l.b16 %v416
    %v639 = vunpack.c.h.b16 %v416
    %v640 = vunpack.c.l.b16 %v417
    %v641 = vunpack.c.h.b16 %v417
    %v642 = vunpack.c.l.b16 %v418
    %v643 = vunpack.c.h.b16 %v418
    %v644 = vunpack.c.l.b16 %v419
    %v645 = vunpack.c.l.b16 %v420
    %v646 = vunpack.c.h.b16 %v420
    %v647 = vunpack.c.l.b16 %v421
    %v648 = vunpack.c.h.b16 %v421
    %v649 = vunpack.c.l.b16 %v422
    %v650 = vunpack.c.h.b16 %v422
    %v651 = vunpack.c.l.b16 %v423
    %v652 = vpack.c.b16 %v645, %v638
    %v653 = vpack.c.b16 %v646, %v639
    %v654 = vpack.c.b16 %v647, %v640
    %v655 = vpack.c.b16 %v648, %v641
    %v656 = vpack.c.b16 %v649, %v642
    %v657 = vpack.c.b16 %v650, %v643
    %v658 = vpack.c.b16 %v651, %v644
    %v861 = vunpack.c.l.b16 %v424
    %v862 = vunpack.c.h.b16 %v424
    %v863 = vunpack.c.l.b16 %v425
    %v864 = vunpack.c.h.b16 %v425
    %v865 = vunpack.c.l.b16 %v426
    %v866 = vunpack.c.h.b16 %v426
    %v867 = vunpack.c.l.b16 %v427
    %v868 = vunpack.c.h.b16 %v427
    %v869 = vunpack.c.l.b16 %v428
    %v870 = vunpack.c.h.b16 %v428
    %v871 = vunpack.c.l.b16 %v429
    %v872 = vunpack.c.h.b16 %v429
    %v873 = vunpack.c.l.b16 %v430
    %v874 = vunpack.c.h.b16 %v430
    %v875 = vunpack.c.l.b16 %v431
    %v876 = vunpack.c.h.b16 %v431
    %v877 = vunpack.c.l.b16 %v432
    %v878 = vunpack.c.h.b16 %v432
    %v879 = vunpack.c.l.b16 %v433
    %v880 = vunpack.c.h.b16 %v433
    %v881 = vunpack.c.l.b16 %v434
    %v882 = vunpack.c.h.b16 %v434
    %v883 = vunpack.c.l.b16 %v435
    %v884 = vunpack.c.h.b16 %v435
    %v885 = vunpack.c.l.b16 %v436
    %v886 = vunpack.c.h.b16 %v436
    %v887 = vunpack.c.l.b16 %v437
    %v888 = vunpack.c.h.b16 %v437
    %v889 = vunpack.c.l.b16 %v438
    %v890 = vunpack.c.h.b16 %v438
    %v891 = vunpack.c.l.b16 %v439
    %v892 = vunpack.c.h.b16 %v439
    %v893 = vunpack.c.l.b16 %v440
    %v894 = vunpack.c.h.b16 %v440
    %v895 = vunpack.c.l.b16 %v441
    %v896 = vunpack.c.h.b16 %v441
    %v897 = vunpack.c.l.b16 %v442
    %v898 = vunpack.c.h.b16 %v442
    %v899 = vunpack.c.l.b16 %v443
    %v900 = vunpack.c.h.b16 %v443
    %v901 = vunpack.c.l.b16 %v444
    %v902 = vunpack.c.h.b16 %v444
    %v903 = vunpack.c.l.b16 %v445
    %v904 = vunpack.c.h.b16 %v445
    %v905 = vunpack.c.l.b16 %v446
    %v906 = vunpack.c.h.b16 %v446
    %v907 = vunpack.c.l.b16 %v447
    %v908 = vunpack.c.h.b16 %v447
    %v909 = vunpack.c.l.b16 %v448
    %v910 = vunpack.c.h.b16 %v448
    %v911 = vunpack.c.l.b16 %v449
    %v912 = vunpack.c.h.b16 %v449
    %v913 = vunpack.c.l.b16 %v450
    %v914 = vunpack.c.h.b16 %v450
    %v915 = vunpack.c.l.b16 %v451
    %v916 = vunpack.c.h.b16 %v451
    %v917 = vunpack.c.l.b16 %v452
    %v918 = vunpack.c.h.b16 %v452
    %v919 = vunpack.c.l.b16 %v453
    %v920 = vunpack.c.h.b16 %v453
    %v921 = vunpack.c.l.b16 %v454
    %v922 = vunpack.c.h.b16 %v454
    %v923 = vunpack.c.l.b16 %v455
    %v924 = vunpack.c.h.b16 %v455
    %v925 = vunpack.c.l.b16 %v456
    %v926 = vunpack.c.h.b16 %v456
    %v927 = vunpack.c.l.b16 %v457
    %v928 = vunpack.c.h.b16 %v457
    %v929 = vunpack.c.l.b16 %v458
    %v930 = vunpack.c.h.b16 %v458
    %v931 = vunpack.c.l.b16 %v459
    %v932 = vunpack.c.h.b16 %v459
    %v933 = vunpack.c.l.b16 %v460
    %v934 = vunpack.c.h.b16 %v460
    %v935 = vunpack.c.l.b16 %v461
    %v936 = vunpack.c.h.b16 %v461
    %v937 = vunpack.c.l.b16 %v462
    %v938 = vunpack.c.h.b16 %v462
    %v939 = vunpack.c.l.b16 %v463
    %v940 = vunpack.c.h.b16 %v463
    %v941 = vunpack.c.l.b16 %v464
    %v942 = vunpack.c.h.b16 %v464
    %v943 = vunpack.c.l.b16 %v465
    %v944 = vunpack.c.h.b16 %v465
    %v945 = vunpack.c.l.b16 %v466
    %v946 = vunpack.c.h.b16 %v466
    %v947 = vunpack.c.l.b16 %v467
    %v948 = vunpack.c.h.b16 %v467
    %v949 = vunpack.c.l.b16 %v468
    %v950 = vunpack.c.h.b16 %v468
    %v951 = vunpack.c.l.b16 %v469
    %v952 = vunpack.c.h.b16 %v469
    %v953 = vunpack.c.l.b16 %v470
    %v954 = vunpack.c.h.b16 %v470
    %v955 = vunpack.c.l.b16 %v471
    %v956 = vunpack.c.h.b16 %v471
    %v957 = vunpack.c.l.b16 %v472
    %v958 = vunpack.c.h.b16 %v472
    %v959 = vunpack.c.l.b16 %v473
    %v960 = vunpack.c.h.b16 %v473
    %v961 = vunpack.c.l.b16 %v474
    %v962 = vunpack.c.h.b16 %v474
    %v963 = vunpack.c.l.b16 %v475
    %v964 = vunpack.c.h.b16 %v475
    %v965 = vunpack.c.l.b16 %v476
    %v966 = vunpack.c.h.b16 %v476
    %v967 = vunpack.c.l.b16 %v477
    %v968 = vunpack.c.h.b16 %v477
    %v969 = vunpack.c.l.b16 %v478
    %v970 = vunpack.c.h.b16 %v478
    %v971 = vunpack.c.l.b16 %v479
    %v972 = vunpack.c.h.b16 %v479
    %v973 = vunpack.c.l.b16 %v480
    %v974 = vunpack.c.h.b16 %v480
    %v975 = vunpack.c.l.b16 %v481
    %v976 = vunpack.c.h.b16 %v481
    %v977 = vunpack.c.l.b16 %v482
    %v978 = vunpack.c.h.b16 %v482
    %v979 = vunpack.c.l.b16 %v483
    %v980 = vunpack.c.h.b16 %v483
    %v981 = vunpack.c.l.b16 %v484
    %v982 = vunpack.c.h.b16 %v484
    %v983 = vunpack.c.l.b16 %v485
    %v984 = vunpack.c.h.b16 %v485
    %v985 = vunpack.c.l.b16 %v486
    %v986 = vunpack.c.h.b16 %v486
    %v987 = vunpack.c.l.b16 %v487
    %v988 = vunpack.c.h.b16 %v487
    %v989 = vunpack.c.l.b16 %v488
    %v990 = vunpack.c.h.b16 %v488
    %v991 = vunpack.c.l.b16 %v489
    %v992 = vunpack.c.h.b16 %v489
    %v993 = vunpack.c.l.b16 %v490
    %v994 = vunpack.c.h.b16 %v490
    %v995 = vunpack.c.l.b16 %v491
    %v996 = vunpack.c.h.b16 %v491
    %v997 = vunpack.c.l.b16 %v492
    %v998 = vunpack.c.h.b16 %v492
    %v999 = vunpack.c.l.b16 %v493
    %v1000 = vunpack.c.h.b16 %v493
    %v1001 = vunpack.c.l.b16 %v494
    %v1002 = vunpack.c.h.b16 %v494
    %v1003 = vunpack.c.l.b16 %v495
    %v1004 = vunpack.c.h.b16 %v495
    %v1005 = vunpack.c.l.b16 %v496
    %v1006 = vunpack.c.h.b16 %v496
    %v1007 = vunpack.c.l.b16 %v497
    %v1008 = vunpack.c.h.b16 %v497
    %v1009 = vunpack.c.l.b16 %v498
    %v1010 = vunpack.c.h.b16 %v498
    %v1011 = vunpack.c.l.b16 %v499
    %v1012 = vunpack.c.h.b16 %v499
    %v1013 = vunpack.c.l.b16 %v500
    %v1014 = vunpack.c.h.b16 %v500
    %v1015 = vunpack.c.l.b16 %v501
    %v1016 = vunpack.c.h.b16 %v501
    %v1017 = vunpack.c.l.b16 %v502
    %v1018 = vunpack.c.h.b16 %v502
    %v1019 = vunpack.c.l.b16 %v503
    %v1020 = vunpack.c.h.b16 %v503
    %v1021 = vunpack.c.l.b16 %v504
    %v1022 = vunpack.c.h.b16 %v504
    %v1023 = vunpack.c.l.b16 %v505
    %v1024 = vunpack.c.h.b16 %v505
    %v1025 = vunpack.c.l.b16 %v506
    %v1026 = vunpack.c.h.b16 %v506
    %v1027 = vunpack.c.l.b16 %v507
    %v1028 = vunpack.c.h.b16 %v507
    %v1029 = vunpack.c.l.b16 %v508
    %v1030 = vunpack.c.h.b16 %v508
    %v1031 = vunpack.c.l.b16 %v509
    %v1032 = vunpack.c.h.b16 %v509
    %v1033 = vunpack.c.l.b16 %v510
    %v1034 = vunpack.c.h.b16 %v510
    %v1035 = vunpack.c.l.b16 %v511
    %v1036 = vunpack.c.h.b16 %v511
    %v1037 = vunpack.c.l.b16 %v512
    %v1038 = vunpack.c.h.b16 %v512
    %v1039 = vunpack.c.l.b16 %v513
    %v1040 = vunpack.c.h.b16 %v513
    %v1041 = vunpack.c.l.b16 %v514
    %v1042 = vunpack.c.h.b16 %v514
    %v1043 = vunpack.c.l.b16 %v515
    %v1044 = vunpack.c.h.b16 %v515
    %v1045 = vunpack.c.l.b16 %v516
    %v1046 = vunpack.c.h.b16 %v516
    %v1047 = vunpack.c.l.b16 %v517
    %v1048 = vunpack.c.h.b16 %v517
    %v1049 = vunpack.c.l.b16 %v518
    %v1050 = vunpack.c.h.b16 %v518
    %v1051 = vunpack.c.l.b16 %v519
    %v1052 = vunpack.c.h.b16 %v519
    %v1053 = vunpack.c.l.b16 %v520
    %v1054 = vunpack.c.h.b16 %v520
    %v1055 = vunpack.c.l.b16 %v521
    %v1056 = vunpack.c.h.b16 %v521
    %v1057 = vunpack.c.l.b16 %v522
    %v1058 = vunpack.c.h.b16 %v522
    %v1059 = vunpack.c.l.b16 %v523
    %v1060 = vunpack.c.h.b16 %v523
    %v1061 = vunpack.c.l.b16 %v524
    %v1062 = vunpack.c.h.b16 %v524
    %v1063 = vunpack.c.l.b16 %v525
    %v1064 = vunpack.c.h.b16 %v525
    %v1065 = vunpack.c.l.b16 %v526
    %v1066 = vunpack.c.h.b16 %v526
    %v1067 = vunpack.c.l.b16 %v527
    %v1068 = vunpack.c.h.b16 %v527
    %v1069 = vunpack.c.l.b16 %v528
    %v1070 = vunpack.c.h.b16 %v528
    %v1071 = vunpack.c.l.b16 %v529
    %v1072 = vunpack.c.h.b16 %v529
    %v1073 = vunpack.c.l.b16 %v530
    %v1074 = vunpack.c.h.b16 %v530
    %v1075 = vunpack.c.l.b16 %v531
    %v1076 = vunpack.c.h.b16 %v531
    %v1077 = vunpack.c.l.b16 %v532
    %v1078 = vunpack.c.h.b16 %v532
    %v1079 = vunpack.c.l.b16 %v533
    %v1080 = vunpack.c.h.b16 %v533
    %v1081 = vunpack.c.l.b16 %v534
    %v1082 = vunpack.c.h.b16 %v534
    %v1083 = vunpack.c.l.b16 %v535
    %v1084 = vunpack.c.h.b16 %v535
    %v1085 = vunpack.c.l.b16 %v536
    %v1086 = vunpack.c.h.b16 %v536
    %v1087 = vunpack.c.l.b16 %v537
    %v1088 = vunpack.c.h.b16 %v537
    %v1089 = vunpack.c.l.b16 %v538
    %v1090 = vunpack.c.h.b16 %v538
    %v1091 = vunpack.c.l.b16 %v539
    %v1092 = vunpack.c.h.b16 %v539
    %v1093 = vunpack.c.l.b16 %v540
    %v1094 = vunpack.c.h.b16 %v540
    %v1095 = vunpack.c.l.b16 %v541
    %v1096 = vunpack.c.h.b16 %v541
    %v1097 = vunpack.c.l.b16 %v542
    %v1098 = vunpack.c.h.b16 %v542
    %v1099 = vunpack.c.l.b16 %v543
    %v1100 = vunpack.c.h.b16 %v543
    %v1101 = vunpack.c.l.b16 %v544
    %v1102 = vunpack.c.h.b16 %v544
    %v1103 = vunpack.c.l.b16 %v545
    %v1104 = vunpack.c.h.b16 %v545
    %v1105 = vunpack.c.l.b16 %v546
    %v1106 = vunpack.c.h.b16 %v546
    %v1107 = vunpack.c.l.b16 %v547
    %v1108 = vunpack.c.h.b16 %v547
    %v1109 = vunpack.c.l.b16 %v548
    %v1110 = vunpack.c.h.b16 %v548
    %v1111 = vunpack.c.l.b16 %v549
    %v1112 = vunpack.c.h.b16 %v549
    %v1113 = vunpack.c.l.b16 %v550
    %v1114 = vunpack.c.h.b16 %v550
    %v1115 = vunpack.c.l.b16 %v551
    %v1116 = vunpack.c.h.b16 %v551
    %v1117 = vunpack.c.l.b16 %v552
    %v1118 = vunpack.c.h.b16 %v552
    %v1119 = vunpack.c.l.b16 %v553
    %v1120 = vunpack.c.h.b16 %v553
    %v1121 = vunpack.c.l.b16 %v554
    %v1122 = vunpack.c.h.b16 %v554
    %v1123 = vunpack.c.l.b16 %v555
    %v1124 = vunpack.c.h.b16 %v555
    %v1125 = vunpack.c.l.b16 %v556
    %v1126 = vunpack.c.h.b16 %v556
    %v1127 = vunpack.c.l.b16 %v557
    %v1128 = vunpack.c.h.b16 %v557
    %v1129 = vunpack.c.l.b16 %v558
    %v1130 = vunpack.c.h.b16 %v558
    %v1131 = vunpack.c.l.b16 %v559
    %v1132 = vunpack.c.h.b16 %v559
    %v1133 = vunpack.c.l.b16 %v560
    %v1134 = vunpack.c.h.b16 %v560
    %v1135 = vunpack.c.l.b16 %v561
    %v1136 = vunpack.c.h.b16 %v561
    %v1137 = vunpack.c.l.b16 %v562
    %v1138 = vunpack.c.h.b16 %v562
    %v1139 = vunpack.c.l.b16 %v563
    %v1140 = vunpack.c.h.b16 %v563
    %v1141 = vunpack.c.l.b16 %v564
    %v1142 = vunpack.c.h.b16 %v564
    %v1143 = vunpack.c.l.b16 %v565
    %v1144 = vunpack.c.h.b16 %v565
    %v1145 = vunpack.c.l.b16 %v566
    %v1146 = vunpack.c.h.b16 %v566
    %v1147 = vunpack.c.l.b16 %v567
    %v1148 = vunpack.c.h.b16 %v567
    %v1149 = vunpack.c.l.b16 %v568
    %v1150 = vunpack.c.h.b16 %v568
    %v1151 = vunpack.c.l.b16 %v569
    %v1152 = vunpack.c.h.b16 %v569
    %v1153 = vunpack.c.l.b16 %v570
    %v1154 = vunpack.c.h.b16 %v570
    %v1155 = vunpack.c.l.b16 %v571
    %v1156 = vunpack.c.h.b16 %v571
    %v1157 = vunpack.c.l.b16 %v572
    %v1158 = vunpack.c.h.b16 %v572
    %v1159 = vunpack.c.l.b16 %v573
    %v1160 = vunpack.c.h.b16 %v573
    %v1161 = vunpack.c.l.b16 %v574
    %v1162 = vunpack.c.h.b16 %v574
    %v1163 = vunpack.c.l.b16 %v575
    %v1164 = vunpack.c.h.b16 %v575
    %v1165 = vunpack.c.l.b16 %v576
    %v1166 = vunpack.c.h.b16 %v576
    %v1167 = vunpack.c.l.b16 %v577
    %v1168 = vunpack.c.h.b16 %v577
    %v1169 = vunpack.c.l.b16 %v578
    %v1170 = vunpack.c.h.b16 %v578
    %v1171 = vunpack.c.l.b16 %v579
    %v1172 = vunpack.c.h.b16 %v579
    %v1173 = vunpack.c.l.b16 %v580
    %v1174 = vunpack.c.h.b16 %v580
    %v1175 = vunpack.c.l.b16 %v581
    %v1176 = vunpack.c.h.b16 %v581
    %v1177 = vunpack.c.l.b16 %v582
    %v1178 = vunpack.c.h.b16 %v582
    %v1179 = vunpack.c.l.b16 %v583
    %v1180 = vunpack.c.h.b16 %v583
    %v1181 = vunpack.c.l.b16 %v584
    %v1182 = vunpack.c.h.b16 %v584
    %v1183 = vunpack.c.l.b16 %v585
    %v1184 = vunpack.c.h.b16 %v585
    %v1185 = vunpack.c.l.b16 %v586
    %v1186 = vunpack.c.h.b16 %v586
    %v1187 = vunpack.c.l.b16 %v587
    %v1188 = vunpack.c.h.b16 %v587
    %v1189 = vunpack.c.l.b16 %v588
    %v1190 = vunpack.c.h.b16 %v588
    %v1191 = vunpack.c.l.b16 %v589
    %v1192 = vunpack.c.h.b16 %v589
    %v1193 = vunpack.c.l.b16 %v590
    %v1194 = vunpack.c.h.b16 %v590
    %v1195 = vunpack.c.l.b16 %v591
    %v1196 = vunpack.c.h.b16 %v591
    %v1197 = vunpack.c.l.b16 %v592
    %v1198 = vunpack.c.h.b16 %v592
    %v1199 = vunpack.c.l.b16 %v593
    %v1200 = vunpack.c.h.b16 %v593
    %v1201 = vunpack.c.l.b16 %v594
    %v1202 = vunpack.c.h.b16 %v594
    %v1203 = vunpack.c.l.b16 %v595
    %v1204 = vunpack.c.h.b16 %v595
    %v1205 = vunpack.c.l.b16 %v596
    %v1206 = vunpack.c.h.b16 %v596
    %v1207 = vunpack.c.l.b16 %v597
    %v1208 = vunpack.c.h.b16 %v597
    %v1209 = vunpack.c.l.b16 %v598
    %v1210 = vunpack.c.h.b16 %v598
    %v1211 = vunpack.c.l.b16 %v599
    %v1212 = vunpack.c.h.b16 %v599
    %v1213 = vunpack.c.l.b16 %v600
    %v1214 = vunpack.c.h.b16 %v600
    %v1215 = vunpack.c.l.b16 %v601
    %v1216 = vunpack.c.h.b16 %v601
    %v1217 = vunpack.c.l.b16 %v602
    %v1218 = vunpack.c.h.b16 %v602
    %v1219 = vunpack.c.l.b16 %v603
    %v1220 = vunpack.c.h.b16 %v603
    %v1221 = vunpack.c.l.b16 %v604
    %v1222 = vunpack.c.h.b16 %v604
    %v1223 = vunpack.c.l.b16 %v605
    %v1224 = vunpack.c.h.b16 %v605
    %v1225 = vunpack.c.l.b16 %v606
    %v1226 = vunpack.c.h.b16 %v606
    %v1227 = vunpack.c.l.b16 %v607
    %v1228 = vunpack.c.h.b16 %v607
    %v1229 = vunpack.c.l.b16 %v608
    %v1230 = vunpack.c.h.b16 %v608
    %v1231 = vunpack.c.l.b16 %v609
    %v1232 = vunpack.c.h.b16 %v609
    %v1233 = vunpack.c.l.b16 %v610
    %v1234 = vunpack.c.h.b16 %v610
    %v1235 = vunpack.c.l.b16 %v611
    %v1236 = vunpack.c.h.b16 %v611
    %v1237 = vunpack.c.l.b16 %v612
    %v1238 = vunpack.c.h.b16 %v612
    %v1239 = vunpack.c.l.b16 %v613
    %v1240 = vunpack.c.h.b16 %v613
    %v1241 = vunpack.c.l.b16 %v614
    %v1242 = vunpack.c.h.b16 %v614
    %v1243 = vunpack.c.l.b16 %v615
    %v1244 = vunpack.c.h.b16 %v615
    %v1245 = vunpack.c.l.b16 %v616
    %v1246 = vunpack.c.h.b16 %v616
    %v1247 = vunpack.c.l.b16 %v617
    %v1248 = vunpack.c.h.b16 %v617
    %v1249 = vunpack.c.l.b16 %v618
    %v1250 = vunpack.c.h.b16 %v618
    %v1251 = vunpack.c.l.b16 %v619
    %v1252 = vunpack.c.h.b16 %v619
    %v1253 = vpack.c.b16 %v865, %v861
    %v1254 = vpack.c.b16 %v866, %v862
    %v1255 = vpack.c.b16 %v867, %v863
    %v1256 = vpack.c.b16 %v868, %v864
    %v1257 = vpack.c.b16 %v873, %v869
    %v1258 = vpack.c.b16 %v874, %v870
    %v1259 = vpack.c.b16 %v875, %v871
    %v1260 = vpack.c.b16 %v876, %v872
    %v1261 = vpack.c.b16 %v881, %v877
    %v1262 = vpack.c.b16 %v882, %v878
    %v1263 = vpack.c.b16 %v883, %v879
    %v1264 = vpack.c.b16 %v884, %v880
    %v1265 = vpack.c.b16 %v889, %v885
    %v1266 = vpack.c.b16 %v890, %v886
    %v1267 = vpack.c.b16 %v891, %v887
    %v1268 = vpack.c.b16 %v892, %v888
    %v1269 = vpack.c.b16 %v897, %v893
    %v1270 = vpack.c.b16 %v898, %v894
    %v1271 = vpack.c.b16 %v899, %v895
    %v1272 = vpack.c.b16 %v900, %v896
    %v1273 = vpack.c.b16 %v905, %v901
    %v1274 = vpack.c.b16 %v906, %v902
    %v1275 = vpack.c.b16 %v907, %v903
    %v1276 = vpack.c.b16 %v908, %v904
    %v1277 = vpack.c.b16 %v913, %v909
    %v1278 = vpack.c.b16 %v914, %v910
    %v1279 = vpack.c.b16 %v915, %v911
    %v1280 = vpack.c.b16 %v916, %v912
    %v1281 = vpack.c.b16 %v921, %v917
    %v1282 = vpack.c.b16 %v922, %v918
    %v1283 = vpack.c.b16 %v923, %v919
    %v1284 = vpack.c.b16 %v924, %v920
    %v1285 = vpack.c.b16 %v929, %v925
    %v1286 = vpack.c.b16 %v930, %v926
    %v1287 = vpack.c.b16 %v931, %v927
    %v1288 = vpack.c.b16 %v932, %v928
    %v1289 = vpack.c.b16 %v937, %v933
    %v1290 = vpack.c.b16 %v938, %v934
    %v1291 = vpack.c.b16 %v939, %v935
    %v1292 = vpack.c.b16 %v940, %v936
    %v1293 = vpack.c.b16 %v945, %v941
    %v1294 = vpack.c.b16 %v946, %v942
    %v1295 = vpack.c.b16 %v947, %v943
    %v1296 = vpack.c.b16 %v948, %v944
    %v1297 = vpack.c.b16 %v953, %v949
    %v1298 = vpack.c.b16 %v954, %v950
    %v1299 = vpack.c.b16 %v955, %v951
    %v1300 = vpack.c.b16 %v956, %v952
    %v1301 = vpack.c.b16 %v961, %v957
    %v1302 = vpack.c.b16 %v962, %v958
    %v1303 = vpack.c.b16 %v963, %v959
    %v1304 = vpack.c.b16 %v964, %v960
    %v1305 = vpack.c.b16 %v969, %v965
    %v1306 = vpack.c.b16 %v970, %v966
    %v1307 = vpack.c.b16 %v971, %v967
    %v1308 = vpack.c.b16 %v972, %v968
    %v1309 = vpack.c.b16 %v977, %v973
    %v1310 = vpack.c.b16 %v978, %v974
    %v1311 = vpack.c.b16 %v979, %v975
    %v1312 = vpack.c.b16 %v980, %v976
    %v1313 = vpack.c.b16 %v985, %v981
    %v1314 = vpack.c.b16 %v986, %v982
    %v1315 = vpack.c.b16 %v987, %v983
    %v1316 = vpack.c.b16 %v988, %v984
    %v1317 = vpack.c.b16 %v993, %v989
    %v1318 = vpack.c.b16 %v994, %v990
    %v1319 = vpack.c.b16 %v995, %v991
    %v1320 = vpack.c.b16 %v996, %v992
    %v1321 = vpack.c.b16 %v1001, %v997
    %v1322 = vpack.c.b16 %v1002, %v998
    %v1323 = vpack.c.b16 %v1003, %v999
    %v1324 = vpack.c.b16 %v1004, %v1000
    %v1325 = vpack.c.b16 %v1009, %v1005
    %v1326 = vpack.c.b16 %v1010, %v1006
    %v1327 = vpack.c.b16 %v1011, %v1007
    %v1328 = vpack.c.b16 %v1012, %v1008
    %v1329 = vpack.c.b16 %v1017, %v1013
    %v1330 = vpack.c.b16 %v1018, %v1014
    %v1331 = vpack.c.b16 %v1019, %v1015
    %v1332 = vpack.c.b16 %v1020, %v1016
    %v1333 = vpack.c.b16 %v1025, %v1021
    %v1334 = vpack.c.b16 %v1026, %v1022
    %v1335 = vpack.c.b16 %v1027, %v1023
    %v1336 = vpack.c.b16 %v1028, %v1024
    %v1337 = vpack.c.b16 %v1033, %v1029
    %v1338 = vpack.c.b16 %v1034, %v1030
    %v1339 = vpack.c.b16 %v1035, %v1031
    %v1340 = vpack.c.b16 %v1036, %v1032
    %v1341 = vpack.c.b16 %v1041, %v1037
    %v1342 = vpack.c.b16 %v1042, %v1038
    %v1343 = vpack.c.b16 %v1043, %v1039
    %v1344 = vpack.c.b16 %v1044, %v1040
    %v1345 = vpack.c.b16 %v1049, %v1045
    %v1346 = vpack.c.b16 %v1050, %v1046
    %v1347 = vpack.c.b16 %v1051, %v1047
    %v1348 = vpack.c.b16 %v1052, %v1048
    %v1349 = vpack.c.b16 %v1057, %v1053
    %v1350 = vpack.c.b16 %v1058, %v1054
    %v1351 = vpack.c.b16 %v1059, %v1055
    %v1352 = vpack.c.b16 %v1060, %v1056
    %v1353 = vpack.c.b16 %v1065, %v1061
    %v1354 = vpack.c.b16 %v1066, %v1062
    %v1355 = vpack.c.b16 %v1067, %v1063
    %v1356 = vpack.c.b16 %v1068, %v1064
    %v1357 = vpack.c.b16 %v1073, %v1069
    %v1358 = vpack.c.b16 %v1074, %v1070
    %v1359 = vpack.c.b16 %v1075, %v1071
    %v1360 = vpack.c.b16 %v1076, %v1072
    %v1361 = vpack.c.b16 %v1081, %v1077
    %v1362 = vpack.c.b16 %v1082, %v1078
    %v1363 = vpack.c.b16 %v1083, %v1079
    %v1364 = vpack.c.b16 %v1084, %v1080
    %v1365 = vpack.c.b16 %v1089, %v1085
    %v1366 = vpack.c.b16 %v1090, %v1086
    %v1367 = vpack.c.b16 %v1091, %v1087
    %v1368 = vpack.c.b16 %v1092, %v1088
    %v1369 = vpack.c.b16 %v1097, %v1093
    %v1370 = vpack.c.b16 %v1098, %v1094
    %v1371 = vpack.c.b16 %v1099, %v1095
    %v1372 = vpack.c.b16 %v1100, %v1096
    %v1373 = vpack.c.b16 %v1105, %v1101
    %v1374 = vpack.c.b16 %v1106, %v1102
    %v1375 = vpack.c.b16 %v1107, %v1103
    %v1376 = vpack.c.b16 %v1108, %v1104
    %v1377 = vpack.c.b16 %v1113, %v1109
    %v1378 = vpack.c.b16 %v1114, %v1110
    %v1379 = vpack.c.b16 %v1115, %v1111
    %v1380 = vpack.c.b16 %v1116, %v1112
    %v1381 = vpack.c.b16 %v1121, %v1117
    %v1382 = vpack.c.b16 %v1122, %v1118
    %v1383 = vpack.c.b16 %v1123, %v1119
    %v1384 = vpack.c.b16 %v1124, %v1120
    %v1385 = vpack.c.b16 %v1129, %v1125
    %v1386 = vpack.c.b16 %v1130, %v1126
    %v1387 = vpack.c.b16 %v1131, %v1127
    %v1388 = vpack.c.b16 %v1132, %v1128
    %v1389 = vpack.c.b16 %v1137, %v1133
    %v1390 = vpack.c.b16 %v1138, %v1134
    %v1391 = vpack.c.b16 %v1139, %v1135
    %v1392 = vpack.c.b16 %v1140, %v1136
    %v1393 = vpack.c.b16 %v1145, %v1141
    %v1394 = vpack.c.b16 %v1146, %v1142
    %v1395 = vpack.c.b16 %v1147, %v1143
    %v1396 = vpack.c.b16 %v1148, %v1144
    %v1397 = vpack.c.b16 %v1153, %v1149
    %v1398 = vpack.c.b16 %v1154, %v1150
    %v1399 = vpack.c.b16 %v1155, %v1151
    %v1400 = vpack.c.b16 %v1156, %v1152
    %v1401 = vpack.c.b16 %v1161, %v1157
    %v1402 = vpack.c.b16 %v1162, %v1158
    %v1403 = vpack.c.b16 %v1163, %v1159
    %v1404 = vpack.c.b16 %v1164, %v1160
    %v1405 = vpack.c.b16 %v1169, %v1165
    %v1406 = vpack.c.b16 %v1170, %v1166
    %v1407 = vpack.c.b16 %v1171, %v1167
    %v1408 = vpack.c.b16 %v1172, %v1168
    %v1409 = vpack.c.b16 %v1177, %v1173
    %v1410 = vpack.c.b16 %v1178, %v1174
    %v1411 = vpack.c.b16 %v1179, %v1175
    %v1412 = vpack.c.b16 %v1180, %v1176
    %v1413 = vpack.c.b16 %v1185, %v1181
    %v1414 = vpack.c.b16 %v1186, %v1182
    %v1415 = vpack.c.b16 %v1187, %v1183
    %v1416 = vpack.c.b16 %v1188, %v1184
    %v1417 = vpack.c.b16 %v1193, %v1189
    %v1418 = vpack.c.b16 %v1194, %v1190
    %v1419 = vpack.c.b16 %v1195, %v1191
    %v1420 = vpack.c.b16 %v1196, %v1192
    %v1421 = vpack.c.b16 %v1201, %v1197
    %v1422 = vpack.c.b16 %v1202, %v1198
    %v1423 = vpack.c.b16 %v1203, %v1199
    %v1424 = vpack.c.b16 %v1204, %v1200
    %v1425 = vpack.c.b16 %v1209, %v1205
    %v1426 = vpack.c.b16 %v1210, %v1206
    %v1427 = vpack.c.b16 %v1211, %v1207
    %v1428 = vpack.c.b16 %v1212, %v1208
    %v1429 = vpack.c.b16 %v1217, %v1213
    %v1430 = vpack.c.b16 %v1218, %v1214
    %v1431 = vpack.c.b16 %v1219, %v1215
    %v1432 = vpack.c.b16 %v1220, %v1216
    %v1433 = vpack.c.b16 %v1225, %v1221
    %v1434 = vpack.c.b16 %v1226, %v1222
    %v1435 = vpack.c.b16 %v1227, %v1223
    %v1436 = vpack.c.b16 %v1228, %v1224
    %v1437 = vpack.c.b16 %v1233, %v1229
    %v1438 = vpack.c.b16 %v1234, %v1230
    %v1439 = vpack.c.b16 %v1235, %v1231
    %v1440 = vpack.c.b16 %v1236, %v1232
    %v1441 = vpack.c.b16 %v1241, %v1237
    %v1442 = vpack.c.b16 %v1242, %v1238
    %v1443 = vpack.c.b16 %v1243, %v1239
    %v1444 = vpack.c.b16 %v1244, %v1240
    %v1445 = vpack.c.b16 %v1249, %v1245
    %v1446 = vpack.c.b16 %v1250, %v1246
    %v1447 = vpack.c.b16 %v1251, %v1247
    %v1448 = vpack.c.b16 %v1252, %v1248
    %vm1641 = vcmask 97280
    %v1643 = vsel %vm1641, %v658, 0
    %vm1645 = vcmask 1045504
    %v1647 = vsel %vm1645, %v1445, 0
    %v1650 = vsel %vm1645, %v1446, 0
    %v1653 = vsel %vm1645, %v1447, 0
    %v1656 = vsel %vm1645, %v1448, 0
    %1658 = vmatpush.bf16.msra.mxu0 %v1281
    %1659 = vmatpush.bf16.msra.mxu0 %v1277
    %1660 = vmatpush.bf16.msra.mxu0 %v1273
    %1661 = vmatpush.bf16.msra.mxu0 %v1269
    %1662 = vmatpush.bf16.msra.mxu0 %v1265
    %1663 = vmatpush.bf16.msra.mxu0 %v1261
    %1664 = vmatpush.bf16.msra.mxu0 %v1257
    %1665 = vmatpush.bf16.msra.mxu0 %v1253
    %1666 = vmatmul.bf16.gmra.mxu0 %v652
    %v1667 = vpop.f32.mrf.mxu0
    %v1668 = vadd.f32 %v622, %v1667
    %v1669 = vpop.f32.mrf.mxu0
    %v1670 = vadd.f32 %v622, %v1669
    %1671 = vdwg.mxu0
    %1672 = vmatpush.bf16.msra.mxu0 %v1313
    %1673 = vmatpush.bf16.msra.mxu0 %v1309
    %1674 = vmatpush.bf16.msra.mxu0 %v1305
    %1675 = vmatpush.bf16.msra.mxu0 %v1301
    %1676 = vmatpush.bf16.msra.mxu0 %v1297
    %1677 = vmatpush.bf16.msra.mxu0 %v1293
    %1678 = vmatpush.bf16.msra.mxu0 %v1289
    %1679 = vmatpush.bf16.msra.mxu0 %v1285
    %1680 = vmatmul.bf16.gmra.mxu0 %v653
    %v1681 = vpop.f32.mrf.mxu0
    %v1682 = vadd.f32 %v1668, %v1681
    %v1683 = vpop.f32.mrf.mxu0
    %v1684 = vadd.f32 %v1670, %v1683
    %1685 = vdwg.mxu0
    %1686 = vmatpush.bf16.msra.mxu0 %v1345
    %1687 = vmatpush.bf16.msra.mxu0 %v1341
    %1688 = vmatpush.bf16.msra.mxu0 %v1337
    %1689 = vmatpush.bf16.msra.mxu0 %v1333
    %1690 = vmatpush.bf16.msra.mxu0 %v1329
    %1691 = vmatpush.bf16.msra.mxu0 %v1325
    %1692 = vmatpush.bf16.msra.mxu0 %v1321
    %1693 = vmatpush.bf16.msra.mxu0 %v1317
    %1694 = vmatmul.bf16.gmra.mxu0 %v654
    %v1695 = vpop.f32.mrf.mxu0
    %v1696 = vadd.f32 %v1682, %v1695
    %v1697 = vpop.f32.mrf.mxu0
    %v1698 = vadd.f32 %v1684, %v1697
    %1699 = vdwg.mxu0
    %1700 = vmatpush.bf16.msra.mxu0 %v1377
    %1701 = vmatpush.bf16.msra.mxu0 %v1373
    %1702 = vmatpush.bf16.msra.mxu0 %v1369
    %1703 = vmatpush.bf16.msra.mxu0 %v1365
    %1704 = vmatpush.bf16.msra.mxu0 %v1361
    %1705 = vmatpush.bf16.msra.mxu0 %v1357
    %1706 = vmatpush.bf16.msra.mxu0 %v1353
    %1707 = vmatpush.bf16.msra.mxu0 %v1349
    %1708 = vmatmul.bf16.gmra.mxu0 %v655
    %v1709 = vpop.f32.mrf.mxu0
    %v1710 = vadd.f32 %v1696, %v1709
    %v1711 = vpop.f32.mrf.mxu0
    %v1712 = vadd.f32 %v1698, %v1711
    %1713 = vdwg.mxu0
    %1714 = vmatpush.bf16.msra.mxu0 %v1409
    %1715 = vmatpush.bf16.msra.mxu0 %v1405
    %1716 = vmatpush.bf16.msra.mxu0 %v1401
    %1717 = vmatpush.bf16.msra.mxu0 %v1397
    %1718 = vmatpush.bf16.msra.mxu0 %v1393
    %1719 = vmatpush.bf16.msra.mxu0 %v1389
    %1720 = vmatpush.bf16.msra.mxu0 %v1385
    %1721 = vmatpush.bf16.msra.mxu0 %v1381
    %1722 = vmatmul.bf16.gmra.mxu0 %v656
    %v1723 = vpop.f32.mrf.mxu0
    %v1724 = vadd.f32 %v1710, %v1723
    %v1725 = vpop.f32.mrf.mxu0
    %v1726 = vadd.f32 %v1712, %v1725
    %1727 = vdwg.mxu0
    %1728 = vmatpush.bf16.msra.mxu0 %v1441
    %1729 = vmatpush.bf16.msra.mxu0 %v1437
    %1730 = vmatpush.bf16.msra.mxu0 %v1433
    %1731 = vmatpush.bf16.msra.mxu0 %v1429
    %1732 = vmatpush.bf16.msra.mxu0 %v1425
    %1733 = vmatpush.bf16.msra.mxu0 %v1421
    %1734 = vmatpush.bf16.msra.mxu0 %v1417
    %1735 = vmatpush.bf16.msra.mxu0 %v1413
    %1736 = vmatmul.bf16.gmra.mxu0 %v657
    %v1737 = vpop.f32.mrf.mxu0
    %v1738 = vadd.f32 %v1724, %v1737
    %v1739 = vpop.f32.mrf.mxu0
    %v1740 = vadd.f32 %v1726, %v1739
    %1741 = vdwg.mxu0
    %1742 = vmatpush.bf16.msra.mxu0 0
    %1743 = vmatpush.bf16.msra.mxu0 0
    %1744 = vmatpush.bf16.msra.mxu0 0
    %1745 = vmatpush.bf16.msra.mxu0 0
    %1746 = vmatpush.bf16.msra.mxu0 0
    %1747 = vmatpush.bf16.msra.mxu0 0
    %1748 = vmatpush.bf16.msra.mxu0 0
    %1749 = vmatpush.bf16.msra.mxu0 %v1647
    %1750 = vmatmul.bf16.gmra.mxu0 %v1643
    %v1751 = vpop.f32.mrf.mxu0
    %v1752 = vadd.f32 %v1738, %v1751
    %v1753 = vpop.f32.mrf.mxu0
    %v1754 = vadd.f32 %v1740, %v1753
    %1755 = vdwg.mxu0
    %1756 = vmatpush.bf16.msra.mxu0 %v1282
    %1757 = vmatpush.bf16.msra.mxu0 %v1278
    %1758 = vmatpush.bf16.msra.mxu0 %v1274
    %1759 = vmatpush.bf16.msra.mxu0 %v1270
    %1760 = vmatpush.bf16.msra.mxu0 %v1266
    %1761 = vmatpush.bf16.msra.mxu0 %v1262
    %1762 = vmatpush.bf16.msra.mxu0 %v1258
    %1763 = vmatpush.bf16.msra.mxu0 %v1254
    %1764 = vmatmul.bf16.gmra.mxu0 %v652
    %v1765 = vpop.f32.mrf.mxu0
    %v1766 = vadd.f32 %v623, %v1765
    %v1767 = vpop.f32.mrf.mxu0
    %v1768 = vadd.f32 %v623, %v1767
    %1769 = vdwg.mxu0
    %1770 = vmatpush.bf16.msra.mxu0 %v1314
    %1771 = vmatpush.bf16.msra.mxu0 %v1310
    %1772 = vmatpush.bf16.msra.mxu0 %v1306
    %1773 = vmatpush.bf16.msra.mxu0 %v1302
    %1774 = vmatpush.bf16.msra.mxu0 %v1298
    %1775 = vmatpush.bf16.msra.mxu0 %v1294
    %1776 = vmatpush.bf16.msra.mxu0 %v1290
    %1777 = vmatpush.bf16.msra.mxu0 %v1286
    %1778 = vmatmul.bf16.gmra.mxu0 %v653
    %v1779 = vpop.f32.mrf.mxu0
    %v1780 = vadd.f32 %v1766, %v1779
    %v1781 = vpop.f32.mrf.mxu0
    %v1782 = vadd.f32 %v1768, %v1781
    %1783 = vdwg.mxu0
    %1784 = vmatpush.bf16.msra.mxu0 %v1346
    %1785 = vmatpush.bf16.msra.mxu0 %v1342
    %1786 = vmatpush.bf16.msra.mxu0 %v1338
    %1787 = vmatpush.bf16.msra.mxu0 %v1334
    %1788 = vmatpush.bf16.msra.mxu0 %v1330
    %1789 = vmatpush.bf16.msra.mxu0 %v1326
    %1790 = vmatpush.bf16.msra.mxu0 %v1322
    %1791 = vmatpush.bf16.msra.mxu0 %v1318
    %1792 = vmatmul.bf16.gmra.mxu0 %v654
    %v1793 = vpop.f32.mrf.mxu0
    %v1794 = vadd.f32 %v1780, %v1793
    %v1795 = vpop.f32.mrf.mxu0
    %v1796 = vadd.f32 %v1782, %v1795
    %1797 = vdwg.mxu0
    %1798 = vmatpush.bf16.msra.mxu0 %v1378
    %1799 = vmatpush.bf16.msra.mxu0 %v1374
    %1800 = vmatpush.bf16.msra.mxu0 %v1370
    %1801 = vmatpush.bf16.msra.mxu0 %v1366
    %1802 = vmatpush.bf16.msra.mxu0 %v1362
    %1803 = vmatpush.bf16.msra.mxu0 %v1358
    %1804 = vmatpush.bf16.msra.mxu0 %v1354
    %1805 = vmatpush.bf16.msra.mxu0 %v1350
    %1806 = vmatmul.bf16.gmra.mxu0 %v655
    %v1807 = vpop.f32.mrf.mxu0
    %v1808 = vadd.f32 %v1794, %v1807
    %v1809 = vpop.f32.mrf.mxu0
    %v1810 = vadd.f32 %v1796, %v1809
    %1811 = vdwg.mxu0
    %1812 = vmatpush.bf16.msra.mxu0 %v1410
    %1813 = vmatpush.bf16.msra.mxu0 %v1406
    %1814 = vmatpush.bf16.msra.mxu0 %v1402
    %1815 = vmatpush.bf16.msra.mxu0 %v1398
    %1816 = vmatpush.bf16.msra.mxu0 %v1394
    %1817 = vmatpush.bf16.msra.mxu0 %v1390
    %1818 = vmatpush.bf16.msra.mxu0 %v1386
    %1819 = vmatpush.bf16.msra.mxu0 %v1382
    %1820 = vmatmul.bf16.gmra.mxu0 %v656
    %v1821 = vpop.f32.mrf.mxu0
    %v1822 = vadd.f32 %v1808, %v1821
    %v1823 = vpop.f32.mrf.mxu0
    %v1824 = vadd.f32 %v1810, %v1823
    %1825 = vdwg.mxu0
    %1826 = vmatpush.bf16.msra.mxu0 %v1442
    %1827 = vmatpush.bf16.msra.mxu0 %v1438
    %1828 = vmatpush.bf16.msra.mxu0 %v1434
    %1829 = vmatpush.bf16.msra.mxu0 %v1430
    %1830 = vmatpush.bf16.msra.mxu0 %v1426
    %1831 = vmatpush.bf16.msra.mxu0 %v1422
    %1832 = vmatpush.bf16.msra.mxu0 %v1418
    %1833 = vmatpush.bf16.msra.mxu0 %v1414
    %1834 = vmatmul.bf16.gmra.mxu0 %v657
    %v1835 = vpop.f32.mrf.mxu0
    %v1836 = vadd.f32 %v1822, %v1835
    %v1837 = vpop.f32.mrf.mxu0
    %v1838 = vadd.f32 %v1824, %v1837
    %1839 = vdwg.mxu0
    %1840 = vmatpush.bf16.msra.mxu0 0
    %1841 = vmatpush.bf16.msra.mxu0 0
    %1842 = vmatpush.bf16.msra.mxu0 0
    %1843 = vmatpush.bf16.msra.mxu0 0
    %1844 = vmatpush.bf16.msra.mxu0 0
    %1845 = vmatpush.bf16.msra.mxu0 0
    %1846 = vmatpush.bf16.msra.mxu0 0
    %1847 = vmatpush.bf16.msra.mxu0 %v1650
    %1848 = vmatmul.bf16.gmra.mxu0 %v1643
    %v1849 = vpop.f32.mrf.mxu0
    %v1850 = vadd.f32 %v1836, %v1849
    %v1851 = vpop.f32.mrf.mxu0
    %v1852 = vadd.f32 %v1838, %v1851
    %1853 = vdwg.mxu0
    %1854 = vmatpush.bf16.msra.mxu0 %v1283
    %1855 = vmatpush.bf16.msra.mxu0 %v1279
    %1856 = vmatpush.bf16.msra.mxu0 %v1275
    %1857 = vmatpush.bf16.msra.mxu0 %v1271
    %1858 = vmatpush.bf16.msra.mxu0 %v1267
    %1859 = vmatpush.bf16.msra.mxu0 %v1263
    %1860 = vmatpush.bf16.msra.mxu0 %v1259
    %1861 = vmatpush.bf16.msra.mxu0 %v1255
    %1862 = vmatmul.bf16.gmra.mxu0 %v652
    %v1863 = vpop.f32.mrf.mxu0
    %v1864 = vadd.f32 %v624, %v1863
    %v1865 = vpop.f32.mrf.mxu0
    %v1866 = vadd.f32 %v624, %v1865
    %1867 = vdwg.mxu0
    %1868 = vmatpush.bf16.msra.mxu0 %v1315
    %1869 = vmatpush.bf16.msra.mxu0 %v1311
    %1870 = vmatpush.bf16.msra.mxu0 %v1307
    %1871 = vmatpush.bf16.msra.mxu0 %v1303
    %1872 = vmatpush.bf16.msra.mxu0 %v1299
    %1873 = vmatpush.bf16.msra.mxu0 %v1295
    %1874 = vmatpush.bf16.msra.mxu0 %v1291
    %1875 = vmatpush.bf16.msra.mxu0 %v1287
    %1876 = vmatmul.bf16.gmra.mxu0 %v653
    %v1877 = vpop.f32.mrf.mxu0
    %v1878 = vadd.f32 %v1864, %v1877
    %v1879 = vpop.f32.mrf.mxu0
    %v1880 = vadd.f32 %v1866, %v1879
    %1881 = vdwg.mxu0
    %1882 = vmatpush.bf16.msra.mxu0 %v1347
    %1883 = vmatpush.bf16.msra.mxu0 %v1343
    %1884 = vmatpush.bf16.msra.mxu0 %v1339
    %1885 = vmatpush.bf16.msra.mxu0 %v1335
    %1886 = vmatpush.bf16.msra.mxu0 %v1331
    %1887 = vmatpush.bf16.msra.mxu0 %v1327
    %1888 = vmatpush.bf16.msra.mxu0 %v1323
    %1889 = vmatpush.bf16.msra.mxu0 %v1319
    %1890 = vmatmul.bf16.gmra.mxu0 %v654
    %v1891 = vpop.f32.mrf.mxu0
    %v1892 = vadd.f32 %v1878, %v1891
    %v1893 = vpop.f32.mrf.mxu0
    %v1894 = vadd.f32 %v1880, %v1893
    %1895 = vdwg.mxu0
    %1896 = vmatpush.bf16.msra.mxu0 %v1379
    %1897 = vmatpush.bf16.msra.mxu0 %v1375
    %1898 = vmatpush.bf16.msra.mxu0 %v1371
    %1899 = vmatpush.bf16.msra.mxu0 %v1367
    %1900 = vmatpush.bf16.msra.mxu0 %v1363
    %1901 = vmatpush.bf16.msra.mxu0 %v1359
    %1902 = vmatpush.bf16.msra.mxu0 %v1355
    %1903 = vmatpush.bf16.msra.mxu0 %v1351
    %1904 = vmatmul.bf16.gmra.mxu0 %v655
    %v1905 = vpop.f32.mrf.mxu0
    %v1906 = vadd.f32 %v1892, %v1905
    %v1907 = vpop.f32.mrf.mxu0
    %v1908 = vadd.f32 %v1894, %v1907
    %1909 = vdwg.mxu0
    %1910 = vmatpush.bf16.msra.mxu0 %v1411
    %1911 = vmatpush.bf16.msra.mxu0 %v1407
    %1912 = vmatpush.bf16.msra.mxu0 %v1403
    %1913 = vmatpush.bf16.msra.mxu0 %v1399
    %1914 = vmatpush.bf16.msra.mxu0 %v1395
    %1915 = vmatpush.bf16.msra.mxu0 %v1391
    %1916 = vmatpush.bf16.msra.mxu0 %v1387
    %1917 = vmatpush.bf16.msra.mxu0 %v1383
    %1918 = vmatmul.bf16.gmra.mxu0 %v656
    %v1919 = vpop.f32.mrf.mxu0
    %v1920 = vadd.f32 %v1906, %v1919
    %v1921 = vpop.f32.mrf.mxu0
    %v1922 = vadd.f32 %v1908, %v1921
    %1923 = vdwg.mxu0
    %1924 = vmatpush.bf16.msra.mxu0 %v1443
    %1925 = vmatpush.bf16.msra.mxu0 %v1439
    %1926 = vmatpush.bf16.msra.mxu0 %v1435
    %1927 = vmatpush.bf16.msra.mxu0 %v1431
    %1928 = vmatpush.bf16.msra.mxu0 %v1427
    %1929 = vmatpush.bf16.msra.mxu0 %v1423
    %1930 = vmatpush.bf16.msra.mxu0 %v1419
    %1931 = vmatpush.bf16.msra.mxu0 %v1415
    %1932 = vmatmul.bf16.gmra.mxu0 %v657
    %v1933 = vpop.f32.mrf.mxu0
    %v1934 = vadd.f32 %v1920, %v1933
    %v1935 = vpop.f32.mrf.mxu0
    %v1936 = vadd.f32 %v1922, %v1935
    %1937 = vdwg.mxu0
    %1938 = vmatpush.bf16.msra.mxu0 0
    %1939 = vmatpush.bf16.msra.mxu0 0
    %1940 = vmatpush.bf16.msra.mxu0 0
    %1941 = vmatpush.bf16.msra.mxu0 0
    %1942 = vmatpush.bf16.msra.mxu0 0
    %1943 = vmatpush.bf16.msra.mxu0 0
    %1944 = vmatpush.bf16.msra.mxu0 0
    %1945 = vmatpush.bf16.msra.mxu0 %v1653
    %1946 = vmatmul.bf16.gmra.mxu0 %v1643
    %v1947 = vpop.f32.mrf.mxu0
    %v1948 = vadd.f32 %v1934, %v1947
    %v1949 = vpop.f32.mrf.mxu0
    %v1950 = vadd.f32 %v1936, %v1949
    %1951 = vdwg.mxu0
    %1952 = vmatpush.bf16.msra.mxu0 %v1284
    %1953 = vmatpush.bf16.msra.mxu0 %v1280
    %1954 = vmatpush.bf16.msra.mxu0 %v1276
    %1955 = vmatpush.bf16.msra.mxu0 %v1272
    %1956 = vmatpush.bf16.msra.mxu0 %v1268
    %1957 = vmatpush.bf16.msra.mxu0 %v1264
    %1958 = vmatpush.bf16.msra.mxu0 %v1260
    %1959 = vmatpush.bf16.msra.mxu0 %v1256
    %1960 = vmatmul.bf16.gmra.mxu0 %v652
    %v1961 = vpop.f32.mrf.mxu0
    %v1962 = vadd.f32 %v625, %v1961
    %v1963 = vpop.f32.mrf.mxu0
    %v1964 = vadd.f32 %v625, %v1963
    %1965 = vdwg.mxu0
    %1966 = vmatpush.bf16.msra.mxu0 %v1316
    %1967 = vmatpush.bf16.msra.mxu0 %v1312
    %1968 = vmatpush.bf16.msra.mxu0 %v1308
    %1969 = vmatpush.bf16.msra.mxu0 %v1304
    %1970 = vmatpush.bf16.msra.mxu0 %v1300
    %1971 = vmatpush.bf16.msra.mxu0 %v1296
    %1972 = vmatpush.bf16.msra.mxu0 %v1292
    %1973 = vmatpush.bf16.msra.mxu0 %v1288
    %1974 = vmatmul.bf16.gmra.mxu0 %v653
    %v1975 = vpop.f32.mrf.mxu0
    %v1976 = vadd.f32 %v1962, %v1975
    %v1977 = vpop.f32.mrf.mxu0
    %v1978 = vadd.f32 %v1964, %v1977
    %1979 = vdwg.mxu0
    %1980 = vmatpush.bf16.msra.mxu0 %v1348
    %1981 = vmatpush.bf16.msra.mxu0 %v1344
    %1982 = vmatpush.bf16.msra.mxu0 %v1340
    %1983 = vmatpush.bf16.msra.mxu0 %v1336
    %1984 = vmatpush.bf16.msra.mxu0 %v1332
    %1985 = vmatpush.bf16.msra.mxu0 %v1328
    %1986 = vmatpush.bf16.msra.mxu0 %v1324
    %1987 = vmatpush.bf16.msra.mxu0 %v1320
    %1988 = vmatmul.bf16.gmra.mxu0 %v654
    %v1989 = vpop.f32.mrf.mxu0
    %v1990 = vadd.f32 %v1976, %v1989
    %v1991 = vpop.f32.mrf.mxu0
    %v1992 = vadd.f32 %v1978, %v1991
    %1993 = vdwg.mxu0
    %1994 = vmatpush.bf16.msra.mxu0 %v1380
    %1995 = vmatpush.bf16.msra.mxu0 %v1376
    %1996 = vmatpush.bf16.msra.mxu0 %v1372
    %1997 = vmatpush.bf16.msra.mxu0 %v1368
    %1998 = vmatpush.bf16.msra.mxu0 %v1364
    %1999 = vmatpush.bf16.msra.mxu0 %v1360
    %2000 = vmatpush.bf16.msra.mxu0 %v1356
    %2001 = vmatpush.bf16.msra.mxu0 %v1352
    %2002 = vmatmul.bf16.gmra.mxu0 %v655
    %v2003 = vpop.f32.mrf.mxu0
    %v2004 = vadd.f32 %v1990, %v2003
    %v2005 = vpop.f32.mrf.mxu0
    %v2006 = vadd.f32 %v1992, %v2005
    %2007 = vdwg.mxu0
    %2008 = vmatpush.bf16.msra.mxu0 %v1412
    %2009 = vmatpush.bf16.msra.mxu0 %v1408
    %2010 = vmatpush.bf16.msra.mxu0 %v1404
    %2011 = vmatpush.bf16.msra.mxu0 %v1400
    %2012 = vmatpush.bf16.msra.mxu0 %v1396
    %2013 = vmatpush.bf16.msra.mxu0 %v1392
    %2014 = vmatpush.bf16.msra.mxu0 %v1388
    %2015 = vmatpush.bf16.msra.mxu0 %v1384
    %2016 = vmatmul.bf16.gmra.mxu0 %v656
    %v2017 = vpop.f32.mrf.mxu0
    %v2018 = vadd.f32 %v2004, %v2017
    %v2019 = vpop.f32.mrf.mxu0
    %v2020 = vadd.f32 %v2006, %v2019
    %2021 = vdwg.mxu0
    %2022 = vmatpush.bf16.msra.mxu0 %v1444
    %2023 = vmatpush.bf16.msra.mxu0 %v1440
    %2024 = vmatpush.bf16.msra.mxu0 %v1436
    %2025 = vmatpush.bf16.msra.mxu0 %v1432
    %2026 = vmatpush.bf16.msra.mxu0 %v1428
    %2027 = vmatpush.bf16.msra.mxu0 %v1424
    %2028 = vmatpush.bf16.msra.mxu0 %v1420
    %2029 = vmatpush.bf16.msra.mxu0 %v1416
    %2030 = vmatmul.bf16.gmra.mxu0 %v657
    %v2031 = vpop.f32.mrf.mxu0
    %v2032 = vadd.f32 %v2018, %v2031
    %v2033 = vpop.f32.mrf.mxu0
    %v2034 = vadd.f32 %v2020, %v2033
    %2035 = vdwg.mxu0
    %2036 = vmatpush.bf16.msra.mxu0 0
    %2037 = vmatpush.bf16.msra.mxu0 0
    %2038 = vmatpush.bf16.msra.mxu0 0
    %2039 = vmatpush.bf16.msra.mxu0 0
    %2040 = vmatpush.bf16.msra.mxu0 0
    %2041 = vmatpush.bf16.msra.mxu0 0
    %2042 = vmatpush.bf16.msra.mxu0 0
    %2043 = vmatpush.bf16.msra.mxu0 %v1656
    %2044 = vmatmul.bf16.gmra.mxu0 %v1643
    %v2045 = vpop.f32.mrf.mxu0
    %v2046 = vadd.f32 %v2032, %v2045
    %v2047 = vpop.f32.mrf.mxu0
    %v2048 = vadd.f32 %v2034, %v2047
    %2049 = vdwg.mxu0
    %v2050 = vxor.u32 %v1850, 2147483648
    %v2051 = vxor.u32 %v1948, 2147483648
    %v2052 = vxor.u32 %v2046, 2147483648
    %v2053 = vxor.u32 %v1852, 2147483648
    %v2054 = vxor.u32 %v1950, 2147483648
    %v2055 = vxor.u32 %v2048, 2147483648
    %v2056 = vmul.f32 %v2050, 1.442695
    %v2057 = vpow.pop %v2056
    %v2058 = vmul.f32 %v2051, 1.442695
    %v2059 = vpow.pop %v2058
    %v2060 = vmul.f32 %v2052, 1.442695
    %v2061 = vpow.pop %v2060
    %v2062 = vmul.f32 %v2053, 1.442695
    %v2063 = vpow.pop %v2062
    %v2064 = vmul.f32 %v2054, 1.442695
    %v2065 = vpow.pop %v2064
    %v2066 = vmul.f32 %v2055, 1.442695
    %v2067 = vpow.pop %v2066
    %v2068 = vadd.f32 %v2057, 1.0
    %v2069 = vadd.f32 %v2059, 1.0
    %v2070 = vadd.f32 %v2061, 1.0
    %v2071 = vadd.f32 %v2063, 1.0
    %v2072 = vadd.f32 %v2065, 1.0
    %v2073 = vadd.f32 %v2067, 1.0
    %v2074 = vrcp.pop %v2068
    %v2075 = vmul.f32 %v2068, %v2074
    %v2076 = vsub.f32 1.0, %v2075
    %v2077 = vmul.f32 %v2074, %v2076
    %v2078 = vadd.f32 %v2074, %v2077
    %vm2079 = vweird.f32 %v2068
    %vm2080 = vweird.f32 %v2074
    %vm2081 = vmor %vm2079, %vm2080
    %v2082 = vsel %vm2081, %v2074, %v2078
    %v2083 = vand.u32 2147483647, %v2068
    %vm2084 = vcmp.eq.f32.partialorder %v2083, 8.507059e+37
    %v2085 = vand.u32 %v2068, 2147483648
    %v2086 = vor.u32 1.1754944e-38, %v2085
    %v2087 = vsel %vm2084, %v2086, %v2082
    %v2088 = vmul.f32 1.0, %v2087
    %v2089 = vrcp.pop %v2069
    %v2090 = vmul.f32 %v2069, %v2089
    %v2091 = vsub.f32 1.0, %v2090
    %v2092 = vmul.f32 %v2089, %v2091
    %v2093 = vadd.f32 %v2089, %v2092
    %vm2094 = vweird.f32 %v2069
    %vm2095 = vweird.f32 %v2089
    %vm2096 = vmor %vm2094, %vm2095
    %v2097 = vsel %vm2096, %v2089, %v2093
    %v2098 = vand.u32 2147483647, %v2069
    %vm2099 = vcmp.eq.f32.partialorder %v2098, 8.507059e+37
    %v2100 = vand.u32 %v2069, 2147483648
    %v2101 = vor.u32 1.1754944e-38, %v2100
    %v2102 = vsel %vm2099, %v2101, %v2097
    %v2103 = vmul.f32 1.0, %v2102
    %v2104 = vrcp.pop %v2070
    %v2105 = vmul.f32 %v2070, %v2104
    %v2106 = vsub.f32 1.0, %v2105
    %v2107 = vmul.f32 %v2104, %v2106
    %v2108 = vadd.f32 %v2104, %v2107
    %vm2109 = vweird.f32 %v2070
    %vm2110 = vweird.f32 %v2104
    %vm2111 = vmor %vm2109, %vm2110
    %v2112 = vsel %vm2111, %v2104, %v2108
    %v2113 = vand.u32 2147483647, %v2070
    %vm2114 = vcmp.eq.f32.partialorder %v2113, 8.507059e+37
    %v2115 = vand.u32 %v2070, 2147483648
    %v2116 = vor.u32 1.1754944e-38, %v2115
    %v2117 = vsel %vm2114, %v2116, %v2112
    %v2118 = vmul.f32 1.0, %v2117
    %v2119 = vrcp.pop %v2071
    %v2120 = vmul.f32 %v2071, %v2119
    %v2121 = vsub.f32 1.0, %v2120
    %v2122 = vmul.f32 %v2119, %v2121
    %v2123 = vadd.f32 %v2119, %v2122
    %vm2124 = vweird.f32 %v2071
    %vm2125 = vweird.f32 %v2119
    %vm2126 = vmor %vm2124, %vm2125
    %v2127 = vsel %vm2126, %v2119, %v2123
    %v2128 = vand.u32 2147483647, %v2071
    %vm2129 = vcmp.eq.f32.partialorder %v2128, 8.507059e+37
    %v2130 = vand.u32 %v2071, 2147483648
    %v2131 = vor.u32 1.1754944e-38, %v2130
    %v2132 = vsel %vm2129, %v2131, %v2127
    %v2133 = vmul.f32 1.0, %v2132
    %v2134 = vrcp.pop %v2072
    %v2135 = vmul.f32 %v2072, %v2134
    %v2136 = vsub.f32 1.0, %v2135
    %v2137 = vmul.f32 %v2134, %v2136
    %v2138 = vadd.f32 %v2134, %v2137
    %vm2139 = vweird.f32 %v2072
    %vm2140 = vweird.f32 %v2134
    %vm2141 = vmor %vm2139, %vm2140
    %v2142 = vsel %vm2141, %v2134, %v2138
    %v2143 = vand.u32 2147483647, %v2072
    %vm2144 = vcmp.eq.f32.partialorder %v2143, 8.507059e+37
    %v2145 = vand.u32 %v2072, 2147483648
    %v2146 = vor.u32 1.1754944e-38, %v2145
    %v2147 = vsel %vm2144, %v2146, %v2142
    %v2148 = vmul.f32 1.0, %v2147
    %v2149 = vrcp.pop %v2073
    %v2150 = vmul.f32 %v2073, %v2149
    %v2151 = vsub.f32 1.0, %v2150
    %v2152 = vmul.f32 %v2149, %v2151
    %v2153 = vadd.f32 %v2149, %v2152
    %vm2154 = vweird.f32 %v2073
    %vm2155 = vweird.f32 %v2149
    %vm2156 = vmor %vm2154, %vm2155
    %v2157 = vsel %vm2156, %v2149, %v2153
    %v2158 = vand.u32 2147483647, %v2073
    %vm2159 = vcmp.eq.f32.partialorder %v2158, 8.507059e+37
    %v2160 = vand.u32 %v2073, 2147483648
    %v2161 = vor.u32 1.1754944e-38, %v2160
    %v2162 = vsel %vm2159, %v2161, %v2157
    %v2163 = vmul.f32 1.0, %v2162
    %2170 = vrot.lane.b32.xlu0 %v2088, 8
    %v2171 = vpop.permute.xlu0 %2170
    %2172 = vrot.lane.b32.xlu0 %v2103, 8
    %v2173 = vpop.permute.xlu0 %2172
    %2174 = vrot.lane.b32.xlu0 %v2118, 8
    %v2175 = vpop.permute.xlu0 %2174
    %2176 = vrot.lane.b32.xlu0 %v2133, 8
    %v2177 = vpop.permute.xlu0 %2176
    %2178 = vrot.lane.b32.xlu0 %v2148, 8
    %v2179 = vpop.permute.xlu0 %2178
    %2180 = vrot.lane.b32.xlu0 %v2163, 8
    %v2181 = vpop.permute.xlu0 %2180
    %vm2182 = vcmask 64512
    %v2183 = vsel %vm2182, %v2171, %v2173
    %v2184 = vsel %vm2182, %v2173, %v2175
    %v2185 = vsel %vm2182, %v2177, %v2179
    %v2186 = vsel %vm2182, %v2179, %v2181
    %v2191 = vmul.f32 %v1752, %v2183
    %v2192 = vmul.f32 %v1850, %v2184
    %v2193 = vmul.f32 %v1754, %v2185
    %v2194 = vmul.f32 %v1852, %v2186
    %v2195 = vld [vmem:[%s7] sm:$0x3]
    %v2197 = vperm.slane %v2195, 0
    %v2198 = vperm.slane %v2195, 1
    %v2201 = vmul.f32 %v2191, %v2197
    %v2202 = vmul.f32 %v2192, %v2198
    %v2203 = vmul.f32 %v2193, %v2197
    %v2204 = vmul.f32 %v2194, %v2198
    %v2205 = vld [vmem:[%s9] sm:$0x3]
    %v2207 = vperm.slane %v2205, 0
    %v2208 = vperm.slane %v2205, 1
    %v2211 = vadd.f32 %v2201, %v2207
    %v2212 = vadd.f32 %v2202, %v2208
    %v2213 = vadd.f32 %v2203, %v2207
    %v2214 = vadd.f32 %v2204, %v2208
    %vm2215 = vcmp.ge.f32.partialorder %v2211, 0.0
    %vm2216 = vcmp.ge.f32.partialorder %v2212, 0.0
    %vm2217 = vcmp.ge.f32.partialorder %v2213, 0.0
    %vm2218 = vcmp.ge.f32.partialorder %v2214, 0.0
    %v2219 = vld [vmem:[%s11] sm:$0x3]
    %v2221 = vperm.slane %v2219, 0
    %v2222 = vperm.slane %v2219, 1
    %v2225 = vmul.f32 %v2221, %v2211
    %v2226 = vmul.f32 %v2222, %v2212
    %v2227 = vmul.f32 %v2221, %v2213
    %v2228 = vmul.f32 %v2222, %v2214
    %v2229 = vsel %vm2215, %v2211, %v2225
    %v2230 = vsel %vm2216, %v2212, %v2226
    %v2231 = vsel %vm2217, %v2213, %v2227
    %v2232 = vsel %vm2218, %v2214, %v2228
    %2233 = vst [vmem:[%s53] sm:$0xff] %v2229
    %vm2234 = vcmask 982016
    %2235 = vst.msk [vmem:[%s53 + $0x8] sm:$0xff] %vm2234, %v2230
    %v2238 = vrot.slane %v2229, 7
    %v2239 = vrot.slane %v2230, 7
    %2242 = vst [vmem:[#allocation2] sm:$0xfe] %v2238
    %vm2243 = vcmask 982017
    %2244 = vst.msk [vmem:[#allocation2 + $0x8] sm:$0xfe] %vm2243, %v2239
    %2245 = vst [vmem:[#allocation2 + $0x20] sm:$0x1] %v2238
    %vm2246 = vcmask 974848
    %2247 = vst.msk [vmem:[#allocation2 + $0x28] sm:$0x1] %vm2246, %v2239
    %s2248 = scalar_lea.vmem %s53, 16
    %2249 = vst [vmem:[%s2248] sm:$0xff] %v2231
    %2250 = vst.msk [vmem:[%s2248 + $0x8] sm:$0xff] %vm2234, %v2232
    %v2253 = vrot.slane %v2231, 7
    %v2254 = vrot.slane %v2232, 7
    %2257 = vst [vmem:[%s354] sm:$0xfe] %v2253
    %2258 = vst.msk [vmem:[%s354 + $0x8] sm:$0xfe] %vm2243, %v2254
    %2259 = vst [vmem:[%s354 + $0x20] sm:$0x1] %v2253
    %2260 = vst.msk [vmem:[%s354 + $0x28] sm:$0x1] %vm2246, %v2254
    %v2261 = vld [vmem:[#allocation2] sm:$0xff]
    %v2262 = vld [vmem:[#allocation2 + $0x8] sm:$0xff]
    %v2263 = vpack.c.bf16 %v2262, %v2261
    %vm2264 = vcmask 982020
    %vm2265 = vmor %vm2264, %vm287
    %2266 = vst.msk [vmem:[#allocation3] sm:$0xff] %vm2265, %v2263
    %v2267 = vld [vmem:[#allocation2] sm:$0xfe]
    %v2268 = vld [vmem:[#allocation2 + $0x8] sm:$0xfe]
    %v2269 = vld [vmem:[#allocation2 + $0x20] sm:$0x1]
    %v2270 = vld [vmem:[#allocation2 + $0x28] sm:$0x1]
    %v2271 = vpack.c.bf16 %v2268, %v2267
    %v2272 = vpack.c.bf16 %v2270, %v2269
    %v2274 = vshrl.u32 %v2271, 16
    %v2276 = vrot.slane %v2274, 4
    %v2277 = vshll.u32 %v2271, 16
    %v2279 = vrot.slane %v2277, 5
    %v2280 = vor.u32 %v2276, %v2279
    %v2281 = vrot.slane %v2280, 4
    %v2283 = vshll.u32 %v2272, 16
    %v2285 = vrot.slane %v2283, 5
    %v2286 = vsel %vm305, %v2281, %v2285
    %2287 = vrot.lane.b32.xlu0 %v2286, 120
    %v2288 = vpop.permute.xlu0 %2287
    %v2289 = vrot.slane %v2288, 4
    %vm2290 = vcmask 982016
    %v2291 = vsel %vm2290, %v2289, %v2288
    %vm2294 = vcmask 1044416
    %vm2295 = vmor %vm348, %vm2294
    %2296 = vst.msk [vmem:[#allocation3 + $0x4] sm:$0xff] %vm2295, %v2291
    %vm2297 = vcmask 912384
    %2298 = vst.msk [vmem:[#allocation3 + $0xc] sm:$0xf] %vm2297, %v2289
    %v2299 = vld [vmem:[%s354] sm:$0xff]
    %v2300 = vld [vmem:[%s354 + $0x8] sm:$0xff]
    %v2301 = vpack.c.bf16 %v2300, %v2299
    %2302 = vst.msk [vmem:[#allocation3 + $0x1c] sm:$0xff] %vm2265, %v2301
    %v2303 = vld [vmem:[%s354] sm:$0xfe]
    %v2304 = vld [vmem:[%s354 + $0x8] sm:$0xfe]
    %v2305 = vld [vmem:[%s354 + $0x20] sm:$0x1]
    %v2306 = vld [vmem:[%s354 + $0x28] sm:$0x1]
    %v2307 = vpack.c.bf16 %v2304, %v2303
    %v2308 = vpack.c.bf16 %v2306, %v2305
    %v2310 = vshrl.u32 %v2307, 16
    %v2312 = vrot.slane %v2310, 4
    %v2313 = vshll.u32 %v2307, 16
    %v2315 = vrot.slane %v2313, 5
    %v2316 = vor.u32 %v2312, %v2315
    %v2317 = vrot.slane %v2316, 4
    %v2319 = vshll.u32 %v2308, 16
    %v2321 = vrot.slane %v2319, 5
    %v2322 = vsel %vm305, %v2317, %v2321
    %2323 = vrot.lane.b32.xlu0 %v2322, 120
    %v2324 = vpop.permute.xlu0 %2323
    %v2325 = vrot.slane %v2324, 4
    %v2326 = vsel %vm2290, %v2325, %v2324
    %2329 = vst.msk [vmem:[#allocation3 + $0x20] sm:$0xff] %vm2295, %v2326
    %2330 = vst.msk [vmem:[#allocation3 + $0x28] sm:$0xf] %vm2297, %v2325
    %v2331 = vld [vmem:[#allocation3] sm:$0xff]
    %v2332 = vld [vmem:[#allocation3 + $0x8] sm:$0xff]
    %v2333 = vld [vmem:[#allocation3 + $0x1c] sm:$0xff]
    %v2334 = vld [vmem:[#allocation3 + $0x24] sm:$0xff]
    %v2335 = vld [vmem:[%s13] sm:$0xff]
    %v2336 = vld [vmem:[%s13 + $0x8] sm:$0xff]
    %v2337 = vld [vmem:[%s13 + $0x10] sm:$0xff]
    %v2338 = vld [vmem:[%s13 + $0x18] sm:$0xff]
    %v2339 = vld [vmem:[%s13 + $0x20] sm:$0xff]
    %v2340 = vld [vmem:[%s13 + $0x28] sm:$0xff]
    %v2341 = vld [vmem:[%s13 + $0x30] sm:$0xff]
    %v2342 = vld [vmem:[%s13 + $0x38] sm:$0xff]
    %v2343 = vld [vmem:[%s13 + $0x40] sm:$0xff]
    %v2344 = vld [vmem:[%s13 + $0x48] sm:$0xff]
    %v2345 = vld [vmem:[%s13 + $0x50] sm:$0xff]
    %v2346 = vld [vmem:[%s13 + $0x58] sm:$0xff]
    %v2347 = vld [vmem:[%s13 + $0x60] sm:$0xff]
    %v2348 = vld [vmem:[%s13 + $0x68] sm:$0xff]
    %v2349 = vld [vmem:[%s13 + $0x70] sm:$0xff]
    %v2350 = vld [vmem:[%s13 + $0x78] sm:$0xff]
    %v2351 = vld [vmem:[%s13 + $0x80] sm:$0xff]
    %v2352 = vld [vmem:[%s13 + $0x88] sm:$0xff]
    %v2353 = vld [vmem:[%s13 + $0x90] sm:$0xff]
    %v2354 = vld [vmem:[%s13 + $0x98] sm:$0xff]
    %v2355 = vld [vmem:[%s13 + $0xa0] sm:$0xff]
    %v2356 = vld [vmem:[%s13 + $0xa8] sm:$0xff]
    %v2357 = vld [vmem:[%s13 + $0xb0] sm:$0xff]
    %v2358 = vld [vmem:[%s13 + $0xb8] sm:$0xff]
    %v2359 = vld [vmem:[%s13 + $0xc0] sm:$0xff]
    %v2360 = vld [vmem:[%s13 + $0xc8] sm:$0xff]
    %v2361 = vld [vmem:[%s13 + $0xd0] sm:$0xff]
    %v2362 = vld [vmem:[%s13 + $0xd8] sm:$0xff]
    %v2363 = vld [vmem:[%s13 + $0xe0] sm:$0xff]
    %v2364 = vld [vmem:[%s13 + $0xe8] sm:$0xff]
    %v2365 = vld [vmem:[%s13 + $0xf0] sm:$0xff]
    %v2366 = vld [vmem:[%s13 + $0xf8] sm:$0xff]
    %v2367 = vld [vmem:[%s13 + $0x100] sm:$0xff]
    %v2368 = vld [vmem:[%s13 + $0x108] sm:$0xff]
    %v2369 = vld [vmem:[%s13 + $0x110] sm:$0xff]
    %v2370 = vld [vmem:[%s13 + $0x118] sm:$0xff]
    %v2371 = vld [vmem:[%s13 + $0x120] sm:$0xff]
    %v2372 = vld [vmem:[%s13 + $0x128] sm:$0xff]
    %v2373 = vld [vmem:[%s13 + $0x130] sm:$0xff]
    %v2374 = vld [vmem:[%s13 + $0x138] sm:$0xff]
    %v2375 = vld [vmem:[%s13 + $0x140] sm:$0xff]
    %v2376 = vld [vmem:[%s13 + $0x148] sm:$0xff]
    %v2377 = vld [vmem:[%s13 + $0x150] sm:$0xff]
    %v2378 = vld [vmem:[%s13 + $0x158] sm:$0xff]
    %v2379 = vld [vmem:[%s13 + $0x160] sm:$0xff]
    %v2380 = vld [vmem:[%s13 + $0x168] sm:$0xff]
    %v2381 = vld [vmem:[%s13 + $0x170] sm:$0xff]
    %v2382 = vld [vmem:[%s13 + $0x178] sm:$0xff]
    %v2383 = vld [vmem:[%s13 + $0x180] sm:$0xff]
    %v2384 = vld [vmem:[%s13 + $0x188] sm:$0xff]
    %v2385 = vld [vmem:[%s13 + $0x190] sm:$0xff]
    %v2386 = vld [vmem:[%s13 + $0x198] sm:$0xff]
    %v2387 = vld [vmem:[%s13 + $0x1a0] sm:$0xff]
    %v2388 = vld [vmem:[%s13 + $0x1a8] sm:$0xff]
    %v2389 = vld [vmem:[%s13 + $0x1b0] sm:$0xff]
    %v2390 = vld [vmem:[%s13 + $0x1b8] sm:$0xff]
    %v2391 = vld [vmem:[%s13 + $0x1c0] sm:$0xff]
    %v2392 = vld [vmem:[%s13 + $0x1c8] sm:$0xff]
    %v2393 = vld [vmem:[%s13 + $0x1d0] sm:$0xff]
    %v2394 = vld [vmem:[%s13 + $0x1d8] sm:$0xff]
    %v2395 = vld [vmem:[%s13 + $0x1e0] sm:$0xff]
    %v2396 = vld [vmem:[%s13 + $0x1e8] sm:$0xff]
    %v2397 = vld [vmem:[%s15] sm:$0x3]
    %v2399 = vperm.slane %v2397, 0
    %v2400 = vperm.slane %v2397, 1
    %v2407 = vunpack.c.l.b16 %v2331
    %v2408 = vunpack.c.h.b16 %v2331
    %v2409 = vunpack.c.l.b16 %v2332
    %v2410 = vunpack.c.h.b16 %v2332
    %v2411 = vunpack.c.l.b16 %v2333
    %v2412 = vunpack.c.h.b16 %v2333
    %v2413 = vunpack.c.l.b16 %v2334
    %v2414 = vunpack.c.h.b16 %v2334
    %v2415 = vpack.c.b16 %v2411, %v2407
    %v2416 = vpack.c.b16 %v2412, %v2408
    %v2417 = vpack.c.b16 %v2413, %v2409
    %v2418 = vpack.c.b16 %v2414, %v2410
    %v2484 = vunpack.c.l.b16 %v2335
    %v2485 = vunpack.c.h.b16 %v2335
    %v2486 = vunpack.c.l.b16 %v2336
    %v2487 = vunpack.c.h.b16 %v2336
    %v2488 = vunpack.c.l.b16 %v2337
    %v2489 = vunpack.c.h.b16 %v2337
    %v2490 = vunpack.c.l.b16 %v2338
    %v2491 = vunpack.c.h.b16 %v2338
    %v2492 = vunpack.c.l.b16 %v2339
    %v2493 = vunpack.c.h.b16 %v2339
    %v2494 = vunpack.c.l.b16 %v2340
    %v2495 = vunpack.c.h.b16 %v2340
    %v2496 = vunpack.c.l.b16 %v2341
    %v2497 = vunpack.c.h.b16 %v2341
    %v2498 = vunpack.c.l.b16 %v2342
    %v2499 = vunpack.c.h.b16 %v2342
    %v2500 = vunpack.c.l.b16 %v2343
    %v2501 = vunpack.c.h.b16 %v2343
    %v2502 = vunpack.c.l.b16 %v2344
    %v2503 = vunpack.c.h.b16 %v2344
    %v2504 = vunpack.c.l.b16 %v2345
    %v2505 = vunpack.c.h.b16 %v2345
    %v2506 = vunpack.c.l.b16 %v2346
    %v2507 = vunpack.c.h.b16 %v2346
    %v2508 = vunpack.c.l.b16 %v2347
    %v2509 = vunpack.c.h.b16 %v2347
    %v2510 = vunpack.c.l.b16 %v2348
    %v2511 = vunpack.c.h.b16 %v2348
    %v2512 = vunpack.c.l.b16 %v2349
    %v2513 = vunpack.c.h.b16 %v2349
    %v2514 = vunpack.c.l.b16 %v2350
    %v2515 = vunpack.c.h.b16 %v2350
    %v2516 = vunpack.c.l.b16 %v2351
    %v2517 = vunpack.c.h.b16 %v2351
    %v2518 = vunpack.c.l.b16 %v2352
    %v2519 = vunpack.c.h.b16 %v2352
    %v2520 = vunpack.c.l.b16 %v2353
    %v2521 = vunpack.c.h.b16 %v2353
    %v2522 = vunpack.c.l.b16 %v2354
    %v2523 = vunpack.c.h.b16 %v2354
    %v2524 = vunpack.c.l.b16 %v2355
    %v2525 = vunpack.c.h.b16 %v2355
    %v2526 = vunpack.c.l.b16 %v2356
    %v2527 = vunpack.c.h.b16 %v2356
    %v2528 = vunpack.c.l.b16 %v2357
    %v2529 = vunpack.c.h.b16 %v2357
    %v2530 = vunpack.c.l.b16 %v2358
    %v2531 = vunpack.c.h.b16 %v2358
    %v2532 = vunpack.c.l.b16 %v2359
    %v2533 = vunpack.c.h.b16 %v2359
    %v2534 = vunpack.c.l.b16 %v2360
    %v2535 = vunpack.c.h.b16 %v2360
    %v2536 = vunpack.c.l.b16 %v2361
    %v2537 = vunpack.c.h.b16 %v2361
    %v2538 = vunpack.c.l.b16 %v2362
    %v2539 = vunpack.c.h.b16 %v2362
    %v2540 = vunpack.c.l.b16 %v2363
    %v2541 = vunpack.c.h.b16 %v2363
    %v2542 = vunpack.c.l.b16 %v2364
    %v2543 = vunpack.c.h.b16 %v2364
    %v2544 = vunpack.c.l.b16 %v2365
    %v2545 = vunpack.c.h.b16 %v2365
    %v2546 = vunpack.c.l.b16 %v2366
    %v2547 = vunpack.c.h.b16 %v2366
    %v2548 = vunpack.c.l.b16 %v2367
    %v2549 = vunpack.c.h.b16 %v2367
    %v2550 = vunpack.c.l.b16 %v2368
    %v2551 = vunpack.c.h.b16 %v2368
    %v2552 = vunpack.c.l.b16 %v2369
    %v2553 = vunpack.c.h.b16 %v2369
    %v2554 = vunpack.c.l.b16 %v2370
    %v2555 = vunpack.c.h.b16 %v2370
    %v2556 = vunpack.c.l.b16 %v2371
    %v2557 = vunpack.c.h.b16 %v2371
    %v2558 = vunpack.c.l.b16 %v2372
    %v2559 = vunpack.c.h.b16 %v2372
    %v2560 = vunpack.c.l.b16 %v2373
    %v2561 = vunpack.c.h.b16 %v2373
    %v2562 = vunpack.c.l.b16 %v2374
    %v2563 = vunpack.c.h.b16 %v2374
    %v2564 = vunpack.c.l.b16 %v2375
    %v2565 = vunpack.c.h.b16 %v2375
    %v2566 = vunpack.c.l.b16 %v2376
    %v2567 = vunpack.c.h.b16 %v2376
    %v2568 = vunpack.c.l.b16 %v2377
    %v2569 = vunpack.c.h.b16 %v2377
    %v2570 = vunpack.c.l.b16 %v2378
    %v2571 = vunpack.c.h.b16 %v2378
    %v2572 = vunpack.c.l.b16 %v2379
    %v2573 = vunpack.c.h.b16 %v2379
    %v2574 = vunpack.c.l.b16 %v2380
    %v2575 = vunpack.c.h.b16 %v2380
    %v2576 = vunpack.c.l.b16 %v2381
    %v2577 = vunpack.c.h.b16 %v2381
    %v2578 = vunpack.c.l.b16 %v2382
    %v2579 = vunpack.c.h.b16 %v2382
    %v2580 = vunpack.c.l.b16 %v2383
    %v2581 = vunpack.c.h.b16 %v2383
    %v2582 = vunpack.c.l.b16 %v2384
    %v2583 = vunpack.c.h.b16 %v2384
    %v2584 = vunpack.c.l.b16 %v2385
    %v2585 = vunpack.c.h.b16 %v2385
    %v2586 = vunpack.c.l.b16 %v2386
    %v2587 = vunpack.c.h.b16 %v2386
    %v2588 = vunpack.c.l.b16 %v2387
    %v2589 = vunpack.c.h.b16 %v2387
    %v2590 = vunpack.c.l.b16 %v2388
    %v2591 = vunpack.c.h.b16 %v2388
    %v2592 = vunpack.c.l.b16 %v2389
    %v2593 = vunpack.c.h.b16 %v2389
    %v2594 = vunpack.c.l.b16 %v2390
    %v2595 = vunpack.c.h.b16 %v2390
    %v2596 = vunpack.c.l.b16 %v2391
    %v2597 = vunpack.c.h.b16 %v2391
    %v2598 = vunpack.c.l.b16 %v2392
    %v2599 = vunpack.c.h.b16 %v2392
    %v2600 = vunpack.c.l.b16 %v2393
    %v2601 = vunpack.c.h.b16 %v2393
    %v2602 = vunpack.c.l.b16 %v2394
    %v2603 = vunpack.c.h.b16 %v2394
    %v2604 = vunpack.c.l.b16 %v2395
    %v2605 = vunpack.c.h.b16 %v2395
    %v2606 = vunpack.c.l.b16 %v2396
    %v2607 = vunpack.c.h.b16 %v2396
    %v2608 = vpack.c.b16 %v2486, %v2484
    %v2609 = vpack.c.b16 %v2487, %v2485
    %v2610 = vpack.c.b16 %v2490, %v2488
    %v2611 = vpack.c.b16 %v2491, %v2489
    %v2612 = vpack.c.b16 %v2494, %v2492
    %v2613 = vpack.c.b16 %v2495, %v2493
    %v2614 = vpack.c.b16 %v2498, %v2496
    %v2615 = vpack.c.b16 %v2499, %v2497
    %v2616 = vpack.c.b16 %v2502, %v2500
    %v2617 = vpack.c.b16 %v2503, %v2501
    %v2618 = vpack.c.b16 %v2506, %v2504
    %v2619 = vpack.c.b16 %v2507, %v2505
    %v2620 = vpack.c.b16 %v2510, %v2508
    %v2621 = vpack.c.b16 %v2511, %v2509
    %v2622 = vpack.c.b16 %v2514, %v2512
    %v2623 = vpack.c.b16 %v2515, %v2513
    %v2624 = vpack.c.b16 %v2518, %v2516
    %v2625 = vpack.c.b16 %v2519, %v2517
    %v2626 = vpack.c.b16 %v2522, %v2520
    %v2627 = vpack.c.b16 %v2523, %v2521
    %v2628 = vpack.c.b16 %v2526, %v2524
    %v2629 = vpack.c.b16 %v2527, %v2525
    %v2630 = vpack.c.b16 %v2530, %v2528
    %v2631 = vpack.c.b16 %v2531, %v2529
    %v2632 = vpack.c.b16 %v2534, %v2532
    %v2633 = vpack.c.b16 %v2535, %v2533
    %v2634 = vpack.c.b16 %v2538, %v2536
    %v2635 = vpack.c.b16 %v2539, %v2537
    %v2636 = vpack.c.b16 %v2542, %v2540
    %v2637 = vpack.c.b16 %v2543, %v2541
    %v2638 = vpack.c.b16 %v2546, %v2544
    %v2639 = vpack.c.b16 %v2547, %v2545
    %v2640 = vpack.c.b16 %v2550, %v2548
    %v2641 = vpack.c.b16 %v2551, %v2549
    %v2642 = vpack.c.b16 %v2554, %v2552
    %v2643 = vpack.c.b16 %v2555, %v2553
    %v2644 = vpack.c.b16 %v2558, %v2556
    %v2645 = vpack.c.b16 %v2559, %v2557
    %v2646 = vpack.c.b16 %v2562, %v2560
    %v2647 = vpack.c.b16 %v2563, %v2561
    %v2648 = vpack.c.b16 %v2566, %v2564
    %v2649 = vpack.c.b16 %v2567, %v2565
    %v2650 = vpack.c.b16 %v2570, %v2568
    %v2651 = vpack.c.b16 %v2571, %v2569
    %v2652 = vpack.c.b16 %v2574, %v2572
    %v2653 = vpack.c.b16 %v2575, %v2573
    %v2654 = vpack.c.b16 %v2578, %v2576
    %v2655 = vpack.c.b16 %v2579, %v2577
    %v2656 = vpack.c.b16 %v2582, %v2580
    %v2657 = vpack.c.b16 %v2583, %v2581
    %v2658 = vpack.c.b16 %v2586, %v2584
    %v2659 = vpack.c.b16 %v2587, %v2585
    %v2660 = vpack.c.b16 %v2590, %v2588
    %v2661 = vpack.c.b16 %v2591, %v2589
    %v2662 = vpack.c.b16 %v2594, %v2592
    %v2663 = vpack.c.b16 %v2595, %v2593
    %v2664 = vpack.c.b16 %v2598, %v2596
    %v2665 = vpack.c.b16 %v2599, %v2597
    %v2666 = vpack.c.b16 %v2602, %v2600
    %v2667 = vpack.c.b16 %v2603, %v2601
    %v2668 = vpack.c.b16 %v2606, %v2604
    %v2669 = vpack.c.b16 %v2607, %v2605
    %vm2732 = vcmask 916480
    %v2734 = vsel %vm2732, %v2418, 0
    %2736 = vmatpush.bf16.msra.mxu0 %v2622
    %2737 = vmatpush.bf16.msra.mxu0 %v2620
    %2738 = vmatpush.bf16.msra.mxu0 %v2618
    %2739 = vmatpush.bf16.msra.mxu0 %v2616
    %2740 = vmatpush.bf16.msra.mxu0 %v2614
    %2741 = vmatpush.bf16.msra.mxu0 %v2612
    %2742 = vmatpush.bf16.msra.mxu0 %v2610
    %2743 = vmatpush.bf16.msra.mxu0 %v2608
    %2744 = vmatmul.bf16.gmra.mxu0 %v2415
    %v2745 = vpop.f32.mrf.mxu0
    %v2746 = vadd.f32 %v2399, %v2745
    %v2747 = vpop.f32.mrf.mxu0
    %v2748 = vadd.f32 %v2399, %v2747
    %2749 = vdwg.mxu0
    %2750 = vmatpush.bf16.msra.mxu0 %v2638
    %2751 = vmatpush.bf16.msra.mxu0 %v2636
    %2752 = vmatpush.bf16.msra.mxu0 %v2634
    %2753 = vmatpush.bf16.msra.mxu0 %v2632
    %2754 = vmatpush.bf16.msra.mxu0 %v2630
    %2755 = vmatpush.bf16.msra.mxu0 %v2628
    %2756 = vmatpush.bf16.msra.mxu0 %v2626
    %2757 = vmatpush.bf16.msra.mxu0 %v2624
    %2758 = vmatmul.bf16.gmra.mxu0 %v2416
    %v2759 = vpop.f32.mrf.mxu0
    %v2760 = vadd.f32 %v2746, %v2759
    %v2761 = vpop.f32.mrf.mxu0
    %v2762 = vadd.f32 %v2748, %v2761
    %2763 = vdwg.mxu0
    %2764 = vmatpush.bf16.msra.mxu0 %v2654
    %2765 = vmatpush.bf16.msra.mxu0 %v2652
    %2766 = vmatpush.bf16.msra.mxu0 %v2650
    %2767 = vmatpush.bf16.msra.mxu0 %v2648
    %2768 = vmatpush.bf16.msra.mxu0 %v2646
    %2769 = vmatpush.bf16.msra.mxu0 %v2644
    %2770 = vmatpush.bf16.msra.mxu0 %v2642
    %2771 = vmatpush.bf16.msra.mxu0 %v2640
    %2772 = vmatmul.bf16.gmra.mxu0 %v2417
    %v2773 = vpop.f32.mrf.mxu0
    %v2774 = vadd.f32 %v2760, %v2773
    %v2775 = vpop.f32.mrf.mxu0
    %v2776 = vadd.f32 %v2762, %v2775
    %2777 = vdwg.mxu0
    %2778 = vmatpush.bf16.msra.mxu0 0
    %2779 = vmatpush.bf16.msra.mxu0 %v2668
    %2780 = vmatpush.bf16.msra.mxu0 %v2666
    %2781 = vmatpush.bf16.msra.mxu0 %v2664
    %2782 = vmatpush.bf16.msra.mxu0 %v2662
    %2783 = vmatpush.bf16.msra.mxu0 %v2660
    %2784 = vmatpush.bf16.msra.mxu0 %v2658
    %2785 = vmatpush.bf16.msra.mxu0 %v2656
    %2786 = vmatmul.bf16.gmra.mxu0 %v2734
    %v2787 = vpop.f32.mrf.mxu0
    %v2788 = vadd.f32 %v2774, %v2787
    %v2789 = vpop.f32.mrf.mxu0
    %v2790 = vadd.f32 %v2776, %v2789
    %2791 = vdwg.mxu0
    %2792 = vmatpush.bf16.msra.mxu0 %v2623
    %2793 = vmatpush.bf16.msra.mxu0 %v2621
    %2794 = vmatpush.bf16.msra.mxu0 %v2619
    %2795 = vmatpush.bf16.msra.mxu0 %v2617
    %2796 = vmatpush.bf16.msra.mxu0 %v2615
    %2797 = vmatpush.bf16.msra.mxu0 %v2613
    %2798 = vmatpush.bf16.msra.mxu0 %v2611
    %2799 = vmatpush.bf16.msra.mxu0 %v2609
    %2800 = vmatmul.bf16.gmra.mxu0 %v2415
    %v2801 = vpop.f32.mrf.mxu0
    %v2802 = vadd.f32 %v2400, %v2801
    %v2803 = vpop.f32.mrf.mxu0
    %v2804 = vadd.f32 %v2400, %v2803
    %2805 = vdwg.mxu0
    %2806 = vmatpush.bf16.msra.mxu0 %v2639
    %2807 = vmatpush.bf16.msra.mxu0 %v2637
    %2808 = vmatpush.bf16.msra.mxu0 %v2635
    %2809 = vmatpush.bf16.msra.mxu0 %v2633
    %2810 = vmatpush.bf16.msra.mxu0 %v2631
    %2811 = vmatpush.bf16.msra.mxu0 %v2629
    %2812 = vmatpush.bf16.msra.mxu0 %v2627
    %2813 = vmatpush.bf16.msra.mxu0 %v2625
    %2814 = vmatmul.bf16.gmra.mxu0 %v2416
    %v2815 = vpop.f32.mrf.mxu0
    %v2816 = vadd.f32 %v2802, %v2815
    %v2817 = vpop.f32.mrf.mxu0
    %v2818 = vadd.f32 %v2804, %v2817
    %2819 = vdwg.mxu0
    %2820 = vmatpush.bf16.msra.mxu0 %v2655
    %2821 = vmatpush.bf16.msra.mxu0 %v2653
    %2822 = vmatpush.bf16.msra.mxu0 %v2651
    %2823 = vmatpush.bf16.msra.mxu0 %v2649
    %2824 = vmatpush.bf16.msra.mxu0 %v2647
    %2825 = vmatpush.bf16.msra.mxu0 %v2645
    %2826 = vmatpush.bf16.msra.mxu0 %v2643
    %2827 = vmatpush.bf16.msra.mxu0 %v2641
    %2828 = vmatmul.bf16.gmra.mxu0 %v2417
    %v2829 = vpop.f32.mrf.mxu0
    %v2830 = vadd.f32 %v2816, %v2829
    %v2831 = vpop.f32.mrf.mxu0
    %v2832 = vadd.f32 %v2818, %v2831
    %2833 = vdwg.mxu0
    %2834 = vmatpush.bf16.msra.mxu0 0
    %2835 = vmatpush.bf16.msra.mxu0 %v2669
    %2836 = vmatpush.bf16.msra.mxu0 %v2667
    %2837 = vmatpush.bf16.msra.mxu0 %v2665
    %2838 = vmatpush.bf16.msra.mxu0 %v2663
    %2839 = vmatpush.bf16.msra.mxu0 %v2661
    %2840 = vmatpush.bf16.msra.mxu0 %v2659
    %2841 = vmatpush.bf16.msra.mxu0 %v2657
    %2842 = vmatmul.bf16.gmra.mxu0 %v2734
    %v2843 = vpop.f32.mrf.mxu0
    %v2844 = vadd.f32 %v2830, %v2843
    %v2845 = vpop.f32.mrf.mxu0
    %v2846 = vadd.f32 %v2832, %v2845
    %2847 = vdwg.mxu0
    %v2848 = vxor.u32 %v2788, 2147483648
    %v2849 = vxor.u32 %v2844, 2147483648
    %v2850 = vxor.u32 %v2790, 2147483648
    %v2851 = vxor.u32 %v2846, 2147483648
    %v2852 = vmul.f32 %v2848, 1.442695
    %v2853 = vpow.pop %v2852
    %v2854 = vmul.f32 %v2849, 1.442695
    %v2855 = vpow.pop %v2854
    %v2856 = vmul.f32 %v2850, 1.442695
    %v2857 = vpow.pop %v2856
    %v2858 = vmul.f32 %v2851, 1.442695
    %v2859 = vpow.pop %v2858
    %v2860 = vadd.f32 %v2853, 1.0
    %v2861 = vadd.f32 %v2855, 1.0
    %v2862 = vadd.f32 %v2857, 1.0
    %v2863 = vadd.f32 %v2859, 1.0
    %v2864 = vrcp.pop %v2860
    %v2865 = vmul.f32 %v2860, %v2864
    %v2866 = vsub.f32 1.0, %v2865
    %v2867 = vmul.f32 %v2864, %v2866
    %v2868 = vadd.f32 %v2864, %v2867
    %vm2869 = vweird.f32 %v2860
    %vm2870 = vweird.f32 %v2864
    %vm2871 = vmor %vm2869, %vm2870
    %v2872 = vsel %vm2871, %v2864, %v2868
    %v2873 = vand.u32 2147483647, %v2860
    %vm2874 = vcmp.eq.f32.partialorder %v2873, 8.507059e+37
    %v2875 = vand.u32 %v2860, 2147483648
    %v2876 = vor.u32 1.1754944e-38, %v2875
    %v2877 = vsel %vm2874, %v2876, %v2872
    %v2878 = vmul.f32 1.0, %v2877
    %v2879 = vrcp.pop %v2861
    %v2880 = vmul.f32 %v2861, %v2879
    %v2881 = vsub.f32 1.0, %v2880
    %v2882 = vmul.f32 %v2879, %v2881
    %v2883 = vadd.f32 %v2879, %v2882
    %vm2884 = vweird.f32 %v2861
    %vm2885 = vweird.f32 %v2879
    %vm2886 = vmor %vm2884, %vm2885
    %v2887 = vsel %vm2886, %v2879, %v2883
    %v2888 = vand.u32 2147483647, %v2861
    %vm2889 = vcmp.eq.f32.partialorder %v2888, 8.507059e+37
    %v2890 = vand.u32 %v2861, 2147483648
    %v2891 = vor.u32 1.1754944e-38, %v2890
    %v2892 = vsel %vm2889, %v2891, %v2887
    %v2893 = vmul.f32 1.0, %v2892
    %v2894 = vrcp.pop %v2862
    %v2895 = vmul.f32 %v2862, %v2894
    %v2896 = vsub.f32 1.0, %v2895
    %v2897 = vmul.f32 %v2894, %v2896
    %v2898 = vadd.f32 %v2894, %v2897
    %vm2899 = vweird.f32 %v2862
    %vm2900 = vweird.f32 %v2894
    %vm2901 = vmor %vm2899, %vm2900
    %v2902 = vsel %vm2901, %v2894, %v2898
    %v2903 = vand.u32 2147483647, %v2862
    %vm2904 = vcmp.eq.f32.partialorder %v2903, 8.507059e+37
    %v2905 = vand.u32 %v2862, 2147483648
    %v2906 = vor.u32 1.1754944e-38, %v2905
    %v2907 = vsel %vm2904, %v2906, %v2902
    %v2908 = vmul.f32 1.0, %v2907
    %v2909 = vrcp.pop %v2863
    %v2910 = vmul.f32 %v2863, %v2909
    %v2911 = vsub.f32 1.0, %v2910
    %v2912 = vmul.f32 %v2909, %v2911
    %v2913 = vadd.f32 %v2909, %v2912
    %vm2914 = vweird.f32 %v2863
    %vm2915 = vweird.f32 %v2909
    %vm2916 = vmor %vm2914, %vm2915
    %v2917 = vsel %vm2916, %v2909, %v2913
    %v2918 = vand.u32 2147483647, %v2863
    %vm2919 = vcmp.eq.f32.partialorder %v2918, 8.507059e+37
    %v2920 = vand.u32 %v2863, 2147483648
    %v2921 = vor.u32 1.1754944e-38, %v2920
    %v2922 = vsel %vm2919, %v2921, %v2917
    %v2923 = vmul.f32 1.0, %v2922
    %2928 = vrot.lane.b32.xlu0 %v2878, 8
    %v2929 = vpop.permute.xlu0 %2928
    %2930 = vrot.lane.b32.xlu0 %v2893, 8
    %v2931 = vpop.permute.xlu0 %2930
    %2932 = vrot.lane.b32.xlu0 %v2908, 8
    %v2933 = vpop.permute.xlu0 %2932
    %2934 = vrot.lane.b32.xlu0 %v2923, 8
    %v2935 = vpop.permute.xlu0 %2934
    %v2936 = vsel %vm2182, %v2929, %v2931
    %v2937 = vsel %vm2182, %v2933, %v2935
    %v2940 = vmul.f32 %v2788, %v2936
    %v2941 = vmul.f32 %v2790, %v2937
    %v2942 = vld [vmem:[%s17] sm:$0x1]
    %v2944 = vperm.slane %v2942, 0
    %v2946 = vmul.f32 %v2940, %v2944
    %v2947 = vmul.f32 %v2941, %v2944
    %v2948 = vld [vmem:[%s19] sm:$0x1]
    %v2950 = vperm.slane %v2948, 0
    %v2952 = vadd.f32 %v2946, %v2950
    %v2953 = vadd.f32 %v2947, %v2950
    %vm2954 = vcmp.ge.f32.partialorder %v2952, 0.0
    %vm2955 = vcmp.ge.f32.partialorder %v2953, 0.0
    %v2956 = vld [vmem:[%s21] sm:$0x1]
    %v2958 = vperm.slane %v2956, 0
    %v2960 = vmul.f32 %v2958, %v2952
    %v2961 = vmul.f32 %v2958, %v2953
    %v2962 = vsel %vm2954, %v2952, %v2960
    %v2963 = vsel %vm2955, %v2953, %v2961
    %2964 = vst.msk [vmem:[%s55] sm:$0xff] %vm2234, %v2962
    %v2966 = vrot.slane %v2962, 7
    %2968 = vst.msk [vmem:[#allocation2] sm:$0xfe] %vm2243, %v2966
    %2969 = vst.msk [vmem:[#allocation2 + $0x20] sm:$0x1] %vm2246, %v2966
    %s2970 = scalar_lea.vmem %s55, 8
    %2971 = vst.msk [vmem:[%s2970] sm:$0xff] %vm2234, %v2963
    %v2973 = vrot.slane %v2963, 7
    %2975 = vst.msk [vmem:[%s354] sm:$0xfe] %vm2243, %v2973
    %2976 = vst.msk [vmem:[%s354 + $0x20] sm:$0x1] %vm2246, %v2973
    %v2977 = vld [vmem:[#allocation2] sm:$0xff]
    %v2978 = vpack.c.bf16 %v2977, %v2977
    %vm2979 = vcmask 977920
    %2980 = vst.msk [vmem:[#allocation3] sm:$0xf] %vm2979, %v2978
    %v2981 = vld [vmem:[#allocation2] sm:$0xfe]
    %v2982 = vld [vmem:[#allocation2 + $0x20] sm:$0x1]
    %v2983 = vpack.c.bf16 %v2981, %v2981
    %v2984 = vpack.c.bf16 %v2982, %v2982
    %v2986 = vshrl.u32 %v2983, 16
    %v2988 = vrot.slane %v2986, 4
    %v2989 = vshll.u32 %v2983, 16
    %v2991 = vrot.slane %v2989, 5
    %v2992 = vor.u32 %v2988, %v2991
    %v2993 = vrot.slane %v2992, 4
    %v2995 = vshll.u32 %v2984, 16
    %v2997 = vrot.slane %v2995, 5
    %v2998 = vsel %vm305, %v2993, %v2997
    %2999 = vrot.lane.b32.xlu0 %v2998, 120
    %v3000 = vpop.permute.xlu0 %2999
    %v3001 = vrot.slane %v3000, 4
    %v3002 = vsel %vm2290, %v3001, %v3000
    %vm3004 = vcmask 916484
    %vm3005 = vmor %vm3004, %vm2294
    %3006 = vst.msk [vmem:[#allocation3] sm:$0xff] %vm3005, %v3002
    %v3007 = vld [vmem:[%s354] sm:$0xff]
    %v3008 = vpack.c.bf16 %v3007, %v3007
    %3009 = vst.msk [vmem:[#allocation3 + $0x1c] sm:$0xf] %vm2979, %v3008
    %v3010 = vld [vmem:[%s354] sm:$0xfe]
    %v3011 = vld [vmem:[%s354 + $0x20] sm:$0x1]
    %v3012 = vpack.c.bf16 %v3010, %v3010
    %v3013 = vpack.c.bf16 %v3011, %v3011
    %v3015 = vshrl.u32 %v3012, 16
    %v3017 = vrot.slane %v3015, 4
    %v3018 = vshll.u32 %v3012, 16
    %v3020 = vrot.slane %v3018, 5
    %v3021 = vor.u32 %v3017, %v3020
    %v3022 = vrot.slane %v3021, 4
    %v3024 = vshll.u32 %v3013, 16
    %v3026 = vrot.slane %v3024, 5
    %v3027 = vsel %vm305, %v3022, %v3026
    %3028 = vrot.lane.b32.xlu0 %v3027, 120
    %v3029 = vpop.permute.xlu0 %3028
    %v3030 = vrot.slane %v3029, 4
    %v3031 = vsel %vm2290, %v3030, %v3029
    %3033 = vst.msk [vmem:[#allocation3 + $0x1c] sm:$0xff] %vm3005, %v3031
    %v3034 = vld [vmem:[#allocation3] sm:$0xff]
    %v3035 = vld [vmem:[#allocation3 + $0x1c] sm:$0xff]
    %v3036 = vld [vmem:[%s23] sm:$0xf]
    %v3037 = vld [vmem:[%s23 + $0x4] sm:$0xf]
    %v3038 = vld [vmem:[%s23 + $0x8] sm:$0xf]
    %v3039 = vld [vmem:[%s23 + $0xc] sm:$0xf]
    %v3040 = vld [vmem:[%s23 + $0x10] sm:$0xf]
    %v3041 = vld [vmem:[%s23 + $0x14] sm:$0xf]
    %v3042 = vld [vmem:[%s23 + $0x18] sm:$0xf]
    %v3043 = vld [vmem:[%s23 + $0x1c] sm:$0xf]
    %v3044 = vld [vmem:[%s23 + $0x20] sm:$0xf]
    %v3045 = vld [vmem:[%s23 + $0x24] sm:$0xf]
    %v3046 = vld [vmem:[%s23 + $0x28] sm:$0xf]
    %v3047 = vld [vmem:[%s23 + $0x2c] sm:$0xf]
    %v3048 = vld [vmem:[%s23 + $0x30] sm:$0xf]
    %v3049 = vld [vmem:[%s23 + $0x34] sm:$0xf]
    %v3050 = vld [vmem:[%s23 + $0x38] sm:$0xf]
    %v3051 = vld [vmem:[%s23 + $0x3c] sm:$0xf]
    %v3052 = vld [vmem:[%s23 + $0x40] sm:$0xf]
    %v3053 = vld [vmem:[%s23 + $0x44] sm:$0xf]
    %v3054 = vld [vmem:[%s23 + $0x48] sm:$0xf]
    %v3055 = vld [vmem:[%s23 + $0x4c] sm:$0xf]
    %v3056 = vld [vmem:[%s23 + $0x50] sm:$0xf]
    %v3057 = vld [vmem:[%s23 + $0x54] sm:$0xf]
    %v3058 = vld [vmem:[%s23 + $0x58] sm:$0xf]
    %v3059 = vld [vmem:[%s23 + $0x5c] sm:$0xf]
    %v3060 = vld [vmem:[%s23 + $0x60] sm:$0xf]
    %v3061 = vld [vmem:[%s23 + $0x64] sm:$0xf]
    %v3062 = vld [vmem:[%s23 + $0x68] sm:$0xf]
    %v3063 = vld [vmem:[%s23 + $0x6c] sm:$0xf]
    %v3064 = vld [vmem:[%s23 + $0x70] sm:$0xf]
    %v3065 = vld [vmem:[%s23 + $0x74] sm:$0xf]
    %v3066 = vld [vmem:[%s25] sm:$0x1]
    %v3068 = vperm.slane %v3066, 0
    %v3072 = vunpack.c.l.b16 %v3034
    %v3073 = vunpack.c.h.b16 %v3034
    %v3074 = vunpack.c.l.b16 %v3035
    %v3075 = vunpack.c.h.b16 %v3035
    %v3076 = vpack.c.b16 %v3074, %v3072
    %v3077 = vpack.c.b16 %v3075, %v3073
    %v3109 = vunpack.c.l.b16 %v3036
    %v3110 = vunpack.c.l.b16 %v3037
    %v3111 = vunpack.c.l.b16 %v3038
    %v3112 = vunpack.c.l.b16 %v3039
    %v3113 = vunpack.c.l.b16 %v3040
    %v3114 = vunpack.c.l.b16 %v3041
    %v3115 = vunpack.c.l.b16 %v3042
    %v3116 = vunpack.c.l.b16 %v3043
    %v3117 = vunpack.c.l.b16 %v3044
    %v3118 = vunpack.c.l.b16 %v3045
    %v3119 = vunpack.c.l.b16 %v3046
    %v3120 = vunpack.c.l.b16 %v3047
    %v3121 = vunpack.c.l.b16 %v3048
    %v3122 = vunpack.c.l.b16 %v3049
    %v3123 = vunpack.c.l.b16 %v3050
    %v3124 = vunpack.c.l.b16 %v3051
    %v3125 = vunpack.c.l.b16 %v3052
    %v3126 = vunpack.c.l.b16 %v3053
    %v3127 = vunpack.c.l.b16 %v3054
    %v3128 = vunpack.c.l.b16 %v3055
    %v3129 = vunpack.c.l.b16 %v3056
    %v3130 = vunpack.c.l.b16 %v3057
    %v3131 = vunpack.c.l.b16 %v3058
    %v3132 = vunpack.c.l.b16 %v3059
    %v3133 = vunpack.c.l.b16 %v3060
    %v3134 = vunpack.c.l.b16 %v3061
    %v3135 = vunpack.c.l.b16 %v3062
    %v3136 = vunpack.c.l.b16 %v3063
    %v3137 = vunpack.c.l.b16 %v3064
    %v3138 = vunpack.c.l.b16 %v3065
    %v3139 = vpack.c.b16 %v3110, %v3109
    %v3140 = vpack.c.b16 %v3112, %v3111
    %v3141 = vpack.c.b16 %v3114, %v3113
    %v3142 = vpack.c.b16 %v3116, %v3115
    %v3143 = vpack.c.b16 %v3118, %v3117
    %v3144 = vpack.c.b16 %v3120, %v3119
    %v3145 = vpack.c.b16 %v3122, %v3121
    %v3146 = vpack.c.b16 %v3124, %v3123
    %v3147 = vpack.c.b16 %v3126, %v3125
    %v3148 = vpack.c.b16 %v3128, %v3127
    %v3149 = vpack.c.b16 %v3130, %v3129
    %v3150 = vpack.c.b16 %v3132, %v3131
    %v3151 = vpack.c.b16 %v3134, %v3133
    %v3152 = vpack.c.b16 %v3136, %v3135
    %v3153 = vpack.c.b16 %v3138, %v3137
    %v3170 = vsel %vm2732, %v3077, 0
    %3172 = vmatpush.bf16.msra.mxu0 %v3146
    %3173 = vmatpush.bf16.msra.mxu0 %v3145
    %3174 = vmatpush.bf16.msra.mxu0 %v3144
    %3175 = vmatpush.bf16.msra.mxu0 %v3143
    %3176 = vmatpush.bf16.msra.mxu0 %v3142
    %3177 = vmatpush.bf16.msra.mxu0 %v3141
    %3178 = vmatpush.bf16.msra.mxu0 %v3140
    %3179 = vmatpush.bf16.msra.mxu0 %v3139
    %3180 = vmatmul.bf16.gmra.mxu0 %v3076
    %v3181 = vpop.f32.mrf.mxu0
    %v3182 = vadd.f32 %v3068, %v3181
    %v3183 = vpop.f32.mrf.mxu0
    %v3184 = vadd.f32 %v3068, %v3183
    %3185 = vdwg.mxu0
    %3186 = vmatpush.bf16.msra.mxu0 0
    %3187 = vmatpush.bf16.msra.mxu0 %v3153
    %3188 = vmatpush.bf16.msra.mxu0 %v3152
    %3189 = vmatpush.bf16.msra.mxu0 %v3151
    %3190 = vmatpush.bf16.msra.mxu0 %v3150
    %3191 = vmatpush.bf16.msra.mxu0 %v3149
    %3192 = vmatpush.bf16.msra.mxu0 %v3148
    %3193 = vmatpush.bf16.msra.mxu0 %v3147
    %3194 = vmatmul.bf16.gmra.mxu0 %v3170
    %v3195 = vpop.f32.mrf.mxu0
    %v3196 = vadd.f32 %v3182, %v3195
    %v3197 = vpop.f32.mrf.mxu0
    %v3198 = vadd.f32 %v3184, %v3197
    %3199 = vdwg.mxu0
    %v3200 = vxor.u32 %v3196, 2147483648
    %v3201 = vxor.u32 %v3198, 2147483648
    %v3202 = vmul.f32 %v3200, 1.442695
    %v3203 = vpow.pop %v3202
    %v3204 = vmul.f32 %v3201, 1.442695
    %v3205 = vpow.pop %v3204
    %v3206 = vadd.f32 %v3203, 1.0
    %v3207 = vadd.f32 %v3205, 1.0
    %v3208 = vrcp.pop %v3206
    %v3209 = vmul.f32 %v3206, %v3208
    %v3210 = vsub.f32 1.0, %v3209
    %v3211 = vmul.f32 %v3208, %v3210
    %v3212 = vadd.f32 %v3208, %v3211
    %vm3213 = vweird.f32 %v3206
    %vm3214 = vweird.f32 %v3208
    %vm3215 = vmor %vm3213, %vm3214
    %v3216 = vsel %vm3215, %v3208, %v3212
    %v3217 = vand.u32 2147483647, %v3206
    %vm3218 = vcmp.eq.f32.partialorder %v3217, 8.507059e+37
    %v3219 = vand.u32 %v3206, 2147483648
    %v3220 = vor.u32 1.1754944e-38, %v3219
    %v3221 = vsel %vm3218, %v3220, %v3216
    %v3222 = vmul.f32 1.0, %v3221
    %v3223 = vrcp.pop %v3207
    %v3224 = vmul.f32 %v3207, %v3223
    %v3225 = vsub.f32 1.0, %v3224
    %v3226 = vmul.f32 %v3223, %v3225
    %v3227 = vadd.f32 %v3223, %v3226
    %vm3228 = vweird.f32 %v3207
    %vm3229 = vweird.f32 %v3223
    %vm3230 = vmor %vm3228, %vm3229
    %v3231 = vsel %vm3230, %v3223, %v3227
    %v3232 = vand.u32 2147483647, %v3207
    %vm3233 = vcmp.eq.f32.partialorder %v3232, 8.507059e+37
    %v3234 = vand.u32 %v3207, 2147483648
    %v3235 = vor.u32 1.1754944e-38, %v3234
    %v3236 = vsel %vm3233, %v3235, %v3231
    %v3237 = vmul.f32 1.0, %v3236
    %3240 = vrot.lane.b32.xlu0 %v3222, 72
    %v3241 = vpop.permute.xlu0 %3240
    %3242 = vrot.lane.b32.xlu0 %v3237, 72
    %v3243 = vpop.permute.xlu0 %3242
    %v3246 = vmul.f32 %v3196, %v3241
    %v3247 = vmul.f32 %v3198, %v3243
    %v3248 = vld [vmem:[%s27] sm:$0x1]
    %v3250 = vperm.slane %v3248, 0
    %v3252 = vmul.f32 %v3246, %v3250
    %v3253 = vmul.f32 %v3247, %v3250
    %v3254 = vld [vmem:[%s29] sm:$0x1]
    %v3256 = vperm.slane %v3254, 0
    %v3258 = vadd.f32 %v3252, %v3256
    %v3259 = vadd.f32 %v3253, %v3256
    %vm3260 = vcmp.ge.f32.partialorder %v3258, 0.0
    %vm3261 = vcmp.ge.f32.partialorder %v3259, 0.0
    %v3262 = vld [vmem:[%s31] sm:$0x1]
    %v3264 = vperm.slane %v3262, 0
    %v3266 = vmul.f32 %v3264, %v3258
    %v3267 = vmul.f32 %v3264, %v3259
    %v3268 = vsel %vm3260, %v3258, %v3266
    %v3269 = vsel %vm3261, %v3259, %v3267
    %vm3270 = vcmask 457728
    %3271 = vst.msk [vmem:[%s57] sm:$0xff] %vm3270, %v3268
    %v3273 = vrot.slane %v3268, 7
    %vm3275 = vcmask 457729
    %3276 = vst.msk [vmem:[#allocation2] sm:$0xfe] %vm3275, %v3273
    %vm3277 = vcmask 450560
    %3278 = vst.msk [vmem:[#allocation2 + $0x20] sm:$0x1] %vm3277, %v3273
    %s3279 = scalar_lea.vmem %s57, 8
    %3280 = vst.msk [vmem:[%s3279] sm:$0xff] %vm3270, %v3269
    %v3282 = vrot.slane %v3269, 7
    %3284 = vst.msk [vmem:[%s354] sm:$0xfe] %vm3275, %v3282
    %3285 = vst.msk [vmem:[%s354 + $0x20] sm:$0x1] %vm3277, %v3282
    %v3286 = vld [vmem:[#allocation2] sm:$0xff]
    %v3287 = vpack.c.bf16 %v3286, %v3286
    %vm3288 = vcmask 453632
    %3289 = vst.msk [vmem:[#allocation3] sm:$0xf] %vm3288, %v3287
    %v3290 = vld [vmem:[#allocation2] sm:$0xfe]
    %v3291 = vld [vmem:[#allocation2 + $0x20] sm:$0x1]
    %v3292 = vpack.c.bf16 %v3290, %v3290
    %v3293 = vpack.c.bf16 %v3291, %v3291
    %v3295 = vshrl.u32 %v3292, 16
    %v3297 = vrot.slane %v3295, 4
    %v3298 = vshll.u32 %v3292, 16
    %v3300 = vrot.slane %v3298, 5
    %v3301 = vor.u32 %v3297, %v3300
    %v3302 = vrot.slane %v3301, 4
    %v3304 = vshll.u32 %v3293, 16
    %v3306 = vrot.slane %v3304, 5
    %v3307 = vsel %vm305, %v3302, %v3306
    %3308 = vrot.lane.b32.xlu0 %v3307, 56
    %v3309 = vpop.permute.xlu0 %3308
    %vm3311 = vcmask 912832
    %3312 = vst.msk [vmem:[#allocation3] sm:$0xf] %vm3311, %v3309
    %v3313 = vld [vmem:[%s354] sm:$0xff]
    %v3314 = vpack.c.bf16 %v3313, %v3313
    %3315 = vst.msk [vmem:[#allocation3 + $0x1c] sm:$0xf] %vm3288, %v3314
    %v3316 = vld [vmem:[%s354] sm:$0xfe]
    %v3317 = vld [vmem:[%s354 + $0x20] sm:$0x1]
    %v3318 = vpack.c.bf16 %v3316, %v3316
    %v3319 = vpack.c.bf16 %v3317, %v3317
    %v3321 = vshrl.u32 %v3318, 16
    %v3323 = vrot.slane %v3321, 4
    %v3324 = vshll.u32 %v3318, 16
    %v3326 = vrot.slane %v3324, 5
    %v3327 = vor.u32 %v3323, %v3326
    %v3328 = vrot.slane %v3327, 4
    %v3330 = vshll.u32 %v3319, 16
    %v3332 = vrot.slane %v3330, 5
    %v3333 = vsel %vm305, %v3328, %v3332
    %3334 = vrot.lane.b32.xlu0 %v3333, 56
    %v3335 = vpop.permute.xlu0 %3334
    %3337 = vst.msk [vmem:[#allocation3 + $0x1c] sm:$0xf] %vm3311, %v3335
    %v3338 = vld [vmem:[#allocation3] sm:$0xf]
    %v3339 = vld [vmem:[#allocation3 + $0x1c] sm:$0xf]
    %v3340 = vld [vmem:[%s33] sm:$0xf]
    %v3341 = vld [vmem:[%s33 + $0x4] sm:$0xf]
    %v3342 = vld [vmem:[%s33 + $0x8] sm:$0xf]
    %v3343 = vld [vmem:[%s33 + $0xc] sm:$0xf]
    %v3344 = vld [vmem:[%s33 + $0x10] sm:$0xf]
    %v3345 = vld [vmem:[%s33 + $0x14] sm:$0xf]
    %v3346 = vld [vmem:[%s33 + $0x18] sm:$0xf]
    %v3347 = vld [vmem:[%s33 + $0x1c] sm:$0xf]
    %v3348 = vld [vmem:[%s33 + $0x20] sm:$0xf]
    %v3349 = vld [vmem:[%s33 + $0x24] sm:$0xf]
    %v3350 = vld [vmem:[%s33 + $0x28] sm:$0xf]
    %v3351 = vld [vmem:[%s33 + $0x2c] sm:$0xf]
    %v3352 = vld [vmem:[%s33 + $0x30] sm:$0xf]
    %v3353 = vld [vmem:[%s33 + $0x34] sm:$0xf]
    %v3354 = vld [vmem:[%s35] sm:$0x1]
    %v3356 = vperm.slane %v3354, 0
    %v3360 = vunpack.c.l.b16 %v3338
    %v3361 = vunpack.c.l.b16 %v3339
    %v3362 = vpack.c.b16 %v3361, %v3360
    %v3377 = vunpack.c.l.b16 %v3340
    %v3378 = vunpack.c.l.b16 %v3341
    %v3379 = vunpack.c.l.b16 %v3342
    %v3380 = vunpack.c.l.b16 %v3343
    %v3381 = vunpack.c.l.b16 %v3344
    %v3382 = vunpack.c.l.b16 %v3345
    %v3383 = vunpack.c.l.b16 %v3346
    %v3384 = vunpack.c.l.b16 %v3347
    %v3385 = vunpack.c.l.b16 %v3348
    %v3386 = vunpack.c.l.b16 %v3349
    %v3387 = vunpack.c.l.b16 %v3350
    %v3388 = vunpack.c.l.b16 %v3351
    %v3389 = vunpack.c.l.b16 %v3352
    %v3390 = vunpack.c.l.b16 %v3353
    %v3391 = vpack.c.b16 %v3378, %v3377
    %v3392 = vpack.c.b16 %v3380, %v3379
    %v3393 = vpack.c.b16 %v3382, %v3381
    %v3394 = vpack.c.b16 %v3384, %v3383
    %v3395 = vpack.c.b16 %v3386, %v3385
    %v3396 = vpack.c.b16 %v3388, %v3387
    %v3397 = vpack.c.b16 %v3390, %v3389
    %v3406 = vsel %vm2732, %v3362, 0
    %3408 = vmatpush.bf16.msra.mxu0 0
    %3409 = vmatpush.bf16.msra.mxu0 %v3397
    %3410 = vmatpush.bf16.msra.mxu0 %v3396
    %3411 = vmatpush.bf16.msra.mxu0 %v3395
    %3412 = vmatpush.bf16.msra.mxu0 %v3394
    %3413 = vmatpush.bf16.msra.mxu0 %v3393
    %3414 = vmatpush.bf16.msra.mxu0 %v3392
    %3415 = vmatpush.bf16.msra.mxu0 %v3391
    %3416 = vmatmul.bf16.gmra.mxu0 %v3406
    %v3417 = vpop.f32.mrf.mxu0
    %v3418 = vadd.f32 %v3356, %v3417
    %v3419 = vpop.f32.mrf.mxu0
    %v3420 = vadd.f32 %v3356, %v3419
    %3421 = vdwg.mxu0
    %v3422 = vxor.u32 %v3418, 2147483648
    %v3423 = vxor.u32 %v3420, 2147483648
    %v3424 = vmul.f32 %v3422, 1.442695
    %v3425 = vpow.pop %v3424
    %v3426 = vmul.f32 %v3423, 1.442695
    %v3427 = vpow.pop %v3426
    %v3428 = vadd.f32 %v3425, 1.0
    %v3429 = vadd.f32 %v3427, 1.0
    %v3430 = vrcp.pop %v3428
    %v3431 = vmul.f32 %v3428, %v3430
    %v3432 = vsub.f32 1.0, %v3431
    %v3433 = vmul.f32 %v3430, %v3432
    %v3434 = vadd.f32 %v3430, %v3433
    %vm3435 = vweird.f32 %v3428
    %vm3436 = vweird.f32 %v3430
    %vm3437 = vmor %vm3435, %vm3436
    %v3438 = vsel %vm3437, %v3430, %v3434
    %v3439 = vand.u32 2147483647, %v3428
    %vm3440 = vcmp.eq.f32.partialorder %v3439, 8.507059e+37
    %v3441 = vand.u32 %v3428, 2147483648
    %v3442 = vor.u32 1.1754944e-38, %v3441
    %v3443 = vsel %vm3440, %v3442, %v3438
    %v3444 = vmul.f32 1.0, %v3443
    %v3445 = vrcp.pop %v3429
    %v3446 = vmul.f32 %v3429, %v3445
    %v3447 = vsub.f32 1.0, %v3446
    %v3448 = vmul.f32 %v3445, %v3447
    %v3449 = vadd.f32 %v3445, %v3448
    %vm3450 = vweird.f32 %v3429
    %vm3451 = vweird.f32 %v3445
    %vm3452 = vmor %vm3450, %vm3451
    %v3453 = vsel %vm3452, %v3445, %v3449
    %v3454 = vand.u32 2147483647, %v3429
    %vm3455 = vcmp.eq.f32.partialorder %v3454, 8.507059e+37
    %v3456 = vand.u32 %v3429, 2147483648
    %v3457 = vor.u32 1.1754944e-38, %v3456
    %v3458 = vsel %vm3455, %v3457, %v3453
    %v3459 = vmul.f32 1.0, %v3458
    %3462 = vrot.lane.b32.xlu0 %v3444, 104
    %v3463 = vpop.permute.xlu0 %3462
    %3464 = vrot.lane.b32.xlu0 %v3459, 104
    %v3465 = vpop.permute.xlu0 %3464
    %v3468 = vmul.f32 %v3418, %v3463
    %v3469 = vmul.f32 %v3420, %v3465
    %v3470 = vld [vmem:[%s37] sm:$0x1]
    %v3472 = vperm.slane %v3470, 0
    %v3474 = vmul.f32 %v3468, %v3472
    %v3475 = vmul.f32 %v3469, %v3472
    %v3476 = vld [vmem:[%s39] sm:$0x1]
    %v3478 = vperm.slane %v3476, 0
    %v3480 = vadd.f32 %v3474, %v3478
    %v3481 = vadd.f32 %v3475, %v3478
    %vm3482 = vcmp.ge.f32.partialorder %v3480, 0.0
    %vm3483 = vcmp.ge.f32.partialorder %v3481, 0.0
    %v3484 = vld [vmem:[%s41] sm:$0x1]
    %v3486 = vperm.slane %v3484, 0
    %v3488 = vmul.f32 %v3486, %v3480
    %v3489 = vmul.f32 %v3486, %v3481
    %v3490 = vsel %vm3482, %v3480, %v3488
    %v3491 = vsel %vm3483, %v3481, %v3489
    %vm3492 = vcmask 195584
    %3493 = vst.msk [vmem:[%s59] sm:$0xff] %vm3492, %v3490
    %v3495 = vrot.slane %v3490, 7
    %vm3497 = vcmask 195585
    %3498 = vst.msk [vmem:[#allocation2] sm:$0xfe] %vm3497, %v3495
    %vm3499 = vcmask 188416
    %3500 = vst.msk [vmem:[#allocation2 + $0x20] sm:$0x1] %vm3499, %v3495
    %s3501 = scalar_lea.vmem %s59, 8
    %3502 = vst.msk [vmem:[%s3501] sm:$0xff] %vm3492, %v3491
    %v3504 = vrot.slane %v3491, 7
    %3506 = vst.msk [vmem:[%s354] sm:$0xfe] %vm3497, %v3504
    %3507 = vst.msk [vmem:[%s354 + $0x20] sm:$0x1] %vm3499, %v3504
    %v3508 = vld [vmem:[#allocation2] sm:$0xff]
    %v3509 = vpack.c.bf16 %v3508, %v3508
    %vm3510 = vcmask 191488
    %3511 = vst.msk [vmem:[#allocation3] sm:$0xf] %vm3510, %v3509
    %v3512 = vld [vmem:[#allocation2] sm:$0xfe]
    %v3513 = vld [vmem:[#allocation2 + $0x20] sm:$0x1]
    %v3514 = vpack.c.bf16 %v3512, %v3512
    %v3515 = vpack.c.bf16 %v3513, %v3513
    %v3517 = vshrl.u32 %v3514, 16
    %v3519 = vrot.slane %v3517, 4
    %v3520 = vshll.u32 %v3514, 16
    %v3522 = vrot.slane %v3520, 5
    %v3523 = vor.u32 %v3519, %v3522
    %v3524 = vrot.slane %v3523, 4
    %v3526 = vshll.u32 %v3515, 16
    %v3528 = vrot.slane %v3526, 5
    %v3529 = vsel %vm305, %v3524, %v3528
    %3530 = vrot.lane.b32.xlu0 %v3529, 24
    %v3531 = vpop.permute.xlu0 %3530
    %vm3533 = vcmask 388288
    %3534 = vst.msk [vmem:[#allocation3] sm:$0xf] %vm3533, %v3531
    %v3535 = vld [vmem:[%s354] sm:$0xff]
    %v3536 = vpack.c.bf16 %v3535, %v3535
    %3537 = vst.msk [vmem:[#allocation3 + $0x1c] sm:$0xf] %vm3510, %v3536
    %v3538 = vld [vmem:[%s354] sm:$0xfe]
    %v3539 = vld [vmem:[%s354 + $0x20] sm:$0x1]
    %v3540 = vpack.c.bf16 %v3538, %v3538
    %v3541 = vpack.c.bf16 %v3539, %v3539
    %v3543 = vshrl.u32 %v3540, 16
    %v3545 = vrot.slane %v3543, 4
    %v3546 = vshll.u32 %v3540, 16
    %v3548 = vrot.slane %v3546, 5
    %v3549 = vor.u32 %v3545, %v3548
    %v3550 = vrot.slane %v3549, 4
    %v3552 = vshll.u32 %v3541, 16
    %v3554 = vrot.slane %v3552, 5
    %v3555 = vsel %vm305, %v3550, %v3554
    %3556 = vrot.lane.b32.xlu0 %v3555, 24
    %v3557 = vpop.permute.xlu0 %3556
    %3559 = vst.msk [vmem:[#allocation3 + $0x1c] sm:$0xf] %vm3533, %v3557
    %v3560 = vld [vmem:[#allocation3] sm:$0xf]
    %v3561 = vld [vmem:[#allocation3 + $0x1c] sm:$0xf]
    %v3562 = vld [vmem:[%s43] sm:$0xf]
    %v3563 = vld [vmem:[%s43 + $0x4] sm:$0xf]
    %v3564 = vld [vmem:[%s43 + $0x8] sm:$0xf]
    %v3565 = vld [vmem:[%s43 + $0xc] sm:$0xf]
    %v3566 = vld [vmem:[%s43 + $0x10] sm:$0xf]
    %v3567 = vld [vmem:[%s43 + $0x14] sm:$0xf]
    %v3568 = vld [vmem:[%s45] sm:$0x1]
    %v3570 = vperm.slane %v3568, 0
    %v3574 = vunpack.c.l.b16 %v3560
    %v3575 = vunpack.c.l.b16 %v3561
    %v3576 = vpack.c.b16 %v3575, %v3574
    %v3583 = vunpack.c.l.b16 %v3562
    %v3584 = vunpack.c.l.b16 %v3563
    %v3585 = vunpack.c.l.b16 %v3564
    %v3586 = vunpack.c.l.b16 %v3565
    %v3587 = vunpack.c.l.b16 %v3566
    %v3588 = vunpack.c.l.b16 %v3567
    %v3589 = vpack.c.b16 %v3584, %v3583
    %v3590 = vpack.c.b16 %v3586, %v3585
    %v3591 = vpack.c.b16 %v3588, %v3587
    %vm3595 = vcmask 392192
    %v3597 = vsel %vm3595, %v3576, 0
    %3599 = vmatpush.bf16.msra.mxu0 0
    %3600 = vmatpush.bf16.msra.mxu0 0
    %3601 = vmatpush.bf16.msra.mxu0 0
    %3602 = vmatpush.bf16.msra.mxu0 0
    %3603 = vmatpush.bf16.msra.mxu0 0
    %3604 = vmatpush.bf16.msra.mxu0 %v3591
    %3605 = vmatpush.bf16.msra.mxu0 %v3590
    %3606 = vmatpush.bf16.msra.mxu0 %v3589
    %3607 = vmatmul.bf16.gmra.mxu0 %v3597
    %v3608 = vpop.f32.mrf.mxu0
    %v3609 = vadd.f32 %v3570, %v3608
    %v3610 = vpop.f32.mrf.mxu0
    %v3611 = vadd.f32 %v3570, %v3610
    %3612 = vdwg.mxu0
    %v3613 = vxor.u32 %v3609, 2147483648
    %v3614 = vxor.u32 %v3611, 2147483648
    %v3615 = vmul.f32 %v3613, 1.442695
    %v3616 = vpow.pop %v3615
    %v3617 = vmul.f32 %v3614, 1.442695
    %v3618 = vpow.pop %v3617
    %v3619 = vadd.f32 %v3616, 1.0
    %v3620 = vadd.f32 %v3618, 1.0
    %v3621 = vrcp.pop %v3619
    %v3622 = vmul.f32 %v3619, %v3621
    %v3623 = vsub.f32 1.0, %v3622
    %v3624 = vmul.f32 %v3621, %v3623
    %v3625 = vadd.f32 %v3621, %v3624
    %vm3626 = vweird.f32 %v3619
    %vm3627 = vweird.f32 %v3621
    %vm3628 = vmor %vm3626, %vm3627
    %v3629 = vsel %vm3628, %v3621, %v3625
    %v3630 = vand.u32 2147483647, %v3619
    %vm3631 = vcmp.eq.f32.partialorder %v3630, 8.507059e+37
    %v3632 = vand.u32 %v3619, 2147483648
    %v3633 = vor.u32 1.1754944e-38, %v3632
    %v3634 = vsel %vm3631, %v3633, %v3629
    %v3635 = vmul.f32 1.0, %v3634
    %v3636 = vrcp.pop %v3620
    %v3637 = vmul.f32 %v3620, %v3636
    %v3638 = vsub.f32 1.0, %v3637
    %v3639 = vmul.f32 %v3636, %v3638
    %v3640 = vadd.f32 %v3636, %v3639
    %vm3641 = vweird.f32 %v3620
    %vm3642 = vweird.f32 %v3636
    %vm3643 = vmor %vm3641, %vm3642
    %v3644 = vsel %vm3643, %v3636, %v3640
    %v3645 = vand.u32 2147483647, %v3620
    %vm3646 = vcmp.eq.f32.partialorder %v3645, 8.507059e+37
    %v3647 = vand.u32 %v3620, 2147483648
    %v3648 = vor.u32 1.1754944e-38, %v3647
    %v3649 = vsel %vm3646, %v3648, %v3644
    %v3650 = vmul.f32 1.0, %v3649
    %3653 = vrot.lane.b32.xlu0 %v3635, 64
    %v3654 = vpop.permute.xlu0 %3653
    %3655 = vrot.lane.b32.xlu0 %v3650, 64
    %v3656 = vpop.permute.xlu0 %3655
    %v3659 = vmul.f32 %v3609, %v3654
    %v3660 = vmul.f32 %v3611, %v3656
    %v3661 = vld [vmem:[%s47] sm:$0x1]
    %v3663 = vperm.slane %v3661, 0
    %v3665 = vmul.f32 %v3659, %v3663
    %v3666 = vmul.f32 %v3660, %v3663
    %v3667 = vld [vmem:[%s49] sm:$0x1]
    %v3669 = vperm.slane %v3667, 0
    %v3671 = vadd.f32 %v3665, %v3669
    %v3672 = vadd.f32 %v3666, %v3669
    %vm3673 = vcmp.ge.f32.partialorder %v3671, 0.0
    %vm3674 = vcmp.ge.f32.partialorder %v3672, 0.0
    %v3675 = vld [vmem:[%s51] sm:$0x1]
    %v3677 = vperm.slane %v3675, 0
    %v3679 = vmul.f32 %v3677, %v3671
    %v3680 = vmul.f32 %v3677, %v3672
    %v3681 = vsel %vm3673, %v3671, %v3679
    %v3682 = vsel %vm3674, %v3672, %v3680
    %vm3683 = vcmask 523264
    %3684 = vst.msk [vmem:[%s61] sm:$0xff] %vm3683, %v3681
    %s3685 = scalar_lea.vmem %s61, 8
    %3686 = vst.msk [vmem:[%s3685] sm:$0xff] %vm3683, %v3682
    // Predicated region
    $region110: #{unet_encoder_forward.1} parent=1 // pred_check
      _
    $region111: #{unet_encoder_forward.1} parent=1 // pred_check_branch
      %3688 = sbr.rel (0) target = $region113
    $region112: #{unet_encoder_forward.1} parent=1 // pred_region
      _
    $region113: #{unet_encoder_forward.1} parent=1 // pred_fallthru
      _
    // Predicated region
    $region114: #{unet_encoder_forward.1} parent=1 // pred_check
      _
    $region115: #{unet_encoder_forward.1} parent=1 // pred_check_branch
      %3690 = sbr.rel (0) target = $region117
    $region116: #{unet_encoder_forward.1} parent=1 // pred_region
      _
    $region117: #{unet_encoder_forward.1} parent=1 // pred_fallthru
      _
    // Predicated region
    $region118: #{unet_encoder_forward.1} parent=1 // pred_check
      _
    $region119: #{unet_encoder_forward.1} parent=1 // pred_check_branch
      %3692 = sbr.rel (0) target = $region121
    $region120: #{unet_encoder_forward.1} parent=1 // pred_region
      _
    $region121: #{unet_encoder_forward.1} parent=1 // pred_fallthru
      _
    // Predicated region
    $region122: #{unet_encoder_forward.1} parent=1 // pred_check
      _
    $region123: #{unet_encoder_forward.1} parent=1 // pred_check_branch
      %3694 = sbr.rel (0) target = $region125
    $region124: #{unet_encoder_forward.1} parent=1 // pred_region
      _
    $region125: #{unet_encoder_forward.1} parent=1 // pred_fallthru
      _
    // Predicated region
    $region126: #{unet_encoder_forward.1} parent=1 // pred_check
      _
    $region127: #{unet_encoder_forward.1} parent=1 // pred_check_branch
      %3696 = sbr.rel (0) target = $region129
    $region128: #{unet_encoder_forward.1} parent=1 // pred_region
      _
    $region129: #{unet_encoder_forward.1} parent=1 // pred_fallthru
      _
    // Predicated region
    $region130: #{unet_encoder_forward.1} parent=1 // pred_check
      _
    $region131: #{unet_encoder_forward.1} parent=1 // pred_check_branch
      %3698 = sbr.rel (0) target = $region133
    $region132: #{unet_encoder_forward.1} parent=1 // pred_region
      _
    $region133: #{unet_encoder_forward.1} parent=1 // pred_fallthru
      _
    // Predicated region
    $region134: #{unet_encoder_forward.1} parent=1 // pred_check
      _
    $region135: #{unet_encoder_forward.1} parent=1 // pred_check_branch
      %3700 = sbr.rel (0) target = $region137
    $region136: #{unet_encoder_forward.1} parent=1 // pred_region
      _
    $region137: #{unet_encoder_forward.1} parent=1 // pred_fallthru
      _
    // Predicated region
    $region138: #{unet_encoder_forward.1} parent=1 // pred_check
      _
    $region139: #{unet_encoder_forward.1} parent=1 // pred_check_branch
      %3702 = sbr.rel (0) target = $region141
    $region140: #{unet_encoder_forward.1} parent=1 // pred_region
      _
    $region141: #{unet_encoder_forward.1} parent=1 // pred_fallthru
      _
    // Predicated region
    $region142: #{unet_encoder_forward.1} parent=1 // pred_check
      _
    $region143: #{unet_encoder_forward.1} parent=1 // pred_check_branch
      %3704 = sbr.rel (0) target = $region145
    $region144: #{unet_encoder_forward.1} parent=1 // pred_region
      _
    $region145: #{unet_encoder_forward.1} parent=1 // pred_fallthru
      _
    // Predicated region
    $region146: #{unet_encoder_forward.1} parent=1 // pred_check
      _
    $region147: #{unet_encoder_forward.1} parent=1 // pred_check_branch
      %3706 = sbr.rel (0) target = $region149
    $region148: #{unet_encoder_forward.1} parent=1 // pred_region
      _
    $region149: #{unet_encoder_forward.1} parent=1 // pred_fallthru
      _
    %3707 = vsyncpa [#allocation5], 1

</llo_original>
